<compile_context>
chip_gen: v6e
topology: v6e:2x2x1
jax: 0.10.0
libtpu: 0.0.40
codegen_flags: <defaults>
</compile_context>

<pallas_src>
import numpy as np

import jax
import jax.numpy as jnp
from jax.experimental import pallas as pl
from jax.experimental.pallas import tpu as pltpu

BN_EPS = 1e-5


def _conv3x3_bn_relu(x, sdn, sup, b0_ref, b1_ref, b2_ref, sel, selt, g_ref, beta_ref):
    """One conv3x3(pad=1, stride=1) + BatchNorm(batch stats) + ReLU in slab layout.

    x:        (N*H, W*Cin) f32 slab; rows (n, h), lanes (w, cin)
    sdn/sup:  (N*H, N*H)   f32 0/1 row-shift matrices (row h-1 / h+1, 0 at edges)
    b0/b1/b2: (W*Cin, W*Cout) bf16 band weights for kernel rows di = 0, 1, 2
    sel:      (W*Cout, Cout)  f32 channel selector (sums over w)
    selt:     (Cout, W*Cout)  f32 channel broadcaster (tiles over w)
    g/beta:   (1, Cout) f32 BN affine params
    returns:  (N*H, W*Cout) f32 slab
    """
    nh = x.shape[0]
    cout = g_ref.shape[-1]
    lout = b1_ref.shape[-1]
    inv_m = 1.0 / float(nh * (lout // cout))          # 1 / (N*H*W)

    # Height shifts (rows h-1 / h+1, zero at batch boundaries) as tiny permutation
    # matmuls -- exact row copies, keeps everything dense, MXU is otherwise idle.
    x_dn = jnp.dot(sdn, x, preferred_element_type=jnp.float32)
    x_up = jnp.dot(sup, x, preferred_element_type=jnp.float32)

    # Three lane-dense MXU matmuls; the dj taps + width zero-padding live in the
    # precomputed band matrices. f32 accumulation.
    acc = jnp.dot(x_dn.astype(jnp.bfloat16), b0_ref[...],
                  preferred_element_type=jnp.float32)
    acc = acc + jnp.dot(x.astype(jnp.bfloat16), b1_ref[...],
                        preferred_element_type=jnp.float32)
    acc = acc + jnp.dot(x_up.astype(jnp.bfloat16), b2_ref[...],
                        preferred_element_type=jnp.float32)   # (N*H, W*Cout) f32
    # (Conv bias omitted: training-mode BN mean subtraction cancels it exactly.)

    # One-pass per-channel stats: dense elementwise square + sublane reductions +
    # tiny channel-selector matmul. No lane-splitting reshape of the big slab.
    # (Note: E[x^2]-E[x]^2 in f32 is fine at this scale; use Welford if scaled up.)
    t_s = jnp.dot(acc, sel, preferred_element_type=jnp.float32)        # (N*H, Cout)
    t_ss = jnp.dot(acc * acc, sel, preferred_element_type=jnp.float32)  # (N*H, Cout)
    s = jnp.sum(t_s, axis=0, keepdims=True)                             # (1, Cout)
    ss = jnp.sum(t_ss, axis=0, keepdims=True)                           # (1, Cout)
    mean = s * inv_m
    var = jnp.maximum(ss * inv_m - mean * mean, 0.0)

    # BN folded to a single FMA on the dense slab: y = acc * scale + shift.
    scale_c = g_ref[...] * jax.lax.rsqrt(var + BN_EPS)                  # (1, Cout)
    shift_c = beta_ref[...] - mean * scale_c                            # (1, Cout)
    scale_l = jnp.dot(scale_c, selt, preferred_element_type=jnp.float32)  # (1, W*Cout)
    shift_l = jnp.dot(shift_c, selt, preferred_element_type=jnp.float32)  # (1, W*Cout)
    return jnp.maximum(acc * scale_l + shift_l, 0.0)                    # ReLU


def basic_block_kernel(x_ref, sdn_ref, sup_ref, sel_ref, selt_ref,
                       b1a0, b1a1, b1a2, g1a, be1a,
                       b1b0, b1b1, b1b2, g1b, be1b,
                       b2a0, b2a1, b2a2, g2a, be2a,
                       b2b0, b2b1, b2b2, g2b, be2b,
                       out_ref):
    sdn = sdn_ref[...]
    sup = sup_ref[...]
    sel = sel_ref[...]
    selt = selt_ref[...]

    def conv(x, b0, b1, b2, g, be):
        return _conv3x3_bn_relu(x, sdn, sup, b0, b1, b2, sel, selt, g, be)

    x = x_ref[...]                                   # (N*H, W*Cin) f32 slab

    # conv1 = double_conv(inplanes, planes)
    h1 = conv(x, b1a0, b1a1, b1a2, g1a, be1a)
    h2 = conv(h1, b1b0, b1b1, b1b2, g1b, be1b)       # residual
    # conv2 = double_conv(planes, planes)  (stride=1, dilation=1)
    o1 = conv(h2, b2a0, b2a1, b2a2, g2a, be2a)
    o2 = conv(o1, b2b0, b2b1, b2b2, g2b, be2b)

    # Residual add + final ReLU, stored as one dense unmasked (N*H, W*P) slab.
    out_ref[...] = jnp.maximum(o2 + h2, 0.0)


def _band_weights(w_hwio, width):
    """(3,3,Cin,Cout) HWIO weights -> (3, W*Cin, W*Cout) band matrices.

    bands[di, wi*Cin + cin, wo*Cout + cout] = w[di, wi - wo + 1, cin, cout]
    for |wi - wo| <= 1; width zero-padding is realized by the missing entries.
    """
    w = np.asarray(w_hwio, np.float32)
    _, _, cin, cout = w.shape
    bands = np.zeros((3, width * cin, width * cout), np.float32)
    for di in range(3):
        for dj in range(3):
            for wo in range(width):
                wi = wo + dj - 1
                if 0 <= wi < width:
                    bands[di, wi * cin:(wi + 1) * cin,
                          wo * cout:(wo + 1) * cout] = w[di, dj]
    return bands


def _shift_matrices(n, h):
    """0/1 row-shift matrices over (n*h) slab rows; zero rows at batch edges."""
    nh = n * h
    sdn = np.zeros((nh, nh), np.float32)   # picks input row h-1
    sup = np.zeros((nh, nh), np.float32)   # picks input row h+1
    for r in range(nh):
        if r % h != 0:
            sdn[r, r - 1] = 1.0
        if r % h != h - 1:
            sup[r, r + 1] = 1.0
    return sdn, sup


def basic_block_forward(x_nhwc, params):
    """x_nhwc: (N, H, W, Cin) float. Returns (N, H, W, planes) f32."""
    N, H, W, Cin = x_nhwc.shape
    P = params["w1b"].shape[-1]
    NH = N * H

    # Lane-dense input slab: rows (n, h), lanes (w, cin).
    x2d = x_nhwc.reshape(NH, W * Cin).astype(jnp.float32)

    sdn_np, sup_np = _shift_matrices(N, H)
    sdn = jnp.asarray(sdn_np)
    sup = jnp.asarray(sup_np)

    # Channel selector (sum over w) and its transpose (broadcast over w).
    sel_np = np.tile(np.eye(P, dtype=np.float32), (W, 1))   # (W*P, P)
    sel = jnp.asarray(sel_np)
    selt = jnp.asarray(np.ascontiguousarray(sel_np.T))      # (P, W*P)

    args = [x2d, sdn, sup, sel, selt]
    for tag in ("1a", "1b", "2a", "2b"):
        bands = _band_weights(params["w" + tag], W)          # (3, W*Cin, W*P)
        for di in range(3):
            args.append(jnp.asarray(bands[di], dtype=jnp.bfloat16))
        args.append(params["g" + tag])
        args.append(params["be" + tag])

    def _full_spec(shape):
        zeros = (0,) * len(shape)
        return pl.BlockSpec(shape, lambda i, z=zeros: z)

    out2d = pl.pallas_call(
        basic_block_kernel,
        out_shape=jax.ShapeDtypeStruct((NH, W * P), jnp.float32),
        grid=(1,),
        in_specs=[_full_spec(a.shape) for a in args],
        out_specs=_full_spec((NH, W * P)),
        compiler_params=pltpu.CompilerParams(
            dimension_semantics=("arbitrary",)),
    )(*args)
    return out2d.reshape(N, H, W, P)


def basic_block_reference(x_nhwc, params):
    """Pure-JAX reference at matching bf16-input / f32-accumulate precision."""
    def conv_bn_relu(x, w, g, be):
        xb = x.astype(jnp.bfloat16).astype(jnp.float32)
        wb = w.astype(jnp.bfloat16).astype(jnp.float32)
        y = jax.lax.conv_general_dilated(
            xb, wb, window_strides=(1, 1), padding="SAME",
            dimension_numbers=("NHWC", "HWIO", "NHWC"),
            precision=jax.lax.Precision.HIGHEST)
        mean = jnp.mean(y, axis=(0, 1, 2), keepdims=True)
        var = jnp.maximum(
            jnp.mean(y * y, axis=(0, 1, 2), keepdims=True) - mean * mean, 0.0)
        scale = g.reshape(1, 1, 1, -1) * jax.lax.rsqrt(var + BN_EPS)
        shift = be.reshape(1, 1, 1, -1) - mean * scale
        return jnp.maximum(y * scale + shift, 0.0)

    h1 = conv_bn_relu(x_nhwc, params["w1a"], params["g1a"], params["be1a"])
    h2 = conv_bn_relu(h1, params["w1b"], params["g1b"], params["be1b"])
    o1 = conv_bn_relu(h2, params["w2a"], params["g2a"], params["be2a"])
    o2 = conv_bn_relu(o1, params["w2b"], params["g2b"], params["be2b"])
    return jnp.maximum(o2 + h2, 0.0)


def init_params(key, inplanes, planes):
    """Deterministic synthetic parameters matching BasicBlock.__init__ shapes.

    Conv biases are generated for shape fidelity with the PyTorch module but are
    not fed to the kernel: training-mode BN cancels them exactly.
    """
    ks = list(jax.random.split(key, 16))

    def conv(kw, kb, cin, cout):
        w = 0.1 * jax.random.normal(kw, (3, 3, cin, cout), jnp.float32)
        b = 0.1 * jax.random.normal(kb, (1, cout), jnp.float32)
        return w, b

    def bn(kg, kb, c):
        g = 1.0 + 0.1 * jax.random.normal(kg, (1, c), jnp.float32)
        beta = 0.1 * jax.random.normal(kb, (1, c), jnp.float32)
        return g, beta

    p = {}
    p["w1a"], p["b1a"] = conv(ks[0], ks[1], inplanes, planes)
    p["g1a"], p["be1a"] = bn(ks[2], ks[3], planes)
    p["w1b"], p["b1b"] = conv(ks[4], ks[5], planes, planes)
    p["g1b"], p["be1b"] = bn(ks[6], ks[7], planes)
    p["w2a"], p["b2a"] = conv(ks[8], ks[9], planes, planes)
    p["g2a"], p["be2a"] = bn(ks[10], ks[11], planes)
    p["w2b"], p["b2b"] = conv(ks[12], ks[13], planes, planes)
    p["g2b"], p["be2b"] = bn(ks[14], ks[15], planes)
    return p


if __name__ == "__main__":
    key = jax.random.PRNGKey(0)
    k_x, k_p = jax.random.split(key)

    N, C, H, W = 2, 4, 16, 16          # NCHW, as the PyTorch module would see it
    planes = 8
    x_nchw = jax.random.normal(k_x, (N, C, H, W), jnp.float32)
    x_nhwc = jnp.transpose(x_nchw, (0, 2, 3, 1))   # kernel layout: NHWC

    params = init_params(k_p, inplanes=C, planes=planes)

    out = basic_block_forward(x_nhwc, params)
    out = jax.block_until_ready(out)

    assert out.shape == (N, H, W, planes)
    assert bool(jnp.all(jnp.isfinite(out)))
    assert bool(jnp.all(out >= 0.0))               # final ReLU

    # Pure-JAX reference check at matching precision (bf16 inputs/weights,
    # f32 accumulation); structural errors would show up as O(1) diffs.
    ref = basic_block_reference(x_nhwc, params)
    max_err = float(jnp.max(jnp.abs(out - ref)))
    assert max_err < 2e-2, f"kernel/reference mismatch: max abs err {max_err}"

    print("KERNEL_OK")
</pallas_src>

<mosaic_0001>
module attributes {stable_mosaic.version = 11 : i64} {
  func.func @basic_block_kernel(%arg0: i32, %arg1: memref<32x64xf32, #tpu.memory_space<vmem>>, %arg2: memref<32x32xf32, #tpu.memory_space<vmem>>, %arg3: memref<32x32xf32, #tpu.memory_space<vmem>>, %arg4: memref<128x8xf32, #tpu.memory_space<vmem>>, %arg5: memref<8x128xf32, #tpu.memory_space<vmem>>, %arg6: memref<64x128xbf16, #tpu.memory_space<vmem>>, %arg7: memref<64x128xbf16, #tpu.memory_space<vmem>>, %arg8: memref<64x128xbf16, #tpu.memory_space<vmem>>, %arg9: memref<1x8xf32, #tpu.memory_space<vmem>>, %arg10: memref<1x8xf32, #tpu.memory_space<vmem>>, %arg11: memref<128x128xbf16, #tpu.memory_space<vmem>>, %arg12: memref<128x128xbf16, #tpu.memory_space<vmem>>, %arg13: memref<128x128xbf16, #tpu.memory_space<vmem>>, %arg14: memref<1x8xf32, #tpu.memory_space<vmem>>, %arg15: memref<1x8xf32, #tpu.memory_space<vmem>>, %arg16: memref<128x128xbf16, #tpu.memory_space<vmem>>, %arg17: memref<128x128xbf16, #tpu.memory_space<vmem>>, %arg18: memref<128x128xbf16, #tpu.memory_space<vmem>>, %arg19: memref<1x8xf32, #tpu.memory_space<vmem>>, %arg20: memref<1x8xf32, #tpu.memory_space<vmem>>, %arg21: memref<128x128xbf16, #tpu.memory_space<vmem>>, %arg22: memref<128x128xbf16, #tpu.memory_space<vmem>>, %arg23: memref<128x128xbf16, #tpu.memory_space<vmem>>, %arg24: memref<1x8xf32, #tpu.memory_space<vmem>>, %arg25: memref<1x8xf32, #tpu.memory_space<vmem>>, %arg26: memref<32x128xf32, #tpu.memory_space<vmem>>) attributes {dimension_semantics = [#tpu.dimension_semantics<arbitrary>], iteration_bounds = array<i64: 1>, scalar_prefetch = 0 : i64, scratch_operands = 0 : i64, tpu.core_type = #tpu.core_type<tc>, window_params = [{pipeline_mode = #tpu.pipeline_mode<synchronous>, transform_indices = @transform_0, window_bounds = array<i64: 32, 64>}, {pipeline_mode = #tpu.pipeline_mode<synchronous>, transform_indices = @transform_1, window_bounds = array<i64: 32, 32>}, {pipeline_mode = #tpu.pipeline_mode<synchronous>, transform_indices = @transform_2, window_bounds = array<i64: 32, 32>}, {pipeline_mode = #tpu.pipeline_mode<synchronous>, transform_indices = @transform_3, window_bounds = array<i64: 128, 8>}, {pipeline_mode = #tpu.pipeline_mode<synchronous>, transform_indices = @transform_4, window_bounds = array<i64: 8, 128>}, {pipeline_mode = #tpu.pipeline_mode<synchronous>, transform_indices = @transform_5, window_bounds = array<i64: 64, 128>}, {pipeline_mode = #tpu.pipeline_mode<synchronous>, transform_indices = @transform_6, window_bounds = array<i64: 64, 128>}, {pipeline_mode = #tpu.pipeline_mode<synchronous>, transform_indices = @transform_7, window_bounds = array<i64: 64, 128>}, {pipeline_mode = #tpu.pipeline_mode<synchronous>, transform_indices = @transform_8, window_bounds = array<i64: 1, 8>}, {pipeline_mode = #tpu.pipeline_mode<synchronous>, transform_indices = @transform_9, window_bounds = array<i64: 1, 8>}, {pipeline_mode = #tpu.pipeline_mode<synchronous>, transform_indices = @transform_10, window_bounds = array<i64: 128, 128>}, {pipeline_mode = #tpu.pipeline_mode<synchronous>, transform_indices = @transform_11, window_bounds = array<i64: 128, 128>}, {pipeline_mode = #tpu.pipeline_mode<synchronous>, transform_indices = @transform_12, window_bounds = array<i64: 128, 128>}, {pipeline_mode = #tpu.pipeline_mode<synchronous>, transform_indices = @transform_13, window_bounds = array<i64: 1, 8>}, {pipeline_mode = #tpu.pipeline_mode<synchronous>, transform_indices = @transform_14, window_bounds = array<i64: 1, 8>}, {pipeline_mode = #tpu.pipeline_mode<synchronous>, transform_indices = @transform_15, window_bounds = array<i64: 128, 128>}, {pipeline_mode = #tpu.pipeline_mode<synchronous>, transform_indices = @transform_16, window_bounds = array<i64: 128, 128>}, {pipeline_mode = #tpu.pipeline_mode<synchronous>, transform_indices = @transform_17, window_bounds = array<i64: 128, 128>}, {pipeline_mode = #tpu.pipeline_mode<synchronous>, transform_indices = @transform_18, window_bounds = array<i64: 1, 8>}, {pipeline_mode = #tpu.pipeline_mode<synchronous>, transform_indices = @transform_19, window_bounds = array<i64: 1, 8>}, {pipeline_mode = #tpu.pipeline_mode<synchronous>, transform_indices = @transform_20, window_bounds = array<i64: 128, 128>}, {pipeline_mode = #tpu.pipeline_mode<synchronous>, transform_indices = @transform_21, window_bounds = array<i64: 128, 128>}, {pipeline_mode = #tpu.pipeline_mode<synchronous>, transform_indices = @transform_22, window_bounds = array<i64: 128, 128>}, {pipeline_mode = #tpu.pipeline_mode<synchronous>, transform_indices = @transform_23, window_bounds = array<i64: 1, 8>}, {pipeline_mode = #tpu.pipeline_mode<synchronous>, transform_indices = @transform_24, window_bounds = array<i64: 1, 8>}, {pipeline_mode = #tpu.pipeline_mode<synchronous>, transform_indices = @transform_25, window_bounds = array<i64: 32, 128>}]} {
    %c0 = arith.constant 0 : index
    %c0_0 = arith.constant 0 : index
    %0 = vector.load %arg2[%c0, %c0_0] : memref<32x32xf32, #tpu.memory_space<vmem>>, vector<32x32xf32>
    %c0_1 = arith.constant 0 : index
    %c0_2 = arith.constant 0 : index
    %1 = vector.load %arg3[%c0_1, %c0_2] : memref<32x32xf32, #tpu.memory_space<vmem>>, vector<32x32xf32>
    %c0_3 = arith.constant 0 : index
    %c0_4 = arith.constant 0 : index
    %2 = vector.load %arg4[%c0_3, %c0_4] : memref<128x8xf32, #tpu.memory_space<vmem>>, vector<128x8xf32>
    %c0_5 = arith.constant 0 : index
    %c0_6 = arith.constant 0 : index
    %3 = vector.load %arg5[%c0_5, %c0_6] : memref<8x128xf32, #tpu.memory_space<vmem>>, vector<8x128xf32>
    %c0_7 = arith.constant 0 : index
    %c0_8 = arith.constant 0 : index
    %4 = vector.load %arg1[%c0_7, %c0_8] : memref<32x64xf32, #tpu.memory_space<vmem>>, vector<32x64xf32>
    %cst = arith.constant dense<0.000000e+00> : vector<32x64xf32>
    %5 = tpu.matmul %0, %4, %cst {dimension_numbers = #tpu.dot_dimension_numbers<[1], [0], [0], [1], [0, 0, 1, 1], [], []>} : vector<32x32xf32>, vector<32x64xf32>, vector<32x64xf32> -> vector<32x64xf32>
    %cst_9 = arith.constant dense<0.000000e+00> : vector<32x64xf32>
    %6 = tpu.matmul %1, %4, %cst_9 {dimension_numbers = #tpu.dot_dimension_numbers<[1], [0], [0], [1], [0, 0, 1, 1], [], []>} : vector<32x32xf32>, vector<32x64xf32>, vector<32x64xf32> -> vector<32x64xf32>
    %7 = arith.truncf %5 : vector<32x64xf32> to vector<32x64xbf16>
    %c0_10 = arith.constant 0 : index
    %c0_11 = arith.constant 0 : index
    %8 = vector.load %arg6[%c0_10, %c0_11] : memref<64x128xbf16, #tpu.memory_space<vmem>>, vector<64x128xbf16>
    %cst_12 = arith.constant dense<0.000000e+00> : vector<32x128xf32>
    %9 = tpu.matmul %7, %8, %cst_12 {dimension_numbers = #tpu.dot_dimension_numbers<[1], [0], [0], [1], [0, 0, 1, 1], [], []>} : vector<32x64xbf16>, vector<64x128xbf16>, vector<32x128xf32> -> vector<32x128xf32>
    %10 = arith.truncf %4 : vector<32x64xf32> to vector<32x64xbf16>
    %c0_13 = arith.constant 0 : index
    %c0_14 = arith.constant 0 : index
    %11 = vector.load %arg7[%c0_13, %c0_14] : memref<64x128xbf16, #tpu.memory_space<vmem>>, vector<64x128xbf16>
    %cst_15 = arith.constant dense<0.000000e+00> : vector<32x128xf32>
    %12 = tpu.matmul %10, %11, %cst_15 {dimension_numbers = #tpu.dot_dimension_numbers<[1], [0], [0], [1], [0, 0, 1, 1], [], []>} : vector<32x64xbf16>, vector<64x128xbf16>, vector<32x128xf32> -> vector<32x128xf32>
    %13 = arith.addf %9, %12 : vector<32x128xf32>
    %14 = arith.truncf %6 : vector<32x64xf32> to vector<32x64xbf16>
    %c0_16 = arith.constant 0 : index
    %c0_17 = arith.constant 0 : index
    %15 = vector.load %arg8[%c0_16, %c0_17] : memref<64x128xbf16, #tpu.memory_space<vmem>>, vector<64x128xbf16>
    %cst_18 = arith.constant dense<0.000000e+00> : vector<32x128xf32>
    %16 = tpu.matmul %14, %15, %cst_18 {dimension_numbers = #tpu.dot_dimension_numbers<[1], [0], [0], [1], [0, 0, 1, 1], [], []>} : vector<32x64xbf16>, vector<64x128xbf16>, vector<32x128xf32> -> vector<32x128xf32>
    %17 = arith.addf %13, %16 : vector<32x128xf32>
    %cst_19 = arith.constant dense<0.000000e+00> : vector<32x8xf32>
    %18 = tpu.matmul %17, %2, %cst_19 {dimension_numbers = #tpu.dot_dimension_numbers<[1], [0], [0], [1], [0, 0, 1, 1], [], []>} : vector<32x128xf32>, vector<128x8xf32>, vector<32x8xf32> -> vector<32x8xf32>
    %19 = arith.mulf %17, %17 : vector<32x128xf32>
    %cst_20 = arith.constant dense<0.000000e+00> : vector<32x8xf32>
    %20 = tpu.matmul %19, %2, %cst_20 {dimension_numbers = #tpu.dot_dimension_numbers<[1], [0], [0], [1], [0, 0, 1, 1], [], []>} : vector<32x128xf32>, vector<128x8xf32>, vector<32x8xf32> -> vector<32x8xf32>
    %cst_21 = arith.constant dense<0.000000e+00> : vector<8xf32>
    %21 = vector.multi_reduction <add>, %18, %cst_21 [0] : vector<32x8xf32> to vector<8xf32>
    %22 = vector.shape_cast %21 : vector<8xf32> to vector<1x8xf32>
    %cst_22 = arith.constant dense<0.000000e+00> : vector<8xf32>
    %23 = vector.multi_reduction <add>, %20, %cst_22 [0] : vector<32x8xf32> to vector<8xf32>
    %24 = vector.shape_cast %23 : vector<8xf32> to vector<1x8xf32>
    %cst_23 = arith.constant 0.001953125 : f32
    %25 = vector.broadcast %cst_23 : f32 to vector<1x8xf32>
    %26 = arith.mulf %22, %25 : vector<1x8xf32>
    %cst_24 = arith.constant 0.001953125 : f32
    %27 = vector.broadcast %cst_24 : f32 to vector<1x8xf32>
    %28 = arith.mulf %24, %27 : vector<1x8xf32>
    %29 = arith.mulf %26, %26 : vector<1x8xf32>
    %30 = arith.subf %28, %29 : vector<1x8xf32>
    %cst_25 = arith.constant 0.000000e+00 : f32
    %31 = vector.broadcast %cst_25 : f32 to vector<1x8xf32>
    %32 = arith.maximumf %30, %31 : vector<1x8xf32>
    %c0_26 = arith.constant 0 : index
    %c0_27 = arith.constant 0 : index
    %33 = vector.load %arg9[%c0_26, %c0_27] : memref<1x8xf32, #tpu.memory_space<vmem>>, vector<1x8xf32>
    %cst_28 = arith.constant 9.99999974E-6 : f32
    %34 = vector.broadcast %cst_28 : f32 to vector<1x8xf32>
    %35 = arith.addf %32, %34 : vector<1x8xf32>
    %36 = math.rsqrt %35 : vector<1x8xf32>
    %37 = arith.mulf %33, %36 : vector<1x8xf32>
    %c0_29 = arith.constant 0 : index
    %c0_30 = arith.constant 0 : index
    %38 = vector.load %arg10[%c0_29, %c0_30] : memref<1x8xf32, #tpu.memory_space<vmem>>, vector<1x8xf32>
    %39 = arith.mulf %26, %37 : vector<1x8xf32>
    %40 = arith.subf %38, %39 : vector<1x8xf32>
    %cst_31 = arith.constant dense<0.000000e+00> : vector<1x128xf32>
    %41 = tpu.matmul %37, %3, %cst_31 {dimension_numbers = #tpu.dot_dimension_numbers<[1], [0], [0], [1], [0, 0, 1, 1], [], []>} : vector<1x8xf32>, vector<8x128xf32>, vector<1x128xf32> -> vector<1x128xf32>
    %cst_32 = arith.constant dense<0.000000e+00> : vector<1x128xf32>
    %42 = tpu.matmul %40, %3, %cst_32 {dimension_numbers = #tpu.dot_dimension_numbers<[1], [0], [0], [1], [0, 0, 1, 1], [], []>} : vector<1x8xf32>, vector<8x128xf32>, vector<1x128xf32> -> vector<1x128xf32>
    %43 = vector.broadcast %41 : vector<1x128xf32> to vector<32x128xf32>
    %44 = arith.mulf %17, %43 : vector<32x128xf32>
    %45 = vector.broadcast %42 : vector<1x128xf32> to vector<32x128xf32>
    %46 = arith.addf %44, %45 : vector<32x128xf32>
    %cst_33 = arith.constant 0.000000e+00 : f32
    %47 = vector.broadcast %cst_33 : f32 to vector<32x128xf32>
    %48 = arith.maximumf %46, %47 : vector<32x128xf32>
    %cst_34 = arith.constant dense<0.000000e+00> : vector<32x128xf32>
    %49 = tpu.matmul %0, %48, %cst_34 {dimension_numbers = #tpu.dot_dimension_numbers<[1], [0], [0], [1], [0, 0, 1, 1], [], []>} : vector<32x32xf32>, vector<32x128xf32>, vector<32x128xf32> -> vector<32x128xf32>
    %cst_35 = arith.constant dense<0.000000e+00> : vector<32x128xf32>
    %50 = tpu.matmul %1, %48, %cst_35 {dimension_numbers = #tpu.dot_dimension_numbers<[1], [0], [0], [1], [0, 0, 1, 1], [], []>} : vector<32x32xf32>, vector<32x128xf32>, vector<32x128xf32> -> vector<32x128xf32>
    %51 = arith.truncf %49 : vector<32x128xf32> to vector<32x128xbf16>
    %c0_36 = arith.constant 0 : index
    %c0_37 = arith.constant 0 : index
    %52 = vector.load %arg11[%c0_36, %c0_37] : memref<128x128xbf16, #tpu.memory_space<vmem>>, vector<128x128xbf16>
    %cst_38 = arith.constant dense<0.000000e+00> : vector<32x128xf32>
    %53 = tpu.matmul %51, %52, %cst_38 {dimension_numbers = #tpu.dot_dimension_numbers<[1], [0], [0], [1], [0, 0, 1, 1], [], []>} : vector<32x128xbf16>, vector<128x128xbf16>, vector<32x128xf32> -> vector<32x128xf32>
    %54 = arith.truncf %48 : vector<32x128xf32> to vector<32x128xbf16>
    %c0_39 = arith.constant 0 : index
    %c0_40 = arith.constant 0 : index
    %55 = vector.load %arg12[%c0_39, %c0_40] : memref<128x128xbf16, #tpu.memory_space<vmem>>, vector<128x128xbf16>
    %cst_41 = arith.constant dense<0.000000e+00> : vector<32x128xf32>
    %56 = tpu.matmul %54, %55, %cst_41 {dimension_numbers = #tpu.dot_dimension_numbers<[1], [0], [0], [1], [0, 0, 1, 1], [], []>} : vector<32x128xbf16>, vector<128x128xbf16>, vector<32x128xf32> -> vector<32x128xf32>
    %57 = arith.addf %53, %56 : vector<32x128xf32>
    %58 = arith.truncf %50 : vector<32x128xf32> to vector<32x128xbf16>
    %c0_42 = arith.constant 0 : index
    %c0_43 = arith.constant 0 : index
    %59 = vector.load %arg13[%c0_42, %c0_43] : memref<128x128xbf16, #tpu.memory_space<vmem>>, vector<128x128xbf16>
    %cst_44 = arith.constant dense<0.000000e+00> : vector<32x128xf32>
    %60 = tpu.matmul %58, %59, %cst_44 {dimension_numbers = #tpu.dot_dimension_numbers<[1], [0], [0], [1], [0, 0, 1, 1], [], []>} : vector<32x128xbf16>, vector<128x128xbf16>, vector<32x128xf32> -> vector<32x128xf32>
    %61 = arith.addf %57, %60 : vector<32x128xf32>
    %cst_45 = arith.constant dense<0.000000e+00> : vector<32x8xf32>
    %62 = tpu.matmul %61, %2, %cst_45 {dimension_numbers = #tpu.dot_dimension_numbers<[1], [0], [0], [1], [0, 0, 1, 1], [], []>} : vector<32x128xf32>, vector<128x8xf32>, vector<32x8xf32> -> vector<32x8xf32>
    %63 = arith.mulf %61, %61 : vector<32x128xf32>
    %cst_46 = arith.constant dense<0.000000e+00> : vector<32x8xf32>
    %64 = tpu.matmul %63, %2, %cst_46 {dimension_numbers = #tpu.dot_dimension_numbers<[1], [0], [0], [1], [0, 0, 1, 1], [], []>} : vector<32x128xf32>, vector<128x8xf32>, vector<32x8xf32> -> vector<32x8xf32>
    %cst_47 = arith.constant dense<0.000000e+00> : vector<8xf32>
    %65 = vector.multi_reduction <add>, %62, %cst_47 [0] : vector<32x8xf32> to vector<8xf32>
    %66 = vector.shape_cast %65 : vector<8xf32> to vector<1x8xf32>
    %cst_48 = arith.constant dense<0.000000e+00> : vector<8xf32>
    %67 = vector.multi_reduction <add>, %64, %cst_48 [0] : vector<32x8xf32> to vector<8xf32>
    %68 = vector.shape_cast %67 : vector<8xf32> to vector<1x8xf32>
    %cst_49 = arith.constant 0.001953125 : f32
    %69 = vector.broadcast %cst_49 : f32 to vector<1x8xf32>
    %70 = arith.mulf %66, %69 : vector<1x8xf32>
    %cst_50 = arith.constant 0.001953125 : f32
    %71 = vector.broadcast %cst_50 : f32 to vector<1x8xf32>
    %72 = arith.mulf %68, %71 : vector<1x8xf32>
    %73 = arith.mulf %70, %70 : vector<1x8xf32>
    %74 = arith.subf %72, %73 : vector<1x8xf32>
    %cst_51 = arith.constant 0.000000e+00 : f32
    %75 = vector.broadcast %cst_51 : f32 to vector<1x8xf32>
    %76 = arith.maximumf %74, %75 : vector<1x8xf32>
    %c0_52 = arith.constant 0 : index
    %c0_53 = arith.constant 0 : index
    %77 = vector.load %arg14[%c0_52, %c0_53] : memref<1x8xf32, #tpu.memory_space<vmem>>, vector<1x8xf32>
    %cst_54 = arith.constant 9.99999974E-6 : f32
    %78 = vector.broadcast %cst_54 : f32 to vector<1x8xf32>
    %79 = arith.addf %76, %78 : vector<1x8xf32>
    %80 = math.rsqrt %79 : vector<1x8xf32>
    %81 = arith.mulf %77, %80 : vector<1x8xf32>
    %c0_55 = arith.constant 0 : index
    %c0_56 = arith.constant 0 : index
    %82 = vector.load %arg15[%c0_55, %c0_56] : memref<1x8xf32, #tpu.memory_space<vmem>>, vector<1x8xf32>
    %83 = arith.mulf %70, %81 : vector<1x8xf32>
    %84 = arith.subf %82, %83 : vector<1x8xf32>
    %cst_57 = arith.constant dense<0.000000e+00> : vector<1x128xf32>
    %85 = tpu.matmul %81, %3, %cst_57 {dimension_numbers = #tpu.dot_dimension_numbers<[1], [0], [0], [1], [0, 0, 1, 1], [], []>} : vector<1x8xf32>, vector<8x128xf32>, vector<1x128xf32> -> vector<1x128xf32>
    %cst_58 = arith.constant dense<0.000000e+00> : vector<1x128xf32>
    %86 = tpu.matmul %84, %3, %cst_58 {dimension_numbers = #tpu.dot_dimension_numbers<[1], [0], [0], [1], [0, 0, 1, 1], [], []>} : vector<1x8xf32>, vector<8x128xf32>, vector<1x128xf32> -> vector<1x128xf32>
    %87 = vector.broadcast %85 : vector<1x128xf32> to vector<32x128xf32>
    %88 = arith.mulf %61, %87 : vector<32x128xf32>
    %89 = vector.broadcast %86 : vector<1x128xf32> to vector<32x128xf32>
    %90 = arith.addf %88, %89 : vector<32x128xf32>
    %cst_59 = arith.constant 0.000000e+00 : f32
    %91 = vector.broadcast %cst_59 : f32 to vector<32x128xf32>
    %92 = arith.maximumf %90, %91 : vector<32x128xf32>
    %cst_60 = arith.constant dense<0.000000e+00> : vector<32x128xf32>
    %93 = tpu.matmul %0, %92, %cst_60 {dimension_numbers = #tpu.dot_dimension_numbers<[1], [0], [0], [1], [0, 0, 1, 1], [], []>} : vector<32x32xf32>, vector<32x128xf32>, vector<32x128xf32> -> vector<32x128xf32>
    %cst_61 = arith.constant dense<0.000000e+00> : vector<32x128xf32>
    %94 = tpu.matmul %1, %92, %cst_61 {dimension_numbers = #tpu.dot_dimension_numbers<[1], [0], [0], [1], [0, 0, 1, 1], [], []>} : vector<32x32xf32>, vector<32x128xf32>, vector<32x128xf32> -> vector<32x128xf32>
    %95 = arith.truncf %93 : vector<32x128xf32> to vector<32x128xbf16>
    %c0_62 = arith.constant 0 : index
    %c0_63 = arith.constant 0 : index
    %96 = vector.load %arg16[%c0_62, %c0_63] : memref<128x128xbf16, #tpu.memory_space<vmem>>, vector<128x128xbf16>
    %cst_64 = arith.constant dense<0.000000e+00> : vector<32x128xf32>
    %97 = tpu.matmul %95, %96, %cst_64 {dimension_numbers = #tpu.dot_dimension_numbers<[1], [0], [0], [1], [0, 0, 1, 1], [], []>} : vector<32x128xbf16>, vector<128x128xbf16>, vector<32x128xf32> -> vector<32x128xf32>
    %98 = arith.truncf %92 : vector<32x128xf32> to vector<32x128xbf16>
    %c0_65 = arith.constant 0 : index
    %c0_66 = arith.constant 0 : index
    %99 = vector.load %arg17[%c0_65, %c0_66] : memref<128x128xbf16, #tpu.memory_space<vmem>>, vector<128x128xbf16>
    %cst_67 = arith.constant dense<0.000000e+00> : vector<32x128xf32>
    %100 = tpu.matmul %98, %99, %cst_67 {dimension_numbers = #tpu.dot_dimension_numbers<[1], [0], [0], [1], [0, 0, 1, 1], [], []>} : vector<32x128xbf16>, vector<128x128xbf16>, vector<32x128xf32> -> vector<32x128xf32>
    %101 = arith.addf %97, %100 : vector<32x128xf32>
    %102 = arith.truncf %94 : vector<32x128xf32> to vector<32x128xbf16>
    %c0_68 = arith.constant 0 : index
    %c0_69 = arith.constant 0 : index
    %103 = vector.load %arg18[%c0_68, %c0_69] : memref<128x128xbf16, #tpu.memory_space<vmem>>, vector<128x128xbf16>
    %cst_70 = arith.constant dense<0.000000e+00> : vector<32x128xf32>
    %104 = tpu.matmul %102, %103, %cst_70 {dimension_numbers = #tpu.dot_dimension_numbers<[1], [0], [0], [1], [0, 0, 1, 1], [], []>} : vector<32x128xbf16>, vector<128x128xbf16>, vector<32x128xf32> -> vector<32x128xf32>
    %105 = arith.addf %101, %104 : vector<32x128xf32>
    %cst_71 = arith.constant dense<0.000000e+00> : vector<32x8xf32>
    %106 = tpu.matmul %105, %2, %cst_71 {dimension_numbers = #tpu.dot_dimension_numbers<[1], [0], [0], [1], [0, 0, 1, 1], [], []>} : vector<32x128xf32>, vector<128x8xf32>, vector<32x8xf32> -> vector<32x8xf32>
    %107 = arith.mulf %105, %105 : vector<32x128xf32>
    %cst_72 = arith.constant dense<0.000000e+00> : vector<32x8xf32>
    %108 = tpu.matmul %107, %2, %cst_72 {dimension_numbers = #tpu.dot_dimension_numbers<[1], [0], [0], [1], [0, 0, 1, 1], [], []>} : vector<32x128xf32>, vector<128x8xf32>, vector<32x8xf32> -> vector<32x8xf32>
    %cst_73 = arith.constant dense<0.000000e+00> : vector<8xf32>
    %109 = vector.multi_reduction <add>, %106, %cst_73 [0] : vector<32x8xf32> to vector<8xf32>
    %110 = vector.shape_cast %109 : vector<8xf32> to vector<1x8xf32>
    %cst_74 = arith.constant dense<0.000000e+00> : vector<8xf32>
    %111 = vector.multi_reduction <add>, %108, %cst_74 [0] : vector<32x8xf32> to vector<8xf32>
    %112 = vector.shape_cast %111 : vector<8xf32> to vector<1x8xf32>
    %cst_75 = arith.constant 0.001953125 : f32
    %113 = vector.broadcast %cst_75 : f32 to vector<1x8xf32>
    %114 = arith.mulf %110, %113 : vector<1x8xf32>
    %cst_76 = arith.constant 0.001953125 : f32
    %115 = vector.broadcast %cst_76 : f32 to vector<1x8xf32>
    %116 = arith.mulf %112, %115 : vector<1x8xf32>
    %117 = arith.mulf %114, %114 : vector<1x8xf32>
    %118 = arith.subf %116, %117 : vector<1x8xf32>
    %cst_77 = arith.constant 0.000000e+00 : f32
    %119 = vector.broadcast %cst_77 : f32 to vector<1x8xf32>
    %120 = arith.maximumf %118, %119 : vector<1x8xf32>
    %c0_78 = arith.constant 0 : index
    %c0_79 = arith.constant 0 : index
    %121 = vector.load %arg19[%c0_78, %c0_79] : memref<1x8xf32, #tpu.memory_space<vmem>>, vector<1x8xf32>
    %cst_80 = arith.constant 9.99999974E-6 : f32
    %122 = vector.broadcast %cst_80 : f32 to vector<1x8xf32>
    %123 = arith.addf %120, %122 : vector<1x8xf32>
    %124 = math.rsqrt %123 : vector<1x8xf32>
    %125 = arith.mulf %121, %124 : vector<1x8xf32>
    %c0_81 = arith.constant 0 : index
    %c0_82 = arith.constant 0 : index
    %126 = vector.load %arg20[%c0_81, %c0_82] : memref<1x8xf32, #tpu.memory_space<vmem>>, vector<1x8xf32>
    %127 = arith.mulf %114, %125 : vector<1x8xf32>
    %128 = arith.subf %126, %127 : vector<1x8xf32>
    %cst_83 = arith.constant dense<0.000000e+00> : vector<1x128xf32>
    %129 = tpu.matmul %125, %3, %cst_83 {dimension_numbers = #tpu.dot_dimension_numbers<[1], [0], [0], [1], [0, 0, 1, 1], [], []>} : vector<1x8xf32>, vector<8x128xf32>, vector<1x128xf32> -> vector<1x128xf32>
    %cst_84 = arith.constant dense<0.000000e+00> : vector<1x128xf32>
    %130 = tpu.matmul %128, %3, %cst_84 {dimension_numbers = #tpu.dot_dimension_numbers<[1], [0], [0], [1], [0, 0, 1, 1], [], []>} : vector<1x8xf32>, vector<8x128xf32>, vector<1x128xf32> -> vector<1x128xf32>
    %131 = vector.broadcast %129 : vector<1x128xf32> to vector<32x128xf32>
    %132 = arith.mulf %105, %131 : vector<32x128xf32>
    %133 = vector.broadcast %130 : vector<1x128xf32> to vector<32x128xf32>
    %134 = arith.addf %132, %133 : vector<32x128xf32>
    %cst_85 = arith.constant 0.000000e+00 : f32
    %135 = vector.broadcast %cst_85 : f32 to vector<32x128xf32>
    %136 = arith.maximumf %134, %135 : vector<32x128xf32>
    %cst_86 = arith.constant dense<0.000000e+00> : vector<32x128xf32>
    %137 = tpu.matmul %0, %136, %cst_86 {dimension_numbers = #tpu.dot_dimension_numbers<[1], [0], [0], [1], [0, 0, 1, 1], [], []>} : vector<32x32xf32>, vector<32x128xf32>, vector<32x128xf32> -> vector<32x128xf32>
    %cst_87 = arith.constant dense<0.000000e+00> : vector<32x128xf32>
    %138 = tpu.matmul %1, %136, %cst_87 {dimension_numbers = #tpu.dot_dimension_numbers<[1], [0], [0], [1], [0, 0, 1, 1], [], []>} : vector<32x32xf32>, vector<32x128xf32>, vector<32x128xf32> -> vector<32x128xf32>
    %139 = arith.truncf %137 : vector<32x128xf32> to vector<32x128xbf16>
    %c0_88 = arith.constant 0 : index
    %c0_89 = arith.constant 0 : index
    %140 = vector.load %arg21[%c0_88, %c0_89] : memref<128x128xbf16, #tpu.memory_space<vmem>>, vector<128x128xbf16>
    %cst_90 = arith.constant dense<0.000000e+00> : vector<32x128xf32>
    %141 = tpu.matmul %139, %140, %cst_90 {dimension_numbers = #tpu.dot_dimension_numbers<[1], [0], [0], [1], [0, 0, 1, 1], [], []>} : vector<32x128xbf16>, vector<128x128xbf16>, vector<32x128xf32> -> vector<32x128xf32>
    %142 = arith.truncf %136 : vector<32x128xf32> to vector<32x128xbf16>
    %c0_91 = arith.constant 0 : index
    %c0_92 = arith.constant 0 : index
    %143 = vector.load %arg22[%c0_91, %c0_92] : memref<128x128xbf16, #tpu.memory_space<vmem>>, vector<128x128xbf16>
    %cst_93 = arith.constant dense<0.000000e+00> : vector<32x128xf32>
    %144 = tpu.matmul %142, %143, %cst_93 {dimension_numbers = #tpu.dot_dimension_numbers<[1], [0], [0], [1], [0, 0, 1, 1], [], []>} : vector<32x128xbf16>, vector<128x128xbf16>, vector<32x128xf32> -> vector<32x128xf32>
    %145 = arith.addf %141, %144 : vector<32x128xf32>
    %146 = arith.truncf %138 : vector<32x128xf32> to vector<32x128xbf16>
    %c0_94 = arith.constant 0 : index
    %c0_95 = arith.constant 0 : index
    %147 = vector.load %arg23[%c0_94, %c0_95] : memref<128x128xbf16, #tpu.memory_space<vmem>>, vector<128x128xbf16>
    %cst_96 = arith.constant dense<0.000000e+00> : vector<32x128xf32>
    %148 = tpu.matmul %146, %147, %cst_96 {dimension_numbers = #tpu.dot_dimension_numbers<[1], [0], [0], [1], [0, 0, 1, 1], [], []>} : vector<32x128xbf16>, vector<128x128xbf16>, vector<32x128xf32> -> vector<32x128xf32>
    %149 = arith.addf %145, %148 : vector<32x128xf32>
    %cst_97 = arith.constant dense<0.000000e+00> : vector<32x8xf32>
    %150 = tpu.matmul %149, %2, %cst_97 {dimension_numbers = #tpu.dot_dimension_numbers<[1], [0], [0], [1], [0, 0, 1, 1], [], []>} : vector<32x128xf32>, vector<128x8xf32>, vector<32x8xf32> -> vector<32x8xf32>
    %151 = arith.mulf %149, %149 : vector<32x128xf32>
    %cst_98 = arith.constant dense<0.000000e+00> : vector<32x8xf32>
    %152 = tpu.matmul %151, %2, %cst_98 {dimension_numbers = #tpu.dot_dimension_numbers<[1], [0], [0], [1], [0, 0, 1, 1], [], []>} : vector<32x128xf32>, vector<128x8xf32>, vector<32x8xf32> -> vector<32x8xf32>
    %cst_99 = arith.constant dense<0.000000e+00> : vector<8xf32>
    %153 = vector.multi_reduction <add>, %150, %cst_99 [0] : vector<32x8xf32> to vector<8xf32>
    %154 = vector.shape_cast %153 : vector<8xf32> to vector<1x8xf32>
    %cst_100 = arith.constant dense<0.000000e+00> : vector<8xf32>
    %155 = vector.multi_reduction <add>, %152, %cst_100 [0] : vector<32x8xf32> to vector<8xf32>
    %156 = vector.shape_cast %155 : vector<8xf32> to vector<1x8xf32>
    %cst_101 = arith.constant 0.001953125 : f32
    %157 = vector.broadcast %cst_101 : f32 to vector<1x8xf32>
    %158 = arith.mulf %154, %157 : vector<1x8xf32>
    %cst_102 = arith.constant 0.001953125 : f32
    %159 = vector.broadcast %cst_102 : f32 to vector<1x8xf32>
    %160 = arith.mulf %156, %159 : vector<1x8xf32>
    %161 = arith.mulf %158, %158 : vector<1x8xf32>
    %162 = arith.subf %160, %161 : vector<1x8xf32>
    %cst_103 = arith.constant 0.000000e+00 : f32
    %163 = vector.broadcast %cst_103 : f32 to vector<1x8xf32>
    %164 = arith.maximumf %162, %163 : vector<1x8xf32>
    %c0_104 = arith.constant 0 : index
    %c0_105 = arith.constant 0 : index
    %165 = vector.load %arg24[%c0_104, %c0_105] : memref<1x8xf32, #tpu.memory_space<vmem>>, vector<1x8xf32>
    %cst_106 = arith.constant 9.99999974E-6 : f32
    %166 = vector.broadcast %cst_106 : f32 to vector<1x8xf32>
    %167 = arith.addf %164, %166 : vector<1x8xf32>
    %168 = math.rsqrt %167 : vector<1x8xf32>
    %169 = arith.mulf %165, %168 : vector<1x8xf32>
    %c0_107 = arith.constant 0 : index
    %c0_108 = arith.constant 0 : index
    %170 = vector.load %arg25[%c0_107, %c0_108] : memref<1x8xf32, #tpu.memory_space<vmem>>, vector<1x8xf32>
    %171 = arith.mulf %158, %169 : vector<1x8xf32>
    %172 = arith.subf %170, %171 : vector<1x8xf32>
    %cst_109 = arith.constant dense<0.000000e+00> : vector<1x128xf32>
    %173 = tpu.matmul %169, %3, %cst_109 {dimension_numbers = #tpu.dot_dimension_numbers<[1], [0], [0], [1], [0, 0, 1, 1], [], []>} : vector<1x8xf32>, vector<8x128xf32>, vector<1x128xf32> -> vector<1x128xf32>
    %cst_110 = arith.constant dense<0.000000e+00> : vector<1x128xf32>
    %174 = tpu.matmul %172, %3, %cst_110 {dimension_numbers = #tpu.dot_dimension_numbers<[1], [0], [0], [1], [0, 0, 1, 1], [], []>} : vector<1x8xf32>, vector<8x128xf32>, vector<1x128xf32> -> vector<1x128xf32>
    %175 = vector.broadcast %173 : vector<1x128xf32> to vector<32x128xf32>
    %176 = arith.mulf %149, %175 : vector<32x128xf32>
    %177 = vector.broadcast %174 : vector<1x128xf32> to vector<32x128xf32>
    %178 = arith.addf %176, %177 : vector<32x128xf32>
    %cst_111 = arith.constant 0.000000e+00 : f32
    %179 = vector.broadcast %cst_111 : f32 to vector<32x128xf32>
    %180 = arith.maximumf %178, %179 : vector<32x128xf32>
    %181 = arith.addf %180, %92 : vector<32x128xf32>
    %cst_112 = arith.constant 0.000000e+00 : f32
    %182 = vector.broadcast %cst_112 : f32 to vector<32x128xf32>
    %183 = arith.maximumf %181, %182 : vector<32x128xf32>
    %c0_113 = arith.constant 0 : index
    %c0_114 = arith.constant 0 : index
    %184 = vector.load %arg26[%c0_113, %c0_114] : memref<32x128xf32, #tpu.memory_space<vmem>>, vector<32x128xf32>
    tpu.vector_store %arg26[%c0_113, %c0_114], %183 {strides = array<i32>} : memref<32x128xf32, #tpu.memory_space<vmem>>, vector<32x128xf32>,
    return
  }
  func.func @transform_0(%arg0: i32) -> (i32, i32) {
    %c0_i32 = arith.constant 0 : i32
    %c0_i32_0 = arith.constant 0 : i32
    %c0_i32_1 = arith.constant 0 : i32
    return %c0_i32, %c0_i32_0 : i32, i32
  }
  func.func @transform_1(%arg0: i32) -> (i32, i32) {
    %c0_i32 = arith.constant 0 : i32
    %c0_i32_0 = arith.constant 0 : i32
    %c0_i32_1 = arith.constant 0 : i32
    return %c0_i32, %c0_i32_0 : i32, i32
  }
  func.func @transform_2(%arg0: i32) -> (i32, i32) {
    %c0_i32 = arith.constant 0 : i32
    %c0_i32_0 = arith.constant 0 : i32
    %c0_i32_1 = arith.constant 0 : i32
    return %c0_i32, %c0_i32_0 : i32, i32
  }
  func.func @transform_3(%arg0: i32) -> (i32, i32) {
    %c0_i32 = arith.constant 0 : i32
    %c0_i32_0 = arith.constant 0 : i32
    %c0_i32_1 = arith.constant 0 : i32
    return %c0_i32, %c0_i32_0 : i32, i32
  }
  func.func @transform_4(%arg0: i32) -> (i32, i32) {
    %c0_i32 = arith.constant 0 : i32
    %c0_i32_0 = arith.constant 0 : i32
    %c0_i32_1 = arith.constant 0 : i32
    return %c0_i32, %c0_i32_0 : i32, i32
  }
  func.func @transform_5(%arg0: i32) -> (i32, i32) {
    %c0_i32 = arith.constant 0 : i32
    %c0_i32_0 = arith.constant 0 : i32
    %c0_i32_1 = arith.constant 0 : i32
    return %c0_i32, %c0_i32_0 : i32, i32
  }
  func.func @transform_6(%arg0: i32) -> (i32, i32) {
    %c0_i32 = arith.constant 0 : i32
    %c0_i32_0 = arith.constant 0 : i32
    %c0_i32_1 = arith.constant 0 : i32
    return %c0_i32, %c0_i32_0 : i32, i32
  }
  func.func @transform_7(%arg0: i32) -> (i32, i32) {
    %c0_i32 = arith.constant 0 : i32
    %c0_i32_0 = arith.constant 0 : i32
    %c0_i32_1 = arith.constant 0 : i32
    return %c0_i32, %c0_i32_0 : i32, i32
  }
  func.func @transform_8(%arg0: i32) -> (i32, i32) {
    %c0_i32 = arith.constant 0 : i32
    %c0_i32_0 = arith.constant 0 : i32
    %c0_i32_1 = arith.constant 0 : i32
    return %c0_i32, %c0_i32_0 : i32, i32
  }
  func.func @transform_9(%arg0: i32) -> (i32, i32) {
    %c0_i32 = arith.constant 0 : i32
    %c0_i32_0 = arith.constant 0 : i32
    %c0_i32_1 = arith.constant 0 : i32
    return %c0_i32, %c0_i32_0 : i32, i32
  }
  func.func @transform_10(%arg0: i32) -> (i32, i32) {
    %c0_i32 = arith.constant 0 : i32
    %c0_i32_0 = arith.constant 0 : i32
    %c0_i32_1 = arith.constant 0 : i32
    return %c0_i32, %c0_i32_0 : i32, i32
  }
  func.func @transform_11(%arg0: i32) -> (i32, i32) {
    %c0_i32 = arith.constant 0 : i32
    %c0_i32_0 = arith.constant 0 : i32
    %c0_i32_1 = arith.constant 0 : i32
    return %c0_i32, %c0_i32_0 : i32, i32
  }
  func.func @transform_12(%arg0: i32) -> (i32, i32) {
    %c0_i32 = arith.constant 0 : i32
    %c0_i32_0 = arith.constant 0 : i32
    %c0_i32_1 = arith.constant 0 : i32
    return %c0_i32, %c0_i32_0 : i32, i32
  }
  func.func @transform_13(%arg0: i32) -> (i32, i32) {
    %c0_i32 = arith.constant 0 : i32
    %c0_i32_0 = arith.constant 0 : i32
    %c0_i32_1 = arith.constant 0 : i32
    return %c0_i32, %c0_i32_0 : i32, i32
  }
  func.func @transform_14(%arg0: i32) -> (i32, i32) {
    %c0_i32 = arith.constant 0 : i32
    %c0_i32_0 = arith.constant 0 : i32
    %c0_i32_1 = arith.constant 0 : i32
    return %c0_i32, %c0_i32_0 : i32, i32
  }
  func.func @transform_15(%arg0: i32) -> (i32, i32) {
    %c0_i32 = arith.constant 0 : i32
    %c0_i32_0 = arith.constant 0 : i32
    %c0_i32_1 = arith.constant 0 : i32
    return %c0_i32, %c0_i32_0 : i32, i32
  }
  func.func @transform_16(%arg0: i32) -> (i32, i32) {
    %c0_i32 = arith.constant 0 : i32
    %c0_i32_0 = arith.constant 0 : i32
    %c0_i32_1 = arith.constant 0 : i32
    return %c0_i32, %c0_i32_0 : i32, i32
  }
  func.func @transform_17(%arg0: i32) -> (i32, i32) {
    %c0_i32 = arith.constant 0 : i32
    %c0_i32_0 = arith.constant 0 : i32
    %c0_i32_1 = arith.constant 0 : i32
    return %c0_i32, %c0_i32_0 : i32, i32
  }
  func.func @transform_18(%arg0: i32) -> (i32, i32) {
    %c0_i32 = arith.constant 0 : i32
    %c0_i32_0 = arith.constant 0 : i32
    %c0_i32_1 = arith.constant 0 : i32
    return %c0_i32, %c0_i32_0 : i32, i32
  }
  func.func @transform_19(%arg0: i32) -> (i32, i32) {
    %c0_i32 = arith.constant 0 : i32
    %c0_i32_0 = arith.constant 0 : i32
    %c0_i32_1 = arith.constant 0 : i32
    return %c0_i32, %c0_i32_0 : i32, i32
  }
  func.func @transform_20(%arg0: i32) -> (i32, i32) {
    %c0_i32 = arith.constant 0 : i32
    %c0_i32_0 = arith.constant 0 : i32
    %c0_i32_1 = arith.constant 0 : i32
    return %c0_i32, %c0_i32_0 : i32, i32
  }
  func.func @transform_21(%arg0: i32) -> (i32, i32) {
    %c0_i32 = arith.constant 0 : i32
    %c0_i32_0 = arith.constant 0 : i32
    %c0_i32_1 = arith.constant 0 : i32
    return %c0_i32, %c0_i32_0 : i32, i32
  }
  func.func @transform_22(%arg0: i32) -> (i32, i32) {
    %c0_i32 = arith.constant 0 : i32
    %c0_i32_0 = arith.constant 0 : i32
    %c0_i32_1 = arith.constant 0 : i32
    return %c0_i32, %c0_i32_0 : i32, i32
  }
  func.func @transform_23(%arg0: i32) -> (i32, i32) {
    %c0_i32 = arith.constant 0 : i32
    %c0_i32_0 = arith.constant 0 : i32
    %c0_i32_1 = arith.constant 0 : i32
    return %c0_i32, %c0_i32_0 : i32, i32
  }
  func.func @transform_24(%arg0: i32) -> (i32, i32) {
    %c0_i32 = arith.constant 0 : i32
    %c0_i32_0 = arith.constant 0 : i32
    %c0_i32_1 = arith.constant 0 : i32
    return %c0_i32, %c0_i32_0 : i32, i32
  }
  func.func @transform_25(%arg0: i32) -> (i32, i32) {
    %c0_i32 = arith.constant 0 : i32
    %c0_i32_0 = arith.constant 0 : i32
    %c0_i32_1 = arith.constant 0 : i32
    return %c0_i32, %c0_i32_0 : i32, i32
  }
}

</mosaic_0001>

<llo_original>
// kernel: tpu_custom_call.1
$region0: #{tpu_custom_call.1}
  #allocation0 [shape = 'u32[]', space=smem, size = 0x4, offset = 0x4, fixed_abs, tag = 'smem constant byte address 0x4 - core index']
  #allocation1 [shape = 'u32[144,128]{1,0:T(1,128)}', space=vmem, size = 0x12000, scoped, tag = 'internal scratch']
  %s0 = inlined_call_operand.hbm [shape: f32[32,64], index: 0, kind: input, shape index: {}]
  %s1 = inlined_call_operand.hbm [shape: f32[32,32], index: 1, kind: input, shape index: {}]
  %s2 = inlined_call_operand.hbm [shape: f32[32,32], index: 2, kind: input, shape index: {}]
  %s3 = inlined_call_operand.vmem [shape: f32[128,8], index: 3, kind: input, shape index: {}]
  %s4 = inlined_call_operand.vmem [shape: f32[8,128], index: 4, kind: input, shape index: {}]
  %s5 = inlined_call_operand.hbm [shape: bf16[64,128], index: 5, kind: input, shape index: {}]
  %s6 = inlined_call_operand.hbm [shape: bf16[64,128], index: 6, kind: input, shape index: {}]
  %s7 = inlined_call_operand.hbm [shape: bf16[64,128], index: 7, kind: input, shape index: {}]
  %s8 = inlined_call_operand.vmem [shape: f32[1,8], index: 8, kind: input, shape index: {}]
  %s9 = inlined_call_operand.vmem [shape: f32[1,8], index: 9, kind: input, shape index: {}]
  %s10 = inlined_call_operand.vmem [shape: bf16[128,128], index: 10, kind: input, shape index: {}]
  %s11 = inlined_call_operand.vmem [shape: bf16[128,128], index: 11, kind: input, shape index: {}]
  %s12 = inlined_call_operand.hbm [shape: bf16[128,128], index: 12, kind: input, shape index: {}]
  %s13 = inlined_call_operand.vmem [shape: f32[1,8], index: 13, kind: input, shape index: {}]
  %s14 = inlined_call_operand.vmem [shape: f32[1,8], index: 14, kind: input, shape index: {}]
  %s15 = inlined_call_operand.hbm [shape: bf16[128,128], index: 15, kind: input, shape index: {}]
  %s16 = inlined_call_operand.hbm [shape: bf16[128,128], index: 16, kind: input, shape index: {}]
  %s17 = inlined_call_operand.hbm [shape: bf16[128,128], index: 17, kind: input, shape index: {}]
  %s18 = inlined_call_operand.vmem [shape: f32[1,8], index: 18, kind: input, shape index: {}]
  %s19 = inlined_call_operand.vmem [shape: f32[1,8], index: 19, kind: input, shape index: {}]
  %s20 = inlined_call_operand.hbm [shape: bf16[128,128], index: 20, kind: input, shape index: {}]
  %s21 = inlined_call_operand.hbm [shape: bf16[128,128], index: 21, kind: input, shape index: {}]
  %s22 = inlined_call_operand.hbm [shape: bf16[128,128], index: 22, kind: input, shape index: {}]
  %s23 = inlined_call_operand.vmem [shape: f32[1,8], index: 23, kind: input, shape index: {}]
  %s24 = inlined_call_operand.vmem [shape: f32[1,8], index: 24, kind: input, shape index: {}]
  %s25 = inlined_call_operand.hbm [shape: f32[32,128], index: 25, kind: output, shape index: {}]
  %s26 = sld [smem:[#allocation0]]
  $region162: #{tpu_custom_call.1} parent=0
    _
  %s28 = ssub.s32 1, %s26
  %s29 = scalar_select 0, %s28, %s26
  $region1: #{tpu_custom_call.1} parent=0
    #allocation2 [shape = 'u8[16384]{0}', space=vmem, size = 0x4000, scoped, tag = 'input window, operand 0, single buffered']
    #allocation3 [shape = 's32[1]{0}', space=sflag, size = 0x4, scoped, tag = 'scoped memory for tpu_custom_call.1']
    #allocation4 [shape = 's32[1]{0}', space=sflag, size = 0x4, scoped, tag = 'scoped memory for tpu_custom_call.1']
    #allocation5 [shape = 'u8[16384]{0}', space=vmem, size = 0x4000, scoped, tag = 'input window, operand 1, single buffered']
    #allocation6 [shape = 's32[1]{0}', space=sflag, size = 0x4, scoped, tag = 'scoped memory for tpu_custom_call.1']
    #allocation7 [shape = 'u8[16384]{0}', space=vmem, size = 0x4000, scoped, tag = 'input window, operand 2, single buffered']
    #allocation8 [shape = 'u8[16384]{0}', space=vmem, size = 0x4000, scoped, tag = 'input window, operand 5, single buffered']
    #allocation9 [shape = 's32[1]{0}', space=sflag, size = 0x4, scoped, tag = 'scoped memory for tpu_custom_call.1']
    #allocation10 [shape = 'u8[16384]{0}', space=vmem, size = 0x4000, scoped, tag = 'input window, operand 6, single buffered']
    #allocation11 [shape = 'u8[16384]{0}', space=vmem, size = 0x4000, scoped, tag = 'input window, operand 7, single buffered']
    #allocation12 [shape = 's32[1]{0}', space=sflag, size = 0x4, scoped, tag = 'scoped memory for tpu_custom_call.1']
    #allocation13 [shape = 'u8[32768]{0}', space=vmem, size = 0x8000, scoped, tag = 'input window, operand 12, single buffered']
    #allocation14 [shape = 'u8[32768]{0}', space=vmem, size = 0x8000, scoped, tag = 'input window, operand 15, single buffered']
    #allocation15 [shape = 's32[1]{0}', space=sflag, size = 0x4, scoped, tag = 'scoped memory for tpu_custom_call.1']
    #allocation16 [shape = 'u8[32768]{0}', space=vmem, size = 0x8000, scoped, tag = 'input window, operand 16, single buffered']
    #allocation17 [shape = 'u8[32768]{0}', space=vmem, size = 0x8000, scoped, tag = 'input window, operand 17, single buffered']
    #allocation18 [shape = 's32[1]{0}', space=sflag, size = 0x4, scoped, tag = 'scoped memory for tpu_custom_call.1']
    #allocation19 [shape = 'u8[32768]{0}', space=vmem, size = 0x8000, scoped, tag = 'input window, operand 20, single buffered']
    #allocation20 [shape = 'u8[32768]{0}', space=vmem, size = 0x8000, scoped, tag = 'input window, operand 21, single buffered']
    #allocation21 [shape = 's32[1]{0}', space=sflag, size = 0x4, scoped, tag = 'scoped memory for tpu_custom_call.1']
    #allocation22 [shape = 'u8[32768]{0}', space=vmem, size = 0x8000, scoped, tag = 'input window, operand 22, single buffered']
    #allocation23 [shape = 'u8[16384]{0}', space=vmem, size = 0x4000, scoped, tag = 'output window, operand 0, single buffered']
    %30 = vsyncpa [#allocation3], 0
    %31 = vsyncpa [#allocation6], 0
    %32 = vsyncpa [#allocation9], 0
    %33 = vsyncpa [#allocation12], 0
    %34 = vsyncpa [#allocation15], 0
    %35 = vsyncpa [#allocation18], 0
    %36 = vsyncpa [#allocation21], 0
    %37 = vsyncpa [#allocation4], 0
    // Predicated region
    $region2: #{tpu_custom_call.1} parent=1 // pred_check
      _
    $region3: #{tpu_custom_call.1} parent=1 // pred_check_branch
      %39 = sbr.rel (0) target = $region5
    $region4: #{tpu_custom_call.1} parent=1 // pred_region
      %s41 = ssub.s32 512, 512
      %42 = vsyncadd [#allocation3], %s41
      %s43 = sshll.u32 [#allocation2], 4
      %s44 = int_to_ptr.vmem [resolvable:$true] %s43
      %49 = dma.hbm_to_vmem [thread:$0]  %s0, 512, %s44, [#allocation3], 128, 128, 8
    $region5: #{tpu_custom_call.1} parent=1 // pred_fallthru
      _
    // Predicated region
    $region6: #{tpu_custom_call.1} parent=1 // pred_check
      _
    $region7: #{tpu_custom_call.1} parent=1 // pred_check_branch
      %51 = sbr.rel (0) target = $region9
    $region8: #{tpu_custom_call.1} parent=1 // pred_region
      %s53 = ssub.s32 512, 512
      %54 = vsyncadd [#allocation6], %s53
      %s55 = sshll.u32 [#allocation5], 4
      %s56 = int_to_ptr.vmem [resolvable:$true] %s55
      %61 = dma.hbm_to_vmem [thread:$0]  %s1, 512, %s56, [#allocation6], 128, 128, 8
    $region9: #{tpu_custom_call.1} parent=1 // pred_fallthru
      _
    // Predicated region
    $region10: #{tpu_custom_call.1} parent=1 // pred_check
      _
    $region11: #{tpu_custom_call.1} parent=1 // pred_check_branch
      %63 = sbr.rel (0) target = $region13
    $region12: #{tpu_custom_call.1} parent=1 // pred_region
      %s65 = ssub.s32 512, 512
      %66 = vsyncadd [#allocation6], %s65
      %s67 = sshll.u32 [#allocation7], 4
      %s68 = int_to_ptr.vmem [resolvable:$true] %s67
      %73 = dma.hbm_to_vmem [thread:$0]  %s2, 512, %s68, [#allocation6], 128, 128, 8
    $region13: #{tpu_custom_call.1} parent=1 // pred_fallthru
      _
    // Predicated region
    $region14: #{tpu_custom_call.1} parent=1 // pred_check
      _
    $region15: #{tpu_custom_call.1} parent=1 // pred_check_branch
      %75 = sbr.rel (0) target = $region17
    $region16: #{tpu_custom_call.1} parent=1 // pred_region
      _
    $region17: #{tpu_custom_call.1} parent=1 // pred_fallthru
      _
    // Predicated region
    $region18: #{tpu_custom_call.1} parent=1 // pred_check
      _
    $region19: #{tpu_custom_call.1} parent=1 // pred_check_branch
      %77 = sbr.rel (0) target = $region21
    $region20: #{tpu_custom_call.1} parent=1 // pred_region
      _
    $region21: #{tpu_custom_call.1} parent=1 // pred_fallthru
      _
    // Predicated region
    $region22: #{tpu_custom_call.1} parent=1 // pred_check
      _
    $region23: #{tpu_custom_call.1} parent=1 // pred_check_branch
      %79 = sbr.rel (0) target = $region25
    $region24: #{tpu_custom_call.1} parent=1 // pred_region
      %s81 = ssub.s32 512, 512
      %82 = vsyncadd [#allocation9], %s81
      %s83 = sshll.u32 [#allocation8], 4
      %s84 = int_to_ptr.vmem [resolvable:$true] %s83
      %89 = dma.hbm_to_vmem [thread:$0]  %s5, 512, %s84, [#allocation9], 64, 64, 4
    $region25: #{tpu_custom_call.1} parent=1 // pred_fallthru
      _
    // Predicated region
    $region26: #{tpu_custom_call.1} parent=1 // pred_check
      _
    $region27: #{tpu_custom_call.1} parent=1 // pred_check_branch
      %91 = sbr.rel (0) target = $region29
    $region28: #{tpu_custom_call.1} parent=1 // pred_region
      %s93 = ssub.s32 512, 512
      %94 = vsyncadd [#allocation9], %s93
      %s95 = sshll.u32 [#allocation10], 4
      %s96 = int_to_ptr.vmem [resolvable:$true] %s95
      %101 = dma.hbm_to_vmem [thread:$0]  %s6, 512, %s96, [#allocation9], 64, 64, 4
    $region29: #{tpu_custom_call.1} parent=1 // pred_fallthru
      _
    // Predicated region
    $region30: #{tpu_custom_call.1} parent=1 // pred_check
      _
    $region31: #{tpu_custom_call.1} parent=1 // pred_check_branch
      %103 = sbr.rel (0) target = $region33
    $region32: #{tpu_custom_call.1} parent=1 // pred_region
      %s105 = ssub.s32 512, 512
      %106 = vsyncadd [#allocation12], %s105
      %s107 = sshll.u32 [#allocation11], 4
      %s108 = int_to_ptr.vmem [resolvable:$true] %s107
      %113 = dma.hbm_to_vmem [thread:$0]  %s7, 512, %s108, [#allocation12], 64, 64, 4
    $region33: #{tpu_custom_call.1} parent=1 // pred_fallthru
      _
    // Predicated region
    $region34: #{tpu_custom_call.1} parent=1 // pred_check
      _
    $region35: #{tpu_custom_call.1} parent=1 // pred_check_branch
      %115 = sbr.rel (0) target = $region37
    $region36: #{tpu_custom_call.1} parent=1 // pred_region
      _
    $region37: #{tpu_custom_call.1} parent=1 // pred_fallthru
      _
    // Predicated region
    $region38: #{tpu_custom_call.1} parent=1 // pred_check
      _
    $region39: #{tpu_custom_call.1} parent=1 // pred_check_branch
      %117 = sbr.rel (0) target = $region41
    $region40: #{tpu_custom_call.1} parent=1 // pred_region
      _
    $region41: #{tpu_custom_call.1} parent=1 // pred_fallthru
      _
    // Predicated region
    $region42: #{tpu_custom_call.1} parent=1 // pred_check
      _
    $region43: #{tpu_custom_call.1} parent=1 // pred_check_branch
      %119 = sbr.rel (0) target = $region45
    $region44: #{tpu_custom_call.1} parent=1 // pred_region
      _
    $region45: #{tpu_custom_call.1} parent=1 // pred_fallthru
      _
    // Predicated region
    $region46: #{tpu_custom_call.1} parent=1 // pred_check
      _
    $region47: #{tpu_custom_call.1} parent=1 // pred_check_branch
      %121 = sbr.rel (0) target = $region49
    $region48: #{tpu_custom_call.1} parent=1 // pred_region
      _
    $region49: #{tpu_custom_call.1} parent=1 // pred_fallthru
      _
    // Predicated region
    $region50: #{tpu_custom_call.1} parent=1 // pred_check
      _
    $region51: #{tpu_custom_call.1} parent=1 // pred_check_branch
      %123 = sbr.rel (0) target = $region53
    $region52: #{tpu_custom_call.1} parent=1 // pred_region
      %s125 = ssub.s32 1024, 1024
      %126 = vsyncadd [#allocation12], %s125
      %s127 = sshll.u32 [#allocation13], 4
      %s128 = int_to_ptr.vmem [resolvable:$true] %s127
      %133 = dma.hbm_to_vmem [thread:$0]  %s12, 1024, %s128, [#allocation12], 64, 64, 4
    $region53: #{tpu_custom_call.1} parent=1 // pred_fallthru
      _
    // Predicated region
    $region54: #{tpu_custom_call.1} parent=1 // pred_check
      _
    $region55: #{tpu_custom_call.1} parent=1 // pred_check_branch
      %135 = sbr.rel (0) target = $region57
    $region56: #{tpu_custom_call.1} parent=1 // pred_region
      _
    $region57: #{tpu_custom_call.1} parent=1 // pred_fallthru
      _
    // Predicated region
    $region58: #{tpu_custom_call.1} parent=1 // pred_check
      _
    $region59: #{tpu_custom_call.1} parent=1 // pred_check_branch
      %137 = sbr.rel (0) target = $region61
    $region60: #{tpu_custom_call.1} parent=1 // pred_region
      _
    $region61: #{tpu_custom_call.1} parent=1 // pred_fallthru
      _
    // Predicated region
    $region62: #{tpu_custom_call.1} parent=1 // pred_check
      _
    $region63: #{tpu_custom_call.1} parent=1 // pred_check_branch
      %139 = sbr.rel (0) target = $region65
    $region64: #{tpu_custom_call.1} parent=1 // pred_region
      %s141 = ssub.s32 1024, 1024
      %142 = vsyncadd [#allocation15], %s141
      %s143 = sshll.u32 [#allocation14], 4
      %s144 = int_to_ptr.vmem [resolvable:$true] %s143
      %149 = dma.hbm_to_vmem [thread:$0]  %s15, 1024, %s144, [#allocation15], 64, 64, 4
    $region65: #{tpu_custom_call.1} parent=1 // pred_fallthru
      _
    // Predicated region
    $region66: #{tpu_custom_call.1} parent=1 // pred_check
      _
    $region67: #{tpu_custom_call.1} parent=1 // pred_check_branch
      %151 = sbr.rel (0) target = $region69
    $region68: #{tpu_custom_call.1} parent=1 // pred_region
      %s153 = ssub.s32 1024, 1024
      %154 = vsyncadd [#allocation15], %s153
      %s155 = sshll.u32 [#allocation16], 4
      %s156 = int_to_ptr.vmem [resolvable:$true] %s155
      %161 = dma.hbm_to_vmem [thread:$0]  %s16, 1024, %s156, [#allocation15], 64, 64, 4
    $region69: #{tpu_custom_call.1} parent=1 // pred_fallthru
      _
    // Predicated region
    $region70: #{tpu_custom_call.1} parent=1 // pred_check
      _
    $region71: #{tpu_custom_call.1} parent=1 // pred_check_branch
      %163 = sbr.rel (0) target = $region73
    $region72: #{tpu_custom_call.1} parent=1 // pred_region
      %s165 = ssub.s32 1024, 1024
      %166 = vsyncadd [#allocation18], %s165
      %s167 = sshll.u32 [#allocation17], 4
      %s168 = int_to_ptr.vmem [resolvable:$true] %s167
      %173 = dma.hbm_to_vmem [thread:$0]  %s17, 1024, %s168, [#allocation18], 64, 64, 4
    $region73: #{tpu_custom_call.1} parent=1 // pred_fallthru
      _
    // Predicated region
    $region74: #{tpu_custom_call.1} parent=1 // pred_check
      _
    $region75: #{tpu_custom_call.1} parent=1 // pred_check_branch
      %175 = sbr.rel (0) target = $region77
    $region76: #{tpu_custom_call.1} parent=1 // pred_region
      _
    $region77: #{tpu_custom_call.1} parent=1 // pred_fallthru
      _
    // Predicated region
    $region78: #{tpu_custom_call.1} parent=1 // pred_check
      _
    $region79: #{tpu_custom_call.1} parent=1 // pred_check_branch
      %177 = sbr.rel (0) target = $region81
    $region80: #{tpu_custom_call.1} parent=1 // pred_region
      _
    $region81: #{tpu_custom_call.1} parent=1 // pred_fallthru
      _
    // Predicated region
    $region82: #{tpu_custom_call.1} parent=1 // pred_check
      _
    $region83: #{tpu_custom_call.1} parent=1 // pred_check_branch
      %179 = sbr.rel (0) target = $region85
    $region84: #{tpu_custom_call.1} parent=1 // pred_region
      %s181 = ssub.s32 1024, 1024
      %182 = vsyncadd [#allocation18], %s181
      %s183 = sshll.u32 [#allocation19], 4
      %s184 = int_to_ptr.vmem [resolvable:$true] %s183
      %189 = dma.hbm_to_vmem [thread:$0]  %s20, 1024, %s184, [#allocation18], 64, 64, 4
    $region85: #{tpu_custom_call.1} parent=1 // pred_fallthru
      _
    // Predicated region
    $region86: #{tpu_custom_call.1} parent=1 // pred_check
      _
    $region87: #{tpu_custom_call.1} parent=1 // pred_check_branch
      %191 = sbr.rel (0) target = $region89
    $region88: #{tpu_custom_call.1} parent=1 // pred_region
      %s193 = ssub.s32 1024, 1024
      %194 = vsyncadd [#allocation21], %s193
      %s195 = sshll.u32 [#allocation20], 4
      %s196 = int_to_ptr.vmem [resolvable:$true] %s195
      %201 = dma.hbm_to_vmem [thread:$0]  %s21, 1024, %s196, [#allocation21], 64, 64, 4
    $region89: #{tpu_custom_call.1} parent=1 // pred_fallthru
      _
    // Predicated region
    $region90: #{tpu_custom_call.1} parent=1 // pred_check
      _
    $region91: #{tpu_custom_call.1} parent=1 // pred_check_branch
      %203 = sbr.rel (0) target = $region93
    $region92: #{tpu_custom_call.1} parent=1 // pred_region
      %s205 = ssub.s32 1024, 1024
      %206 = vsyncadd [#allocation21], %s205
      %s207 = sshll.u32 [#allocation22], 4
      %s208 = int_to_ptr.vmem [resolvable:$true] %s207
      %213 = dma.hbm_to_vmem [thread:$0]  %s22, 1024, %s208, [#allocation21], 64, 64, 4
    $region93: #{tpu_custom_call.1} parent=1 // pred_fallthru
      _
    // Predicated region
    $region94: #{tpu_custom_call.1} parent=1 // pred_check
      _
    $region95: #{tpu_custom_call.1} parent=1 // pred_check_branch
      %215 = sbr.rel (0) target = $region97
    $region96: #{tpu_custom_call.1} parent=1 // pred_region
      _
    $region97: #{tpu_custom_call.1} parent=1 // pred_fallthru
      _
    // Predicated region
    $region98: #{tpu_custom_call.1} parent=1 // pred_check
      _
    $region99: #{tpu_custom_call.1} parent=1 // pred_check_branch
      %217 = sbr.rel (0) target = $region101
    $region100: #{tpu_custom_call.1} parent=1 // pred_region
      _
    $region101: #{tpu_custom_call.1} parent=1 // pred_fallthru
      _
    // Predicated region
    $region102: #{tpu_custom_call.1} parent=1 // pred_check
      _
    $region103: #{tpu_custom_call.1} parent=1 // pred_check_branch
      %219 = sbr.rel (0) target = $region105
    $region104: #{tpu_custom_call.1} parent=1 // pred_region
      %220 = dma.done [#allocation3], 512
    $region105: #{tpu_custom_call.1} parent=1 // pred_fallthru
      _
    // Predicated region
    $region106: #{tpu_custom_call.1} parent=1 // pred_check
      _
    $region107: #{tpu_custom_call.1} parent=1 // pred_check_branch
      %222 = sbr.rel (0) target = $region109
    $region108: #{tpu_custom_call.1} parent=1 // pred_region
      %223 = dma.done [#allocation6], 512
    $region109: #{tpu_custom_call.1} parent=1 // pred_fallthru
      _
    // Predicated region
    $region110: #{tpu_custom_call.1} parent=1 // pred_check
      _
    $region111: #{tpu_custom_call.1} parent=1 // pred_check_branch
      %225 = sbr.rel (0) target = $region113
    $region112: #{tpu_custom_call.1} parent=1 // pred_region
      %226 = dma.done [#allocation6], 512
    $region113: #{tpu_custom_call.1} parent=1 // pred_fallthru
      _
    // Predicated region
    $region114: #{tpu_custom_call.1} parent=1 // pred_check
      _
    $region115: #{tpu_custom_call.1} parent=1 // pred_check_branch
      %228 = sbr.rel (0) target = $region117
    $region116: #{tpu_custom_call.1} parent=1 // pred_region
      %229 = dma.done [#allocation9], 512
    $region117: #{tpu_custom_call.1} parent=1 // pred_fallthru
      _
    // Predicated region
    $region118: #{tpu_custom_call.1} parent=1 // pred_check
      _
    $region119: #{tpu_custom_call.1} parent=1 // pred_check_branch
      %231 = sbr.rel (0) target = $region121
    $region120: #{tpu_custom_call.1} parent=1 // pred_region
      %232 = dma.done [#allocation9], 512
    $region121: #{tpu_custom_call.1} parent=1 // pred_fallthru
      _
    // Predicated region
    $region122: #{tpu_custom_call.1} parent=1 // pred_check
      _
    $region123: #{tpu_custom_call.1} parent=1 // pred_check_branch
      %234 = sbr.rel (0) target = $region125
    $region124: #{tpu_custom_call.1} parent=1 // pred_region
      %235 = dma.done [#allocation12], 512
    $region125: #{tpu_custom_call.1} parent=1 // pred_fallthru
      _
    // Predicated region
    $region126: #{tpu_custom_call.1} parent=1 // pred_check
      _
    $region127: #{tpu_custom_call.1} parent=1 // pred_check_branch
      %237 = sbr.rel (0) target = $region129
    $region128: #{tpu_custom_call.1} parent=1 // pred_region
      %238 = dma.done [#allocation12], 1024
    $region129: #{tpu_custom_call.1} parent=1 // pred_fallthru
      _
    // Predicated region
    $region130: #{tpu_custom_call.1} parent=1 // pred_check
      _
    $region131: #{tpu_custom_call.1} parent=1 // pred_check_branch
      %240 = sbr.rel (0) target = $region133
    $region132: #{tpu_custom_call.1} parent=1 // pred_region
      %241 = dma.done [#allocation15], 1024
    $region133: #{tpu_custom_call.1} parent=1 // pred_fallthru
      _
    // Predicated region
    $region134: #{tpu_custom_call.1} parent=1 // pred_check
      _
    $region135: #{tpu_custom_call.1} parent=1 // pred_check_branch
      %243 = sbr.rel (0) target = $region137
    $region136: #{tpu_custom_call.1} parent=1 // pred_region
      %244 = dma.done [#allocation15], 1024
    $region137: #{tpu_custom_call.1} parent=1 // pred_fallthru
      _
    // Predicated region
    $region138: #{tpu_custom_call.1} parent=1 // pred_check
      _
    $region139: #{tpu_custom_call.1} parent=1 // pred_check_branch
      %246 = sbr.rel (0) target = $region141
    $region140: #{tpu_custom_call.1} parent=1 // pred_region
      %247 = dma.done [#allocation18], 1024
    $region141: #{tpu_custom_call.1} parent=1 // pred_fallthru
      _
    // Predicated region
    $region142: #{tpu_custom_call.1} parent=1 // pred_check
      _
    $region143: #{tpu_custom_call.1} parent=1 // pred_check_branch
      %249 = sbr.rel (0) target = $region145
    $region144: #{tpu_custom_call.1} parent=1 // pred_region
      %250 = dma.done [#allocation18], 1024
    $region145: #{tpu_custom_call.1} parent=1 // pred_fallthru
      _
    // Predicated region
    $region146: #{tpu_custom_call.1} parent=1 // pred_check
      _
    $region147: #{tpu_custom_call.1} parent=1 // pred_check_branch
      %252 = sbr.rel (0) target = $region149
    $region148: #{tpu_custom_call.1} parent=1 // pred_region
      %253 = dma.done [#allocation21], 1024
    $region149: #{tpu_custom_call.1} parent=1 // pred_fallthru
      _
    // Predicated region
    $region150: #{tpu_custom_call.1} parent=1 // pred_check
      _
    $region151: #{tpu_custom_call.1} parent=1 // pred_check_branch
      %255 = sbr.rel (0) target = $region153
    $region152: #{tpu_custom_call.1} parent=1 // pred_region
      %256 = dma.done [#allocation21], 1024
    $region153: #{tpu_custom_call.1} parent=1 // pred_fallthru
      _
    %v258 = vld [vmem:[#allocation5] sm:$0xff]
    %v259 = vld [vmem:[#allocation5 + $0x8] sm:$0xff]
    %v260 = vld [vmem:[#allocation5 + $0x10] sm:$0xff]
    %v261 = vld [vmem:[#allocation5 + $0x18] sm:$0xff]
    %v262 = vld [vmem:[#allocation7] sm:$0xff]
    %v263 = vld [vmem:[#allocation7 + $0x8] sm:$0xff]
    %v264 = vld [vmem:[#allocation7 + $0x10] sm:$0xff]
    %v265 = vld [vmem:[#allocation7 + $0x18] sm:$0xff]
    %v266 = vld [vmem:[%s3] sm:$0xff]
    %v267 = vld [vmem:[%s3 + $0x8] sm:$0xff]
    %v268 = vld [vmem:[%s3 + $0x10] sm:$0xff]
    %v269 = vld [vmem:[%s3 + $0x18] sm:$0xff]
    %v270 = vld [vmem:[%s3 + $0x20] sm:$0xff]
    %v271 = vld [vmem:[%s3 + $0x28] sm:$0xff]
    %v272 = vld [vmem:[%s3 + $0x30] sm:$0xff]
    %v273 = vld [vmem:[%s3 + $0x38] sm:$0xff]
    %v274 = vld [vmem:[%s3 + $0x40] sm:$0xff]
    %v275 = vld [vmem:[%s3 + $0x48] sm:$0xff]
    %v276 = vld [vmem:[%s3 + $0x50] sm:$0xff]
    %v277 = vld [vmem:[%s3 + $0x58] sm:$0xff]
    %v278 = vld [vmem:[%s3 + $0x60] sm:$0xff]
    %v279 = vld [vmem:[%s3 + $0x68] sm:$0xff]
    %v280 = vld [vmem:[%s3 + $0x70] sm:$0xff]
    %v281 = vld [vmem:[%s3 + $0x78] sm:$0xff]
    %v282 = vld [vmem:[%s4] sm:$0xff]
    %v283 = vld [vmem:[#allocation2] sm:$0xff]
    %v284 = vld [vmem:[#allocation2 + $0x8] sm:$0xff]
    %v285 = vld [vmem:[#allocation2 + $0x10] sm:$0xff]
    %v286 = vld [vmem:[#allocation2 + $0x18] sm:$0xff]
    %vm287 = vcmask 261120
    %v289 = vsel %vm287, %v258, 0
    %v292 = vsel %vm287, %v259, 0
    %v295 = vsel %vm287, %v260, 0
    %v298 = vsel %vm287, %v261, 0
    %300 = vmatprep.subr.mxu0 0.0
    %301 = vmatpush1.msra.mxu0 0.0
    %302 = vmatprep.subr.mxu0 0.0
    %303 = vmatpush1.msra.mxu0 0.0
    %304 = vmatprep.subr.mxu0 0.0
    %305 = vmatpush1.msra.mxu0 0.0
    %306 = vmatprep.subr.mxu0 0.0
    %307 = vmatpush1.msra.mxu0 0.0
    %308 = vmatprep.subr.mxu0 0.0
    %309 = vmatpush1.msra.mxu0 0.0
    %310 = vmatprep.subr.mxu0 0.0
    %311 = vmatpush1.msra.mxu0 0.0
    %312 = vmatprep.subr.mxu0 0.0
    %313 = vmatpush1.msra.mxu0 0.0
    %314 = vmatprep.subr.mxu0 0.0
    %315 = vmatpush1.msra.mxu0 0.0
    %316 = vmatprep.subr.mxu0 0.0
    %317 = vmatpush1.msra.mxu0 0.0
    %318 = vmatprep.subr.mxu0 0.0
    %319 = vmatpush1.msra.mxu0 0.0
    %320 = vmatprep.subr.mxu0 0.0
    %321 = vmatpush1.msra.mxu0 0.0
    %322 = vmatprep.subr.mxu0 0.0
    %323 = vmatpush1.msra.mxu0 0.0
    %324 = vmatprep.subr.mxu0 0.0
    %325 = vmatpush1.msra.mxu0 %v286
    %326 = vmatprep.subr.mxu0 0.0
    %327 = vmatpush1.msra.mxu0 %v285
    %328 = vmatprep.subr.mxu0 0.0
    %329 = vmatpush1.msra.mxu0 %v284
    %330 = vmatprep.subr.mxu0 0.0
    %331 = vmatpush1.msra.mxu0 %v283
    %332 = vmatprep.subr.mxu0 0.0
    %333 = vmatpush2.msra.mxu0 0.0
    %334 = vmatprep.subr.mxu0 0.0
    %335 = vmatpush2.msra.mxu0 0.0
    %336 = vmatprep.subr.mxu0 0.0
    %337 = vmatpush2.msra.mxu0 0.0
    %338 = vmatprep.subr.mxu0 0.0
    %339 = vmatpush2.msra.mxu0 0.0
    %340 = vmatprep.subr.mxu0 0.0
    %341 = vmatpush2.msra.mxu0 0.0
    %342 = vmatprep.subr.mxu0 0.0
    %343 = vmatpush2.msra.mxu0 0.0
    %344 = vmatprep.subr.mxu0 0.0
    %345 = vmatpush2.msra.mxu0 0.0
    %346 = vmatprep.subr.mxu0 0.0
    %347 = vmatpush2.msra.mxu0 0.0
    %348 = vmatprep.subr.mxu0 0.0
    %349 = vmatpush2.msra.mxu0 0.0
    %350 = vmatprep.subr.mxu0 0.0
    %351 = vmatpush2.msra.mxu0 0.0
    %352 = vmatprep.subr.mxu0 0.0
    %353 = vmatpush2.msra.mxu0 0.0
    %354 = vmatprep.subr.mxu0 0.0
    %355 = vmatpush2.msra.mxu0 0.0
    %356 = vmatprep.subr.mxu0 0.0
    %357 = vmatpush2.msra.mxu0 0.0
    %358 = vmatprep.subr.mxu0 0.0
    %359 = vmatpush2.msra.mxu0 0.0
    %360 = vmatprep.subr.mxu0 0.0
    %361 = vmatpush2.msra.mxu0 0.0
    %362 = vmatprep.subr.mxu0 0.0
    %363 = vmatpush2.msra.mxu0 0.0
    %364 = vmatprep.mubr.f32.mxu0 0.0
    %365 = vmatmul.mubr.f32.gmra.mxu0 %v289
    %v366 = vpop.f32.mrf.mxu0
    %v367 = vadd.f32 0.0, %v366
    %v368 = vpop.f32.mrf.mxu0
    %369 = vmatprep.mubr.f32.mxu0 0.0
    %370 = vmatmul.mubr.f32.gmra.mxu0 %v292
    %v371 = vpop.f32.mrf.mxu0
    %v372 = vadd.f32 0.0, %v371
    %v373 = vpop.f32.mrf.mxu0
    %374 = vmatprep.mubr.f32.mxu0 0.0
    %375 = vmatmul.mubr.f32.gmra.mxu0 %v295
    %v376 = vpop.f32.mrf.mxu0
    %v377 = vadd.f32 0.0, %v376
    %v378 = vpop.f32.mrf.mxu0
    %379 = vmatprep.mubr.f32.mxu0 0.0
    %380 = vmatmul.mubr.f32.gmra.mxu0 %v298
    %v381 = vpop.f32.mrf.mxu0
    %v382 = vadd.f32 0.0, %v381
    %v383 = vpop.f32.mrf.mxu0
    %384 = vdwg.mxu0
    %v386 = vsel %vm287, %v262, 0
    %v389 = vsel %vm287, %v263, 0
    %v392 = vsel %vm287, %v264, 0
    %v395 = vsel %vm287, %v265, 0
    %397 = vmatprep.subr.mxu0 0.0
    %398 = vmatpush1.msra.mxu0 0.0
    %399 = vmatprep.subr.mxu0 0.0
    %400 = vmatpush1.msra.mxu0 0.0
    %401 = vmatprep.subr.mxu0 0.0
    %402 = vmatpush1.msra.mxu0 0.0
    %403 = vmatprep.subr.mxu0 0.0
    %404 = vmatpush1.msra.mxu0 0.0
    %405 = vmatprep.subr.mxu0 0.0
    %406 = vmatpush1.msra.mxu0 0.0
    %407 = vmatprep.subr.mxu0 0.0
    %408 = vmatpush1.msra.mxu0 0.0
    %409 = vmatprep.subr.mxu0 0.0
    %410 = vmatpush1.msra.mxu0 0.0
    %411 = vmatprep.subr.mxu0 0.0
    %412 = vmatpush1.msra.mxu0 0.0
    %413 = vmatprep.subr.mxu0 0.0
    %414 = vmatpush1.msra.mxu0 0.0
    %415 = vmatprep.subr.mxu0 0.0
    %416 = vmatpush1.msra.mxu0 0.0
    %417 = vmatprep.subr.mxu0 0.0
    %418 = vmatpush1.msra.mxu0 0.0
    %419 = vmatprep.subr.mxu0 0.0
    %420 = vmatpush1.msra.mxu0 0.0
    %421 = vmatprep.subr.mxu0 0.0
    %422 = vmatpush1.msra.mxu0 %v286
    %423 = vmatprep.subr.mxu0 0.0
    %424 = vmatpush1.msra.mxu0 %v285
    %425 = vmatprep.subr.mxu0 0.0
    %426 = vmatpush1.msra.mxu0 %v284
    %427 = vmatprep.subr.mxu0 0.0
    %428 = vmatpush1.msra.mxu0 %v283
    %429 = vmatprep.subr.mxu0 0.0
    %430 = vmatpush2.msra.mxu0 0.0
    %431 = vmatprep.subr.mxu0 0.0
    %432 = vmatpush2.msra.mxu0 0.0
    %433 = vmatprep.subr.mxu0 0.0
    %434 = vmatpush2.msra.mxu0 0.0
    %435 = vmatprep.subr.mxu0 0.0
    %436 = vmatpush2.msra.mxu0 0.0
    %437 = vmatprep.subr.mxu0 0.0
    %438 = vmatpush2.msra.mxu0 0.0
    %439 = vmatprep.subr.mxu0 0.0
    %440 = vmatpush2.msra.mxu0 0.0
    %441 = vmatprep.subr.mxu0 0.0
    %442 = vmatpush2.msra.mxu0 0.0
    %443 = vmatprep.subr.mxu0 0.0
    %444 = vmatpush2.msra.mxu0 0.0
    %445 = vmatprep.subr.mxu0 0.0
    %446 = vmatpush2.msra.mxu0 0.0
    %447 = vmatprep.subr.mxu0 0.0
    %448 = vmatpush2.msra.mxu0 0.0
    %449 = vmatprep.subr.mxu0 0.0
    %450 = vmatpush2.msra.mxu0 0.0
    %451 = vmatprep.subr.mxu0 0.0
    %452 = vmatpush2.msra.mxu0 0.0
    %453 = vmatprep.subr.mxu0 0.0
    %454 = vmatpush2.msra.mxu0 0.0
    %455 = vmatprep.subr.mxu0 0.0
    %456 = vmatpush2.msra.mxu0 0.0
    %457 = vmatprep.subr.mxu0 0.0
    %458 = vmatpush2.msra.mxu0 0.0
    %459 = vmatprep.subr.mxu0 0.0
    %460 = vmatpush2.msra.mxu0 0.0
    %461 = vmatprep.mubr.f32.mxu0 0.0
    %462 = vmatmul.mubr.f32.gmra.mxu0 %v386
    %v463 = vpop.f32.mrf.mxu0
    %v464 = vadd.f32 0.0, %v463
    %v465 = vpop.f32.mrf.mxu0
    %466 = vmatprep.mubr.f32.mxu0 0.0
    %467 = vmatmul.mubr.f32.gmra.mxu0 %v389
    %v468 = vpop.f32.mrf.mxu0
    %v469 = vadd.f32 0.0, %v468
    %v470 = vpop.f32.mrf.mxu0
    %471 = vmatprep.mubr.f32.mxu0 0.0
    %472 = vmatmul.mubr.f32.gmra.mxu0 %v392
    %v473 = vpop.f32.mrf.mxu0
    %v474 = vadd.f32 0.0, %v473
    %v475 = vpop.f32.mrf.mxu0
    %476 = vmatprep.mubr.f32.mxu0 0.0
    %477 = vmatmul.mubr.f32.gmra.mxu0 %v395
    %v478 = vpop.f32.mrf.mxu0
    %v479 = vadd.f32 0.0, %v478
    %v480 = vpop.f32.mrf.mxu0
    %481 = vdwg.mxu0
    %v482 = vpack.c.bf16 %v372, %v367
    %v483 = vpack.c.bf16 %v382, %v377
    %v484 = vld [vmem:[#allocation8] sm:$0xf]
    %v485 = vld [vmem:[#allocation8 + $0x4] sm:$0xf]
    %v486 = vld [vmem:[#allocation8 + $0x8] sm:$0xf]
    %v487 = vld [vmem:[#allocation8 + $0xc] sm:$0xf]
    %v488 = vld [vmem:[#allocation8 + $0x10] sm:$0xf]
    %v489 = vld [vmem:[#allocation8 + $0x14] sm:$0xf]
    %v490 = vld [vmem:[#allocation8 + $0x18] sm:$0xf]
    %v491 = vld [vmem:[#allocation8 + $0x1c] sm:$0xf]
    %v492 = vpack.c.bf16 %v284, %v283
    %v493 = vpack.c.bf16 %v286, %v285
    %v494 = vld [vmem:[#allocation10] sm:$0xf]
    %v495 = vld [vmem:[#allocation10 + $0x4] sm:$0xf]
    %v496 = vld [vmem:[#allocation10 + $0x8] sm:$0xf]
    %v497 = vld [vmem:[#allocation10 + $0xc] sm:$0xf]
    %v498 = vld [vmem:[#allocation10 + $0x10] sm:$0xf]
    %v499 = vld [vmem:[#allocation10 + $0x14] sm:$0xf]
    %v500 = vld [vmem:[#allocation10 + $0x18] sm:$0xf]
    %v501 = vld [vmem:[#allocation10 + $0x1c] sm:$0xf]
    %v510 = vunpack.c.l.b16 %v494
    %v511 = vunpack.c.l.b16 %v495
    %v512 = vunpack.c.l.b16 %v496
    %v513 = vunpack.c.l.b16 %v497
    %v514 = vunpack.c.l.b16 %v498
    %v515 = vunpack.c.l.b16 %v499
    %v516 = vunpack.c.l.b16 %v500
    %v517 = vunpack.c.l.b16 %v501
    %v518 = vpack.c.b16 %v511, %v510
    %v519 = vpack.c.b16 %v513, %v512
    %v520 = vpack.c.b16 %v515, %v514
    %v521 = vpack.c.b16 %v517, %v516
    %vm526 = vcmask 523264
    %v528 = vsel %vm526, %v492, 0
    %v531 = vsel %vm526, %v493, 0
    %533 = vmatprep.subr.bf16.mxu0 0
    %534 = vmatpush1.bf16.msra.mxu0 0
    %535 = vmatprep.subr.bf16.mxu0 0
    %536 = vmatpush1.bf16.msra.mxu0 0
    %537 = vmatprep.subr.bf16.mxu0 0
    %538 = vmatpush1.bf16.msra.mxu0 0
    %539 = vmatprep.subr.bf16.mxu0 0
    %540 = vmatpush1.bf16.msra.mxu0 0
    %541 = vmatprep.subr.bf16.mxu0 0
    %542 = vmatpush1.bf16.msra.mxu0 %v521
    %543 = vmatprep.subr.bf16.mxu0 0
    %544 = vmatpush1.bf16.msra.mxu0 %v520
    %545 = vmatprep.subr.bf16.mxu0 0
    %546 = vmatpush1.bf16.msra.mxu0 %v519
    %547 = vmatprep.subr.bf16.mxu0 0
    %548 = vmatpush1.bf16.msra.mxu0 %v518
    %549 = vmatprep.subr.bf16.mxu0 0
    %550 = vmatpush2.bf16.msra.mxu0 0
    %551 = vmatprep.subr.bf16.mxu0 0
    %552 = vmatpush2.bf16.msra.mxu0 0
    %553 = vmatprep.subr.bf16.mxu0 0
    %554 = vmatpush2.bf16.msra.mxu0 0
    %555 = vmatprep.subr.bf16.mxu0 0
    %556 = vmatpush2.bf16.msra.mxu0 0
    %557 = vmatprep.subr.bf16.mxu0 0
    %558 = vmatpush2.bf16.msra.mxu0 0
    %559 = vmatprep.subr.bf16.mxu0 0
    %560 = vmatpush2.bf16.msra.mxu0 0
    %561 = vmatprep.subr.bf16.mxu0 0
    %562 = vmatpush2.bf16.msra.mxu0 0
    %563 = vmatprep.subr.bf16.mxu0 0
    %564 = vmatpush2.bf16.msra.mxu0 0
    %565 = vmatprep.mubr.bf16.mxu0 0
    %566 = vmatmul.mubr.bf16.gmra.mxu0 %v528
    %v567 = vpop.f32.mrf.mxu0
    %v568 = vadd.f32 0.0, %v567
    %v569 = vpop.f32.mrf.mxu0
    %v570 = vpop.f32.mrf.mxu0
    %v571 = vadd.f32 0.0, %v570
    %v572 = vpop.f32.mrf.mxu0
    %573 = vmatprep.mubr.bf16.mxu0 0
    %574 = vmatmul.mubr.bf16.gmra.mxu0 %v531
    %v575 = vpop.f32.mrf.mxu0
    %v576 = vadd.f32 0.0, %v575
    %v577 = vpop.f32.mrf.mxu0
    %v578 = vpop.f32.mrf.mxu0
    %v579 = vadd.f32 0.0, %v578
    %v580 = vpop.f32.mrf.mxu0
    %581 = vdwg.mxu0
    %v590 = vunpack.c.l.b16 %v484
    %v591 = vunpack.c.l.b16 %v485
    %v592 = vunpack.c.l.b16 %v486
    %v593 = vunpack.c.l.b16 %v487
    %v594 = vunpack.c.l.b16 %v488
    %v595 = vunpack.c.l.b16 %v489
    %v596 = vunpack.c.l.b16 %v490
    %v597 = vunpack.c.l.b16 %v491
    %v598 = vpack.c.b16 %v591, %v590
    %v599 = vpack.c.b16 %v593, %v592
    %v600 = vpack.c.b16 %v595, %v594
    %v601 = vpack.c.b16 %v597, %v596
    %v607 = vsel %vm526, %v482, 0
    %v610 = vsel %vm526, %v483, 0
    %612 = vmatprep.subr.bf16.mxu0 0
    %613 = vmatpush1.bf16.msra.mxu0 0
    %614 = vmatprep.subr.bf16.mxu0 0
    %615 = vmatpush1.bf16.msra.mxu0 0
    %616 = vmatprep.subr.bf16.mxu0 0
    %617 = vmatpush1.bf16.msra.mxu0 0
    %618 = vmatprep.subr.bf16.mxu0 0
    %619 = vmatpush1.bf16.msra.mxu0 0
    %620 = vmatprep.subr.bf16.mxu0 0
    %621 = vmatpush1.bf16.msra.mxu0 %v601
    %622 = vmatprep.subr.bf16.mxu0 0
    %623 = vmatpush1.bf16.msra.mxu0 %v600
    %624 = vmatprep.subr.bf16.mxu0 0
    %625 = vmatpush1.bf16.msra.mxu0 %v599
    %626 = vmatprep.subr.bf16.mxu0 0
    %627 = vmatpush1.bf16.msra.mxu0 %v598
    %628 = vmatprep.subr.bf16.mxu0 0
    %629 = vmatpush2.bf16.msra.mxu0 0
    %630 = vmatprep.subr.bf16.mxu0 0
    %631 = vmatpush2.bf16.msra.mxu0 0
    %632 = vmatprep.subr.bf16.mxu0 0
    %633 = vmatpush2.bf16.msra.mxu0 0
    %634 = vmatprep.subr.bf16.mxu0 0
    %635 = vmatpush2.bf16.msra.mxu0 0
    %636 = vmatprep.subr.bf16.mxu0 0
    %637 = vmatpush2.bf16.msra.mxu0 0
    %638 = vmatprep.subr.bf16.mxu0 0
    %639 = vmatpush2.bf16.msra.mxu0 0
    %640 = vmatprep.subr.bf16.mxu0 0
    %641 = vmatpush2.bf16.msra.mxu0 0
    %642 = vmatprep.subr.bf16.mxu0 0
    %643 = vmatpush2.bf16.msra.mxu0 0
    %644 = vmatprep.mubr.bf16.mxu0 0
    %645 = vmatmul.mubr.bf16.gmra.mxu0 %v607
    %v646 = vpop.f32.mrf.mxu0
    %v647 = vadd.f32 %v568, %v646
    %v648 = vpop.f32.mrf.mxu0
    %v649 = vpop.f32.mrf.mxu0
    %v650 = vadd.f32 %v571, %v649
    %v651 = vpop.f32.mrf.mxu0
    %652 = vmatprep.mubr.bf16.mxu0 0
    %653 = vmatmul.mubr.bf16.gmra.mxu0 %v610
    %v654 = vpop.f32.mrf.mxu0
    %v655 = vadd.f32 %v576, %v654
    %v656 = vpop.f32.mrf.mxu0
    %v657 = vpop.f32.mrf.mxu0
    %v658 = vadd.f32 %v579, %v657
    %v659 = vpop.f32.mrf.mxu0
    %660 = vdwg.mxu0
    %v661 = vpack.c.bf16 %v469, %v464
    %v662 = vpack.c.bf16 %v479, %v474
    %v663 = vld [vmem:[#allocation11] sm:$0xf]
    %v664 = vld [vmem:[#allocation11 + $0x4] sm:$0xf]
    %v665 = vld [vmem:[#allocation11 + $0x8] sm:$0xf]
    %v666 = vld [vmem:[#allocation11 + $0xc] sm:$0xf]
    %v667 = vld [vmem:[#allocation11 + $0x10] sm:$0xf]
    %v668 = vld [vmem:[#allocation11 + $0x14] sm:$0xf]
    %v669 = vld [vmem:[#allocation11 + $0x18] sm:$0xf]
    %v670 = vld [vmem:[#allocation11 + $0x1c] sm:$0xf]
    %v679 = vunpack.c.l.b16 %v663
    %v680 = vunpack.c.l.b16 %v664
    %v681 = vunpack.c.l.b16 %v665
    %v682 = vunpack.c.l.b16 %v666
    %v683 = vunpack.c.l.b16 %v667
    %v684 = vunpack.c.l.b16 %v668
    %v685 = vunpack.c.l.b16 %v669
    %v686 = vunpack.c.l.b16 %v670
    %v687 = vpack.c.b16 %v680, %v679
    %v688 = vpack.c.b16 %v682, %v681
    %v689 = vpack.c.b16 %v684, %v683
    %v690 = vpack.c.b16 %v686, %v685
    %v696 = vsel %vm526, %v661, 0
    %v699 = vsel %vm526, %v662, 0
    %701 = vmatprep.subr.bf16.mxu0 0
    %702 = vmatpush1.bf16.msra.mxu0 0
    %703 = vmatprep.subr.bf16.mxu0 0
    %704 = vmatpush1.bf16.msra.mxu0 0
    %705 = vmatprep.subr.bf16.mxu0 0
    %706 = vmatpush1.bf16.msra.mxu0 0
    %707 = vmatprep.subr.bf16.mxu0 0
    %708 = vmatpush1.bf16.msra.mxu0 0
    %709 = vmatprep.subr.bf16.mxu0 0
    %710 = vmatpush1.bf16.msra.mxu0 %v690
    %711 = vmatprep.subr.bf16.mxu0 0
    %712 = vmatpush1.bf16.msra.mxu0 %v689
    %713 = vmatprep.subr.bf16.mxu0 0
    %714 = vmatpush1.bf16.msra.mxu0 %v688
    %715 = vmatprep.subr.bf16.mxu0 0
    %716 = vmatpush1.bf16.msra.mxu0 %v687
    %717 = vmatprep.subr.bf16.mxu0 0
    %718 = vmatpush2.bf16.msra.mxu0 0
    %719 = vmatprep.subr.bf16.mxu0 0
    %720 = vmatpush2.bf16.msra.mxu0 0
    %721 = vmatprep.subr.bf16.mxu0 0
    %722 = vmatpush2.bf16.msra.mxu0 0
    %723 = vmatprep.subr.bf16.mxu0 0
    %724 = vmatpush2.bf16.msra.mxu0 0
    %725 = vmatprep.subr.bf16.mxu0 0
    %726 = vmatpush2.bf16.msra.mxu0 0
    %727 = vmatprep.subr.bf16.mxu0 0
    %728 = vmatpush2.bf16.msra.mxu0 0
    %729 = vmatprep.subr.bf16.mxu0 0
    %730 = vmatpush2.bf16.msra.mxu0 0
    %731 = vmatprep.subr.bf16.mxu0 0
    %732 = vmatpush2.bf16.msra.mxu0 0
    %733 = vmatprep.mubr.bf16.mxu0 0
    %734 = vmatmul.mubr.bf16.gmra.mxu0 %v696
    %v735 = vpop.f32.mrf.mxu0
    %v736 = vadd.f32 0.0, %v735
    %v737 = vpop.f32.mrf.mxu0
    %v738 = vpop.f32.mrf.mxu0
    %v739 = vadd.f32 0.0, %v738
    %v740 = vpop.f32.mrf.mxu0
    %741 = vmatprep.mubr.bf16.mxu0 0
    %742 = vmatmul.mubr.bf16.gmra.mxu0 %v699
    %v743 = vpop.f32.mrf.mxu0
    %v744 = vadd.f32 0.0, %v743
    %v745 = vpop.f32.mrf.mxu0
    %v746 = vpop.f32.mrf.mxu0
    %v747 = vadd.f32 0.0, %v746
    %v748 = vpop.f32.mrf.mxu0
    %749 = vdwg.mxu0
    %v750 = vadd.f32 %v647, %v736
    %v751 = vadd.f32 %v650, %v739
    %v752 = vadd.f32 %v655, %v744
    %v753 = vadd.f32 %v658, %v747
    %754 = vmatprep.subr.mxu0 0.0
    %755 = vmatpush1.msra.mxu0 %v281
    %756 = vmatprep.subr.mxu0 0.0
    %757 = vmatpush1.msra.mxu0 %v280
    %758 = vmatprep.subr.mxu0 0.0
    %759 = vmatpush1.msra.mxu0 %v279
    %760 = vmatprep.subr.mxu0 0.0
    %761 = vmatpush1.msra.mxu0 %v278
    %762 = vmatprep.subr.mxu0 0.0
    %763 = vmatpush1.msra.mxu0 %v277
    %764 = vmatprep.subr.mxu0 0.0
    %765 = vmatpush1.msra.mxu0 %v276
    %766 = vmatprep.subr.mxu0 0.0
    %767 = vmatpush1.msra.mxu0 %v275
    %768 = vmatprep.subr.mxu0 0.0
    %769 = vmatpush1.msra.mxu0 %v274
    %770 = vmatprep.subr.mxu0 0.0
    %771 = vmatpush1.msra.mxu0 %v273
    %772 = vmatprep.subr.mxu0 0.0
    %773 = vmatpush1.msra.mxu0 %v272
    %774 = vmatprep.subr.mxu0 0.0
    %775 = vmatpush1.msra.mxu0 %v271
    %776 = vmatprep.subr.mxu0 0.0
    %777 = vmatpush1.msra.mxu0 %v270
    %778 = vmatprep.subr.mxu0 0.0
    %779 = vmatpush1.msra.mxu0 %v269
    %780 = vmatprep.subr.mxu0 0.0
    %781 = vmatpush1.msra.mxu0 %v268
    %782 = vmatprep.subr.mxu0 0.0
    %783 = vmatpush1.msra.mxu0 %v267
    %784 = vmatprep.subr.mxu0 0.0
    %785 = vmatpush1.msra.mxu0 %v266
    %786 = vmatprep.subr.mxu0 0.0
    %787 = vmatpush2.msra.mxu0 0.0
    %788 = vmatprep.subr.mxu0 0.0
    %789 = vmatpush2.msra.mxu0 0.0
    %790 = vmatprep.subr.mxu0 0.0
    %791 = vmatpush2.msra.mxu0 0.0
    %792 = vmatprep.subr.mxu0 0.0
    %793 = vmatpush2.msra.mxu0 0.0
    %794 = vmatprep.subr.mxu0 0.0
    %795 = vmatpush2.msra.mxu0 0.0
    %796 = vmatprep.subr.mxu0 0.0
    %797 = vmatpush2.msra.mxu0 0.0
    %798 = vmatprep.subr.mxu0 0.0
    %799 = vmatpush2.msra.mxu0 0.0
    %800 = vmatprep.subr.mxu0 0.0
    %801 = vmatpush2.msra.mxu0 0.0
    %802 = vmatprep.subr.mxu0 0.0
    %803 = vmatpush2.msra.mxu0 0.0
    %804 = vmatprep.subr.mxu0 0.0
    %805 = vmatpush2.msra.mxu0 0.0
    %806 = vmatprep.subr.mxu0 0.0
    %807 = vmatpush2.msra.mxu0 0.0
    %808 = vmatprep.subr.mxu0 0.0
    %809 = vmatpush2.msra.mxu0 0.0
    %810 = vmatprep.subr.mxu0 0.0
    %811 = vmatpush2.msra.mxu0 0.0
    %812 = vmatprep.subr.mxu0 0.0
    %813 = vmatpush2.msra.mxu0 0.0
    %814 = vmatprep.subr.mxu0 0.0
    %815 = vmatpush2.msra.mxu0 0.0
    %816 = vmatprep.subr.mxu0 0.0
    %817 = vmatpush2.msra.mxu0 0.0
    %818 = vmatprep.mubr.f32.mxu0 0.0
    %819 = vmatmul.mubr.f32.gmra.mxu0 %v750
    %v820 = vpop.f32.mrf.mxu0
    %v821 = vadd.f32 0.0, %v820
    %v822 = vpop.f32.mrf.mxu0
    %823 = vmatprep.mubr.f32.mxu0 0.0
    %824 = vmatmul.mubr.f32.gmra.mxu0 %v751
    %v825 = vpop.f32.mrf.mxu0
    %v826 = vadd.f32 0.0, %v825
    %v827 = vpop.f32.mrf.mxu0
    %828 = vmatprep.mubr.f32.mxu0 0.0
    %829 = vmatmul.mubr.f32.gmra.mxu0 %v752
    %v830 = vpop.f32.mrf.mxu0
    %v831 = vadd.f32 0.0, %v830
    %v832 = vpop.f32.mrf.mxu0
    %833 = vmatprep.mubr.f32.mxu0 0.0
    %834 = vmatmul.mubr.f32.gmra.mxu0 %v753
    %v835 = vpop.f32.mrf.mxu0
    %v836 = vadd.f32 0.0, %v835
    %v837 = vpop.f32.mrf.mxu0
    %838 = vdwg.mxu0
    %v839 = vmul.f32 %v750, %v750
    %v840 = vmul.f32 %v751, %v751
    %v841 = vmul.f32 %v752, %v752
    %v842 = vmul.f32 %v753, %v753
    %843 = vmatprep.subr.mxu0 0.0
    %844 = vmatpush1.msra.mxu0 %v281
    %845 = vmatprep.subr.mxu0 0.0
    %846 = vmatpush1.msra.mxu0 %v280
    %847 = vmatprep.subr.mxu0 0.0
    %848 = vmatpush1.msra.mxu0 %v279
    %849 = vmatprep.subr.mxu0 0.0
    %850 = vmatpush1.msra.mxu0 %v278
    %851 = vmatprep.subr.mxu0 0.0
    %852 = vmatpush1.msra.mxu0 %v277
    %853 = vmatprep.subr.mxu0 0.0
    %854 = vmatpush1.msra.mxu0 %v276
    %855 = vmatprep.subr.mxu0 0.0
    %856 = vmatpush1.msra.mxu0 %v275
    %857 = vmatprep.subr.mxu0 0.0
    %858 = vmatpush1.msra.mxu0 %v274
    %859 = vmatprep.subr.mxu0 0.0
    %860 = vmatpush1.msra.mxu0 %v273
    %861 = vmatprep.subr.mxu0 0.0
    %862 = vmatpush1.msra.mxu0 %v272
    %863 = vmatprep.subr.mxu0 0.0
    %864 = vmatpush1.msra.mxu0 %v271
    %865 = vmatprep.subr.mxu0 0.0
    %866 = vmatpush1.msra.mxu0 %v270
    %867 = vmatprep.subr.mxu0 0.0
    %868 = vmatpush1.msra.mxu0 %v269
    %869 = vmatprep.subr.mxu0 0.0
    %870 = vmatpush1.msra.mxu0 %v268
    %871 = vmatprep.subr.mxu0 0.0
    %872 = vmatpush1.msra.mxu0 %v267
    %873 = vmatprep.subr.mxu0 0.0
    %874 = vmatpush1.msra.mxu0 %v266
    %875 = vmatprep.subr.mxu0 0.0
    %876 = vmatpush2.msra.mxu0 0.0
    %877 = vmatprep.subr.mxu0 0.0
    %878 = vmatpush2.msra.mxu0 0.0
    %879 = vmatprep.subr.mxu0 0.0
    %880 = vmatpush2.msra.mxu0 0.0
    %881 = vmatprep.subr.mxu0 0.0
    %882 = vmatpush2.msra.mxu0 0.0
    %883 = vmatprep.subr.mxu0 0.0
    %884 = vmatpush2.msra.mxu0 0.0
    %885 = vmatprep.subr.mxu0 0.0
    %886 = vmatpush2.msra.mxu0 0.0
    %887 = vmatprep.subr.mxu0 0.0
    %888 = vmatpush2.msra.mxu0 0.0
    %889 = vmatprep.subr.mxu0 0.0
    %890 = vmatpush2.msra.mxu0 0.0
    %891 = vmatprep.subr.mxu0 0.0
    %892 = vmatpush2.msra.mxu0 0.0
    %893 = vmatprep.subr.mxu0 0.0
    %894 = vmatpush2.msra.mxu0 0.0
    %895 = vmatprep.subr.mxu0 0.0
    %896 = vmatpush2.msra.mxu0 0.0
    %897 = vmatprep.subr.mxu0 0.0
    %898 = vmatpush2.msra.mxu0 0.0
    %899 = vmatprep.subr.mxu0 0.0
    %900 = vmatpush2.msra.mxu0 0.0
    %901 = vmatprep.subr.mxu0 0.0
    %902 = vmatpush2.msra.mxu0 0.0
    %903 = vmatprep.subr.mxu0 0.0
    %904 = vmatpush2.msra.mxu0 0.0
    %905 = vmatprep.subr.mxu0 0.0
    %906 = vmatpush2.msra.mxu0 0.0
    %907 = vmatprep.mubr.f32.mxu0 0.0
    %908 = vmatmul.mubr.f32.gmra.mxu0 %v839
    %v909 = vpop.f32.mrf.mxu0
    %v910 = vadd.f32 0.0, %v909
    %v911 = vpop.f32.mrf.mxu0
    %912 = vmatprep.mubr.f32.mxu0 0.0
    %913 = vmatmul.mubr.f32.gmra.mxu0 %v840
    %v914 = vpop.f32.mrf.mxu0
    %v915 = vadd.f32 0.0, %v914
    %v916 = vpop.f32.mrf.mxu0
    %917 = vmatprep.mubr.f32.mxu0 0.0
    %918 = vmatmul.mubr.f32.gmra.mxu0 %v841
    %v919 = vpop.f32.mrf.mxu0
    %v920 = vadd.f32 0.0, %v919
    %v921 = vpop.f32.mrf.mxu0
    %922 = vmatprep.mubr.f32.mxu0 0.0
    %923 = vmatmul.mubr.f32.gmra.mxu0 %v842
    %v924 = vpop.f32.mrf.mxu0
    %v925 = vadd.f32 0.0, %v924
    %v926 = vpop.f32.mrf.mxu0
    %927 = vdwg.mxu0
    %vm928 = vcmask 64512
    %v929 = vsel %vm928, %v821, 0.0
    %v930 = vsel %vm928, %v826, 0.0
    %v931 = vadd.f32 %v929, %v930
    %v932 = vsel %vm928, %v831, 0.0
    %v933 = vadd.f32 %v931, %v932
    %v934 = vsel %vm928, %v836, 0.0
    %v935 = vadd.f32 %v933, %v934
    %v936 = vrot.slane %v935, 4
    %v937 = vadd.f32 %v935, %v936
    %v938 = vrot.slane %v937, 2
    %v939 = vadd.f32 %v937, %v938
    %v940 = vrot.slane %v939, 1
    %v941 = vadd.f32 %v939, %v940
    %v942 = vsel %vm928, %v910, 0.0
    %v943 = vsel %vm928, %v915, 0.0
    %v944 = vadd.f32 %v942, %v943
    %v945 = vsel %vm928, %v920, 0.0
    %v946 = vadd.f32 %v944, %v945
    %v947 = vsel %vm928, %v925, 0.0
    %v948 = vadd.f32 %v946, %v947
    %v949 = vrot.slane %v948, 4
    %v950 = vadd.f32 %v948, %v949
    %v951 = vrot.slane %v950, 2
    %v952 = vadd.f32 %v950, %v951
    %v953 = vrot.slane %v952, 1
    %v954 = vadd.f32 %v952, %v953
    %v955 = vmul.f32 %v941, 0.001953125
    %v956 = vmul.f32 %v954, 0.001953125
    %v957 = vmul.f32 %v955, %v955
    %v958 = vsub.f32 %v956, %v957
    %v959 = vmax.f32 %v958, 0.0
    %v960 = vld [vmem:[%s8] sm:$0x1]
    %v961 = vadd.f32 %v959, 1e-05
    %v962 = vrsqrt.pop %v961
    %v963 = vmul.f32 %v960, %v962
    %v964 = vld [vmem:[%s9] sm:$0x1]
    %v965 = vmul.f32 %v955, %v963
    %v966 = vsub.f32 %v964, %v965
    %v968 = vsel %vm928, %v963, 0
    %970 = vmatprep.subr.mxu0 0.0
    %971 = vmatpush1.msra.mxu0 0.0
    %972 = vmatprep.subr.mxu0 0.0
    %973 = vmatpush1.msra.mxu0 0.0
    %974 = vmatprep.subr.mxu0 0.0
    %975 = vmatpush1.msra.mxu0 0.0
    %976 = vmatprep.subr.mxu0 0.0
    %977 = vmatpush1.msra.mxu0 0.0
    %978 = vmatprep.subr.mxu0 0.0
    %979 = vmatpush1.msra.mxu0 0.0
    %980 = vmatprep.subr.mxu0 0.0
    %981 = vmatpush1.msra.mxu0 0.0
    %982 = vmatprep.subr.mxu0 0.0
    %983 = vmatpush1.msra.mxu0 0.0
    %984 = vmatprep.subr.mxu0 0.0
    %985 = vmatpush1.msra.mxu0 0.0
    %986 = vmatprep.subr.mxu0 0.0
    %987 = vmatpush1.msra.mxu0 0.0
    %988 = vmatprep.subr.mxu0 0.0
    %989 = vmatpush1.msra.mxu0 0.0
    %990 = vmatprep.subr.mxu0 0.0
    %991 = vmatpush1.msra.mxu0 0.0
    %992 = vmatprep.subr.mxu0 0.0
    %993 = vmatpush1.msra.mxu0 0.0
    %994 = vmatprep.subr.mxu0 0.0
    %995 = vmatpush1.msra.mxu0 0.0
    %996 = vmatprep.subr.mxu0 0.0
    %997 = vmatpush1.msra.mxu0 0.0
    %998 = vmatprep.subr.mxu0 0.0
    %999 = vmatpush1.msra.mxu0 0.0
    %1000 = vmatprep.subr.mxu0 0.0
    %1001 = vmatpush1.msra.mxu0 %v282
    %1002 = vmatprep.subr.mxu0 0.0
    %1003 = vmatpush2.msra.mxu0 0.0
    %1004 = vmatprep.subr.mxu0 0.0
    %1005 = vmatpush2.msra.mxu0 0.0
    %1006 = vmatprep.subr.mxu0 0.0
    %1007 = vmatpush2.msra.mxu0 0.0
    %1008 = vmatprep.subr.mxu0 0.0
    %1009 = vmatpush2.msra.mxu0 0.0
    %1010 = vmatprep.subr.mxu0 0.0
    %1011 = vmatpush2.msra.mxu0 0.0
    %1012 = vmatprep.subr.mxu0 0.0
    %1013 = vmatpush2.msra.mxu0 0.0
    %1014 = vmatprep.subr.mxu0 0.0
    %1015 = vmatpush2.msra.mxu0 0.0
    %1016 = vmatprep.subr.mxu0 0.0
    %1017 = vmatpush2.msra.mxu0 0.0
    %1018 = vmatprep.subr.mxu0 0.0
    %1019 = vmatpush2.msra.mxu0 0.0
    %1020 = vmatprep.subr.mxu0 0.0
    %1021 = vmatpush2.msra.mxu0 0.0
    %1022 = vmatprep.subr.mxu0 0.0
    %1023 = vmatpush2.msra.mxu0 0.0
    %1024 = vmatprep.subr.mxu0 0.0
    %1025 = vmatpush2.msra.mxu0 0.0
    %1026 = vmatprep.subr.mxu0 0.0
    %1027 = vmatpush2.msra.mxu0 0.0
    %1028 = vmatprep.subr.mxu0 0.0
    %1029 = vmatpush2.msra.mxu0 0.0
    %1030 = vmatprep.subr.mxu0 0.0
    %1031 = vmatpush2.msra.mxu0 0.0
    %1032 = vmatprep.subr.mxu0 0.0
    %1033 = vmatpush2.msra.mxu0 0.0
    %1034 = vmatprep.mubr.f32.mxu0 0.0
    %1035 = vmatmul.mubr.f32.gmra.mxu0 %v968
    %v1036 = vpop.f32.mrf.mxu0
    %v1037 = vadd.f32 0.0, %v1036
    %v1038 = vpop.f32.mrf.mxu0
    %1039 = vdwg.mxu0
    %v1041 = vsel %vm928, %v966, 0
    %1043 = vmatprep.subr.mxu0 0.0
    %1044 = vmatpush1.msra.mxu0 0.0
    %1045 = vmatprep.subr.mxu0 0.0
    %1046 = vmatpush1.msra.mxu0 0.0
    %1047 = vmatprep.subr.mxu0 0.0
    %1048 = vmatpush1.msra.mxu0 0.0
    %1049 = vmatprep.subr.mxu0 0.0
    %1050 = vmatpush1.msra.mxu0 0.0
    %1051 = vmatprep.subr.mxu0 0.0
    %1052 = vmatpush1.msra.mxu0 0.0
    %1053 = vmatprep.subr.mxu0 0.0
    %1054 = vmatpush1.msra.mxu0 0.0
    %1055 = vmatprep.subr.mxu0 0.0
    %1056 = vmatpush1.msra.mxu0 0.0
    %1057 = vmatprep.subr.mxu0 0.0
    %1058 = vmatpush1.msra.mxu0 0.0
    %1059 = vmatprep.subr.mxu0 0.0
    %1060 = vmatpush1.msra.mxu0 0.0
    %1061 = vmatprep.subr.mxu0 0.0
    %1062 = vmatpush1.msra.mxu0 0.0
    %1063 = vmatprep.subr.mxu0 0.0
    %1064 = vmatpush1.msra.mxu0 0.0
    %1065 = vmatprep.subr.mxu0 0.0
    %1066 = vmatpush1.msra.mxu0 0.0
    %1067 = vmatprep.subr.mxu0 0.0
    %1068 = vmatpush1.msra.mxu0 0.0
    %1069 = vmatprep.subr.mxu0 0.0
    %1070 = vmatpush1.msra.mxu0 0.0
    %1071 = vmatprep.subr.mxu0 0.0
    %1072 = vmatpush1.msra.mxu0 0.0
    %1073 = vmatprep.subr.mxu0 0.0
    %1074 = vmatpush1.msra.mxu0 %v282
    %1075 = vmatprep.subr.mxu0 0.0
    %1076 = vmatpush2.msra.mxu0 0.0
    %1077 = vmatprep.subr.mxu0 0.0
    %1078 = vmatpush2.msra.mxu0 0.0
    %1079 = vmatprep.subr.mxu0 0.0
    %1080 = vmatpush2.msra.mxu0 0.0
    %1081 = vmatprep.subr.mxu0 0.0
    %1082 = vmatpush2.msra.mxu0 0.0
    %1083 = vmatprep.subr.mxu0 0.0
    %1084 = vmatpush2.msra.mxu0 0.0
    %1085 = vmatprep.subr.mxu0 0.0
    %1086 = vmatpush2.msra.mxu0 0.0
    %1087 = vmatprep.subr.mxu0 0.0
    %1088 = vmatpush2.msra.mxu0 0.0
    %1089 = vmatprep.subr.mxu0 0.0
    %1090 = vmatpush2.msra.mxu0 0.0
    %1091 = vmatprep.subr.mxu0 0.0
    %1092 = vmatpush2.msra.mxu0 0.0
    %1093 = vmatprep.subr.mxu0 0.0
    %1094 = vmatpush2.msra.mxu0 0.0
    %1095 = vmatprep.subr.mxu0 0.0
    %1096 = vmatpush2.msra.mxu0 0.0
    %1097 = vmatprep.subr.mxu0 0.0
    %1098 = vmatpush2.msra.mxu0 0.0
    %1099 = vmatprep.subr.mxu0 0.0
    %1100 = vmatpush2.msra.mxu0 0.0
    %1101 = vmatprep.subr.mxu0 0.0
    %1102 = vmatpush2.msra.mxu0 0.0
    %1103 = vmatprep.subr.mxu0 0.0
    %1104 = vmatpush2.msra.mxu0 0.0
    %1105 = vmatprep.subr.mxu0 0.0
    %1106 = vmatpush2.msra.mxu0 0.0
    %1107 = vmatprep.mubr.f32.mxu0 0.0
    %1108 = vmatmul.mubr.f32.gmra.mxu0 %v1041
    %v1109 = vpop.f32.mrf.mxu0
    %v1110 = vadd.f32 0.0, %v1109
    %v1111 = vpop.f32.mrf.mxu0
    %1112 = vdwg.mxu0
    %v1113 = vlaneseq
    %v1114 = vshrl.u32 %v1113, 7
    %v1115 = vsub.s32 0, %v1114
    %v1116 = vrot.slane %v1037, %v1115
    %v1117 = vmul.f32 %v750, %v1116
    %v1118 = vmul.f32 %v751, %v1116
    %v1119 = vmul.f32 %v752, %v1116
    %v1120 = vmul.f32 %v753, %v1116
    %v1121 = vlaneseq
    %v1122 = vshrl.u32 %v1121, 7
    %v1123 = vsub.s32 0, %v1122
    %v1124 = vrot.slane %v1110, %v1123
    %v1125 = vadd.f32 %v1117, %v1124
    %v1126 = vadd.f32 %v1118, %v1124
    %v1127 = vadd.f32 %v1119, %v1124
    %v1128 = vadd.f32 %v1120, %v1124
    %v1129 = vmax.f32 %v1125, 0.0
    %v1130 = vmax.f32 %v1126, 0.0
    %v1131 = vmax.f32 %v1127, 0.0
    %v1132 = vmax.f32 %v1128, 0.0
    %1133 = vmatprep.subr.mxu0 0.0
    %1134 = vmatpush1.msra.mxu0 0.0
    %1135 = vmatprep.subr.mxu0 0.0
    %1136 = vmatpush1.msra.mxu0 0.0
    %1137 = vmatprep.subr.mxu0 0.0
    %1138 = vmatpush1.msra.mxu0 0.0
    %1139 = vmatprep.subr.mxu0 0.0
    %1140 = vmatpush1.msra.mxu0 0.0
    %1141 = vmatprep.subr.mxu0 0.0
    %1142 = vmatpush1.msra.mxu0 0.0
    %1143 = vmatprep.subr.mxu0 0.0
    %1144 = vmatpush1.msra.mxu0 0.0
    %1145 = vmatprep.subr.mxu0 0.0
    %1146 = vmatpush1.msra.mxu0 0.0
    %1147 = vmatprep.subr.mxu0 0.0
    %1148 = vmatpush1.msra.mxu0 0.0
    %1149 = vmatprep.subr.mxu0 0.0
    %1150 = vmatpush1.msra.mxu0 0.0
    %1151 = vmatprep.subr.mxu0 0.0
    %1152 = vmatpush1.msra.mxu0 0.0
    %1153 = vmatprep.subr.mxu0 0.0
    %1154 = vmatpush1.msra.mxu0 0.0
    %1155 = vmatprep.subr.mxu0 0.0
    %1156 = vmatpush1.msra.mxu0 0.0
    %1157 = vmatprep.subr.mxu0 0.0
    %1158 = vmatpush1.msra.mxu0 %v1132
    %1159 = vmatprep.subr.mxu0 0.0
    %1160 = vmatpush1.msra.mxu0 %v1131
    %1161 = vmatprep.subr.mxu0 0.0
    %1162 = vmatpush1.msra.mxu0 %v1130
    %1163 = vmatprep.subr.mxu0 0.0
    %1164 = vmatpush1.msra.mxu0 %v1129
    %1165 = vmatprep.subr.mxu0 0.0
    %1166 = vmatpush2.msra.mxu0 0.0
    %1167 = vmatprep.subr.mxu0 0.0
    %1168 = vmatpush2.msra.mxu0 0.0
    %1169 = vmatprep.subr.mxu0 0.0
    %1170 = vmatpush2.msra.mxu0 0.0
    %1171 = vmatprep.subr.mxu0 0.0
    %1172 = vmatpush2.msra.mxu0 0.0
    %1173 = vmatprep.subr.mxu0 0.0
    %1174 = vmatpush2.msra.mxu0 0.0
    %1175 = vmatprep.subr.mxu0 0.0
    %1176 = vmatpush2.msra.mxu0 0.0
    %1177 = vmatprep.subr.mxu0 0.0
    %1178 = vmatpush2.msra.mxu0 0.0
    %1179 = vmatprep.subr.mxu0 0.0
    %1180 = vmatpush2.msra.mxu0 0.0
    %1181 = vmatprep.subr.mxu0 0.0
    %1182 = vmatpush2.msra.mxu0 0.0
    %1183 = vmatprep.subr.mxu0 0.0
    %1184 = vmatpush2.msra.mxu0 0.0
    %1185 = vmatprep.subr.mxu0 0.0
    %1186 = vmatpush2.msra.mxu0 0.0
    %1187 = vmatprep.subr.mxu0 0.0
    %1188 = vmatpush2.msra.mxu0 0.0
    %1189 = vmatprep.subr.mxu0 0.0
    %1190 = vmatpush2.msra.mxu0 0.0
    %1191 = vmatprep.subr.mxu0 0.0
    %1192 = vmatpush2.msra.mxu0 0.0
    %1193 = vmatprep.subr.mxu0 0.0
    %1194 = vmatpush2.msra.mxu0 0.0
    %1195 = vmatprep.subr.mxu0 0.0
    %1196 = vmatpush2.msra.mxu0 0.0
    %1197 = vmatprep.mubr.f32.mxu0 0.0
    %1198 = vmatmul.mubr.f32.gmra.mxu0 %v289
    %v1199 = vpop.f32.mrf.mxu0
    %v1200 = vadd.f32 0.0, %v1199
    %v1201 = vpop.f32.mrf.mxu0
    %1202 = vmatprep.mubr.f32.mxu0 0.0
    %1203 = vmatmul.mubr.f32.gmra.mxu0 %v292
    %v1204 = vpop.f32.mrf.mxu0
    %v1205 = vadd.f32 0.0, %v1204
    %v1206 = vpop.f32.mrf.mxu0
    %1207 = vmatprep.mubr.f32.mxu0 0.0
    %1208 = vmatmul.mubr.f32.gmra.mxu0 %v295
    %v1209 = vpop.f32.mrf.mxu0
    %v1210 = vadd.f32 0.0, %v1209
    %v1211 = vpop.f32.mrf.mxu0
    %1212 = vmatprep.mubr.f32.mxu0 0.0
    %1213 = vmatmul.mubr.f32.gmra.mxu0 %v298
    %v1214 = vpop.f32.mrf.mxu0
    %v1215 = vadd.f32 0.0, %v1214
    %v1216 = vpop.f32.mrf.mxu0
    %1217 = vdwg.mxu0
    %1218 = vmatprep.subr.mxu0 0.0
    %1219 = vmatpush1.msra.mxu0 0.0
    %1220 = vmatprep.subr.mxu0 0.0
    %1221 = vmatpush1.msra.mxu0 0.0
    %1222 = vmatprep.subr.mxu0 0.0
    %1223 = vmatpush1.msra.mxu0 0.0
    %1224 = vmatprep.subr.mxu0 0.0
    %1225 = vmatpush1.msra.mxu0 0.0
    %1226 = vmatprep.subr.mxu0 0.0
    %1227 = vmatpush1.msra.mxu0 0.0
    %1228 = vmatprep.subr.mxu0 0.0
    %1229 = vmatpush1.msra.mxu0 0.0
    %1230 = vmatprep.subr.mxu0 0.0
    %1231 = vmatpush1.msra.mxu0 0.0
    %1232 = vmatprep.subr.mxu0 0.0
    %1233 = vmatpush1.msra.mxu0 0.0
    %1234 = vmatprep.subr.mxu0 0.0
    %1235 = vmatpush1.msra.mxu0 0.0
    %1236 = vmatprep.subr.mxu0 0.0
    %1237 = vmatpush1.msra.mxu0 0.0
    %1238 = vmatprep.subr.mxu0 0.0
    %1239 = vmatpush1.msra.mxu0 0.0
    %1240 = vmatprep.subr.mxu0 0.0
    %1241 = vmatpush1.msra.mxu0 0.0
    %1242 = vmatprep.subr.mxu0 0.0
    %1243 = vmatpush1.msra.mxu0 %v1132
    %1244 = vmatprep.subr.mxu0 0.0
    %1245 = vmatpush1.msra.mxu0 %v1131
    %1246 = vmatprep.subr.mxu0 0.0
    %1247 = vmatpush1.msra.mxu0 %v1130
    %1248 = vmatprep.subr.mxu0 0.0
    %1249 = vmatpush1.msra.mxu0 %v1129
    %1250 = vmatprep.subr.mxu0 0.0
    %1251 = vmatpush2.msra.mxu0 0.0
    %1252 = vmatprep.subr.mxu0 0.0
    %1253 = vmatpush2.msra.mxu0 0.0
    %1254 = vmatprep.subr.mxu0 0.0
    %1255 = vmatpush2.msra.mxu0 0.0
    %1256 = vmatprep.subr.mxu0 0.0
    %1257 = vmatpush2.msra.mxu0 0.0
    %1258 = vmatprep.subr.mxu0 0.0
    %1259 = vmatpush2.msra.mxu0 0.0
    %1260 = vmatprep.subr.mxu0 0.0
    %1261 = vmatpush2.msra.mxu0 0.0
    %1262 = vmatprep.subr.mxu0 0.0
    %1263 = vmatpush2.msra.mxu0 0.0
    %1264 = vmatprep.subr.mxu0 0.0
    %1265 = vmatpush2.msra.mxu0 0.0
    %1266 = vmatprep.subr.mxu0 0.0
    %1267 = vmatpush2.msra.mxu0 0.0
    %1268 = vmatprep.subr.mxu0 0.0
    %1269 = vmatpush2.msra.mxu0 0.0
    %1270 = vmatprep.subr.mxu0 0.0
    %1271 = vmatpush2.msra.mxu0 0.0
    %1272 = vmatprep.subr.mxu0 0.0
    %1273 = vmatpush2.msra.mxu0 0.0
    %1274 = vmatprep.subr.mxu0 0.0
    %1275 = vmatpush2.msra.mxu0 0.0
    %1276 = vmatprep.subr.mxu0 0.0
    %1277 = vmatpush2.msra.mxu0 0.0
    %1278 = vmatprep.subr.mxu0 0.0
    %1279 = vmatpush2.msra.mxu0 0.0
    %1280 = vmatprep.subr.mxu0 0.0
    %1281 = vmatpush2.msra.mxu0 0.0
    %1282 = vmatprep.mubr.f32.mxu0 0.0
    %1283 = vmatmul.mubr.f32.gmra.mxu0 %v386
    %v1284 = vpop.f32.mrf.mxu0
    %v1285 = vadd.f32 0.0, %v1284
    %v1286 = vpop.f32.mrf.mxu0
    %1287 = vmatprep.mubr.f32.mxu0 0.0
    %1288 = vmatmul.mubr.f32.gmra.mxu0 %v389
    %v1289 = vpop.f32.mrf.mxu0
    %v1290 = vadd.f32 0.0, %v1289
    %v1291 = vpop.f32.mrf.mxu0
    %1292 = vmatprep.mubr.f32.mxu0 0.0
    %1293 = vmatmul.mubr.f32.gmra.mxu0 %v392
    %v1294 = vpop.f32.mrf.mxu0
    %v1295 = vadd.f32 0.0, %v1294
    %v1296 = vpop.f32.mrf.mxu0
    %1297 = vmatprep.mubr.f32.mxu0 0.0
    %1298 = vmatmul.mubr.f32.gmra.mxu0 %v395
    %v1299 = vpop.f32.mrf.mxu0
    %v1300 = vadd.f32 0.0, %v1299
    %v1301 = vpop.f32.mrf.mxu0
    %1302 = vdwg.mxu0
    %v1303 = vpack.c.bf16 %v1205, %v1200
    %v1304 = vpack.c.bf16 %v1215, %v1210
    %v1305 = vld [vmem:[%s10] sm:$0xf]
    %v1306 = vld [vmem:[%s10 + $0x4] sm:$0xf]
    %v1307 = vld [vmem:[%s10 + $0x8] sm:$0xf]
    %v1308 = vld [vmem:[%s10 + $0xc] sm:$0xf]
    %v1309 = vld [vmem:[%s10 + $0x10] sm:$0xf]
    %v1310 = vld [vmem:[%s10 + $0x14] sm:$0xf]
    %v1311 = vld [vmem:[%s10 + $0x18] sm:$0xf]
    %v1312 = vld [vmem:[%s10 + $0x1c] sm:$0xf]
    %v1313 = vld [vmem:[%s10 + $0x20] sm:$0xf]
    %v1314 = vld [vmem:[%s10 + $0x24] sm:$0xf]
    %v1315 = vld [vmem:[%s10 + $0x28] sm:$0xf]
    %v1316 = vld [vmem:[%s10 + $0x2c] sm:$0xf]
    %v1317 = vld [vmem:[%s10 + $0x30] sm:$0xf]
    %v1318 = vld [vmem:[%s10 + $0x34] sm:$0xf]
    %v1319 = vld [vmem:[%s10 + $0x38] sm:$0xf]
    %v1320 = vld [vmem:[%s10 + $0x3c] sm:$0xf]
    %v1321 = vpack.c.bf16 %v1130, %v1129
    %v1322 = vpack.c.bf16 %v1132, %v1131
    %v1323 = vld [vmem:[%s11] sm:$0xf]
    %v1324 = vld [vmem:[%s11 + $0x4] sm:$0xf]
    %v1325 = vld [vmem:[%s11 + $0x8] sm:$0xf]
    %v1326 = vld [vmem:[%s11 + $0xc] sm:$0xf]
    %v1327 = vld [vmem:[%s11 + $0x10] sm:$0xf]
    %v1328 = vld [vmem:[%s11 + $0x14] sm:$0xf]
    %v1329 = vld [vmem:[%s11 + $0x18] sm:$0xf]
    %v1330 = vld [vmem:[%s11 + $0x1c] sm:$0xf]
    %v1331 = vld [vmem:[%s11 + $0x20] sm:$0xf]
    %v1332 = vld [vmem:[%s11 + $0x24] sm:$0xf]
    %v1333 = vld [vmem:[%s11 + $0x28] sm:$0xf]
    %v1334 = vld [vmem:[%s11 + $0x2c] sm:$0xf]
    %v1335 = vld [vmem:[%s11 + $0x30] sm:$0xf]
    %v1336 = vld [vmem:[%s11 + $0x34] sm:$0xf]
    %v1337 = vld [vmem:[%s11 + $0x38] sm:$0xf]
    %v1338 = vld [vmem:[%s11 + $0x3c] sm:$0xf]
    %v1355 = vunpack.c.l.b16 %v1323
    %v1356 = vunpack.c.l.b16 %v1324
    %v1357 = vunpack.c.l.b16 %v1325
    %v1358 = vunpack.c.l.b16 %v1326
    %v1359 = vunpack.c.l.b16 %v1327
    %v1360 = vunpack.c.l.b16 %v1328
    %v1361 = vunpack.c.l.b16 %v1329
    %v1362 = vunpack.c.l.b16 %v1330
    %v1363 = vunpack.c.l.b16 %v1331
    %v1364 = vunpack.c.l.b16 %v1332
    %v1365 = vunpack.c.l.b16 %v1333
    %v1366 = vunpack.c.l.b16 %v1334
    %v1367 = vunpack.c.l.b16 %v1335
    %v1368 = vunpack.c.l.b16 %v1336
    %v1369 = vunpack.c.l.b16 %v1337
    %v1370 = vunpack.c.l.b16 %v1338
    %v1371 = vpack.c.b16 %v1356, %v1355
    %v1372 = vpack.c.b16 %v1358, %v1357
    %v1373 = vpack.c.b16 %v1360, %v1359
    %v1374 = vpack.c.b16 %v1362, %v1361
    %v1375 = vpack.c.b16 %v1364, %v1363
    %v1376 = vpack.c.b16 %v1366, %v1365
    %v1377 = vpack.c.b16 %v1368, %v1367
    %v1378 = vpack.c.b16 %v1370, %v1369
    %1387 = vmatprep.subr.bf16.mxu0 0
    %1388 = vmatpush1.bf16.msra.mxu0 %v1378
    %1389 = vmatprep.subr.bf16.mxu0 0
    %1390 = vmatpush1.bf16.msra.mxu0 %v1377
    %1391 = vmatprep.subr.bf16.mxu0 0
    %1392 = vmatpush1.bf16.msra.mxu0 %v1376
    %1393 = vmatprep.subr.bf16.mxu0 0
    %1394 = vmatpush1.bf16.msra.mxu0 %v1375
    %1395 = vmatprep.subr.bf16.mxu0 0
    %1396 = vmatpush1.bf16.msra.mxu0 %v1374
    %1397 = vmatprep.subr.bf16.mxu0 0
    %1398 = vmatpush1.bf16.msra.mxu0 %v1373
    %1399 = vmatprep.subr.bf16.mxu0 0
    %1400 = vmatpush1.bf16.msra.mxu0 %v1372
    %1401 = vmatprep.subr.bf16.mxu0 0
    %1402 = vmatpush1.bf16.msra.mxu0 %v1371
    %1403 = vmatprep.subr.bf16.mxu0 0
    %1404 = vmatpush2.bf16.msra.mxu0 0
    %1405 = vmatprep.subr.bf16.mxu0 0
    %1406 = vmatpush2.bf16.msra.mxu0 0
    %1407 = vmatprep.subr.bf16.mxu0 0
    %1408 = vmatpush2.bf16.msra.mxu0 0
    %1409 = vmatprep.subr.bf16.mxu0 0
    %1410 = vmatpush2.bf16.msra.mxu0 0
    %1411 = vmatprep.subr.bf16.mxu0 0
    %1412 = vmatpush2.bf16.msra.mxu0 0
    %1413 = vmatprep.subr.bf16.mxu0 0
    %1414 = vmatpush2.bf16.msra.mxu0 0
    %1415 = vmatprep.subr.bf16.mxu0 0
    %1416 = vmatpush2.bf16.msra.mxu0 0
    %1417 = vmatprep.subr.bf16.mxu0 0
    %1418 = vmatpush2.bf16.msra.mxu0 0
    %1419 = vmatprep.mubr.bf16.mxu0 0
    %1420 = vmatmul.mubr.bf16.gmra.mxu0 %v1321
    %v1421 = vpop.f32.mrf.mxu0
    %v1422 = vadd.f32 0.0, %v1421
    %v1423 = vpop.f32.mrf.mxu0
    %v1424 = vpop.f32.mrf.mxu0
    %v1425 = vadd.f32 0.0, %v1424
    %v1426 = vpop.f32.mrf.mxu0
    %1427 = vmatprep.mubr.bf16.mxu0 0
    %1428 = vmatmul.mubr.bf16.gmra.mxu0 %v1322
    %v1429 = vpop.f32.mrf.mxu0
    %v1430 = vadd.f32 0.0, %v1429
    %v1431 = vpop.f32.mrf.mxu0
    %v1432 = vpop.f32.mrf.mxu0
    %v1433 = vadd.f32 0.0, %v1432
    %v1434 = vpop.f32.mrf.mxu0
    %1435 = vdwg.mxu0
    %v1452 = vunpack.c.l.b16 %v1305
    %v1453 = vunpack.c.l.b16 %v1306
    %v1454 = vunpack.c.l.b16 %v1307
    %v1455 = vunpack.c.l.b16 %v1308
    %v1456 = vunpack.c.l.b16 %v1309
    %v1457 = vunpack.c.l.b16 %v1310
    %v1458 = vunpack.c.l.b16 %v1311
    %v1459 = vunpack.c.l.b16 %v1312
    %v1460 = vunpack.c.l.b16 %v1313
    %v1461 = vunpack.c.l.b16 %v1314
    %v1462 = vunpack.c.l.b16 %v1315
    %v1463 = vunpack.c.l.b16 %v1316
    %v1464 = vunpack.c.l.b16 %v1317
    %v1465 = vunpack.c.l.b16 %v1318
    %v1466 = vunpack.c.l.b16 %v1319
    %v1467 = vunpack.c.l.b16 %v1320
    %v1468 = vpack.c.b16 %v1453, %v1452
    %v1469 = vpack.c.b16 %v1455, %v1454
    %v1470 = vpack.c.b16 %v1457, %v1456
    %v1471 = vpack.c.b16 %v1459, %v1458
    %v1472 = vpack.c.b16 %v1461, %v1460
    %v1473 = vpack.c.b16 %v1463, %v1462
    %v1474 = vpack.c.b16 %v1465, %v1464
    %v1475 = vpack.c.b16 %v1467, %v1466
    %1484 = vmatprep.subr.bf16.mxu0 0
    %1485 = vmatpush1.bf16.msra.mxu0 %v1475
    %1486 = vmatprep.subr.bf16.mxu0 0
    %1487 = vmatpush1.bf16.msra.mxu0 %v1474
    %1488 = vmatprep.subr.bf16.mxu0 0
    %1489 = vmatpush1.bf16.msra.mxu0 %v1473
    %1490 = vmatprep.subr.bf16.mxu0 0
    %1491 = vmatpush1.bf16.msra.mxu0 %v1472
    %1492 = vmatprep.subr.bf16.mxu0 0
    %1493 = vmatpush1.bf16.msra.mxu0 %v1471
    %1494 = vmatprep.subr.bf16.mxu0 0
    %1495 = vmatpush1.bf16.msra.mxu0 %v1470
    %1496 = vmatprep.subr.bf16.mxu0 0
    %1497 = vmatpush1.bf16.msra.mxu0 %v1469
    %1498 = vmatprep.subr.bf16.mxu0 0
    %1499 = vmatpush1.bf16.msra.mxu0 %v1468
    %1500 = vmatprep.subr.bf16.mxu0 0
    %1501 = vmatpush2.bf16.msra.mxu0 0
    %1502 = vmatprep.subr.bf16.mxu0 0
    %1503 = vmatpush2.bf16.msra.mxu0 0
    %1504 = vmatprep.subr.bf16.mxu0 0
    %1505 = vmatpush2.bf16.msra.mxu0 0
    %1506 = vmatprep.subr.bf16.mxu0 0
    %1507 = vmatpush2.bf16.msra.mxu0 0
    %1508 = vmatprep.subr.bf16.mxu0 0
    %1509 = vmatpush2.bf16.msra.mxu0 0
    %1510 = vmatprep.subr.bf16.mxu0 0
    %1511 = vmatpush2.bf16.msra.mxu0 0
    %1512 = vmatprep.subr.bf16.mxu0 0
    %1513 = vmatpush2.bf16.msra.mxu0 0
    %1514 = vmatprep.subr.bf16.mxu0 0
    %1515 = vmatpush2.bf16.msra.mxu0 0
    %1516 = vmatprep.mubr.bf16.mxu0 0
    %1517 = vmatmul.mubr.bf16.gmra.mxu0 %v1303
    %v1518 = vpop.f32.mrf.mxu0
    %v1519 = vadd.f32 %v1422, %v1518
    %v1520 = vpop.f32.mrf.mxu0
    %v1521 = vpop.f32.mrf.mxu0
    %v1522 = vadd.f32 %v1425, %v1521
    %v1523 = vpop.f32.mrf.mxu0
    %1524 = vmatprep.mubr.bf16.mxu0 0
    %1525 = vmatmul.mubr.bf16.gmra.mxu0 %v1304
    %v1526 = vpop.f32.mrf.mxu0
    %v1527 = vadd.f32 %v1430, %v1526
    %v1528 = vpop.f32.mrf.mxu0
    %v1529 = vpop.f32.mrf.mxu0
    %v1530 = vadd.f32 %v1433, %v1529
    %v1531 = vpop.f32.mrf.mxu0
    %1532 = vdwg.mxu0
    %v1533 = vpack.c.bf16 %v1290, %v1285
    %v1534 = vpack.c.bf16 %v1300, %v1295
    %v1535 = vld [vmem:[#allocation13] sm:$0xf]
    %v1536 = vld [vmem:[#allocation13 + $0x4] sm:$0xf]
    %v1537 = vld [vmem:[#allocation13 + $0x8] sm:$0xf]
    %v1538 = vld [vmem:[#allocation13 + $0xc] sm:$0xf]
    %v1539 = vld [vmem:[#allocation13 + $0x10] sm:$0xf]
    %v1540 = vld [vmem:[#allocation13 + $0x14] sm:$0xf]
    %v1541 = vld [vmem:[#allocation13 + $0x18] sm:$0xf]
    %v1542 = vld [vmem:[#allocation13 + $0x1c] sm:$0xf]
    %v1543 = vld [vmem:[#allocation13 + $0x20] sm:$0xf]
    %v1544 = vld [vmem:[#allocation13 + $0x24] sm:$0xf]
    %v1545 = vld [vmem:[#allocation13 + $0x28] sm:$0xf]
    %v1546 = vld [vmem:[#allocation13 + $0x2c] sm:$0xf]
    %v1547 = vld [vmem:[#allocation13 + $0x30] sm:$0xf]
    %v1548 = vld [vmem:[#allocation13 + $0x34] sm:$0xf]
    %v1549 = vld [vmem:[#allocation13 + $0x38] sm:$0xf]
    %v1550 = vld [vmem:[#allocation13 + $0x3c] sm:$0xf]
    %v1567 = vunpack.c.l.b16 %v1535
    %v1568 = vunpack.c.l.b16 %v1536
    %v1569 = vunpack.c.l.b16 %v1537
    %v1570 = vunpack.c.l.b16 %v1538
    %v1571 = vunpack.c.l.b16 %v1539
    %v1572 = vunpack.c.l.b16 %v1540
    %v1573 = vunpack.c.l.b16 %v1541
    %v1574 = vunpack.c.l.b16 %v1542
    %v1575 = vunpack.c.l.b16 %v1543
    %v1576 = vunpack.c.l.b16 %v1544
    %v1577 = vunpack.c.l.b16 %v1545
    %v1578 = vunpack.c.l.b16 %v1546
    %v1579 = vunpack.c.l.b16 %v1547
    %v1580 = vunpack.c.l.b16 %v1548
    %v1581 = vunpack.c.l.b16 %v1549
    %v1582 = vunpack.c.l.b16 %v1550
    %v1583 = vpack.c.b16 %v1568, %v1567
    %v1584 = vpack.c.b16 %v1570, %v1569
    %v1585 = vpack.c.b16 %v1572, %v1571
    %v1586 = vpack.c.b16 %v1574, %v1573
    %v1587 = vpack.c.b16 %v1576, %v1575
    %v1588 = vpack.c.b16 %v1578, %v1577
    %v1589 = vpack.c.b16 %v1580, %v1579
    %v1590 = vpack.c.b16 %v1582, %v1581
    %1599 = vmatprep.subr.bf16.mxu0 0
    %1600 = vmatpush1.bf16.msra.mxu0 %v1590
    %1601 = vmatprep.subr.bf16.mxu0 0
    %1602 = vmatpush1.bf16.msra.mxu0 %v1589
    %1603 = vmatprep.subr.bf16.mxu0 0
    %1604 = vmatpush1.bf16.msra.mxu0 %v1588
    %1605 = vmatprep.subr.bf16.mxu0 0
    %1606 = vmatpush1.bf16.msra.mxu0 %v1587
    %1607 = vmatprep.subr.bf16.mxu0 0
    %1608 = vmatpush1.bf16.msra.mxu0 %v1586
    %1609 = vmatprep.subr.bf16.mxu0 0
    %1610 = vmatpush1.bf16.msra.mxu0 %v1585
    %1611 = vmatprep.subr.bf16.mxu0 0
    %1612 = vmatpush1.bf16.msra.mxu0 %v1584
    %1613 = vmatprep.subr.bf16.mxu0 0
    %1614 = vmatpush1.bf16.msra.mxu0 %v1583
    %1615 = vmatprep.subr.bf16.mxu0 0
    %1616 = vmatpush2.bf16.msra.mxu0 0
    %1617 = vmatprep.subr.bf16.mxu0 0
    %1618 = vmatpush2.bf16.msra.mxu0 0
    %1619 = vmatprep.subr.bf16.mxu0 0
    %1620 = vmatpush2.bf16.msra.mxu0 0
    %1621 = vmatprep.subr.bf16.mxu0 0
    %1622 = vmatpush2.bf16.msra.mxu0 0
    %1623 = vmatprep.subr.bf16.mxu0 0
    %1624 = vmatpush2.bf16.msra.mxu0 0
    %1625 = vmatprep.subr.bf16.mxu0 0
    %1626 = vmatpush2.bf16.msra.mxu0 0
    %1627 = vmatprep.subr.bf16.mxu0 0
    %1628 = vmatpush2.bf16.msra.mxu0 0
    %1629 = vmatprep.subr.bf16.mxu0 0
    %1630 = vmatpush2.bf16.msra.mxu0 0
    %1631 = vmatprep.mubr.bf16.mxu0 0
    %1632 = vmatmul.mubr.bf16.gmra.mxu0 %v1533
    %v1633 = vpop.f32.mrf.mxu0
    %v1634 = vadd.f32 0.0, %v1633
    %v1635 = vpop.f32.mrf.mxu0
    %v1636 = vpop.f32.mrf.mxu0
    %v1637 = vadd.f32 0.0, %v1636
    %v1638 = vpop.f32.mrf.mxu0
    %1639 = vmatprep.mubr.bf16.mxu0 0
    %1640 = vmatmul.mubr.bf16.gmra.mxu0 %v1534
    %v1641 = vpop.f32.mrf.mxu0
    %v1642 = vadd.f32 0.0, %v1641
    %v1643 = vpop.f32.mrf.mxu0
    %v1644 = vpop.f32.mrf.mxu0
    %v1645 = vadd.f32 0.0, %v1644
    %v1646 = vpop.f32.mrf.mxu0
    %1647 = vdwg.mxu0
    %v1648 = vadd.f32 %v1519, %v1634
    %v1649 = vadd.f32 %v1522, %v1637
    %v1650 = vadd.f32 %v1527, %v1642
    %v1651 = vadd.f32 %v1530, %v1645
    %1652 = vmatprep.subr.mxu0 0.0
    %1653 = vmatpush1.msra.mxu0 %v281
    %1654 = vmatprep.subr.mxu0 0.0
    %1655 = vmatpush1.msra.mxu0 %v280
    %1656 = vmatprep.subr.mxu0 0.0
    %1657 = vmatpush1.msra.mxu0 %v279
    %1658 = vmatprep.subr.mxu0 0.0
    %1659 = vmatpush1.msra.mxu0 %v278
    %1660 = vmatprep.subr.mxu0 0.0
    %1661 = vmatpush1.msra.mxu0 %v277
    %1662 = vmatprep.subr.mxu0 0.0
    %1663 = vmatpush1.msra.mxu0 %v276
    %1664 = vmatprep.subr.mxu0 0.0
    %1665 = vmatpush1.msra.mxu0 %v275
    %1666 = vmatprep.subr.mxu0 0.0
    %1667 = vmatpush1.msra.mxu0 %v274
    %1668 = vmatprep.subr.mxu0 0.0
    %1669 = vmatpush1.msra.mxu0 %v273
    %1670 = vmatprep.subr.mxu0 0.0
    %1671 = vmatpush1.msra.mxu0 %v272
    %1672 = vmatprep.subr.mxu0 0.0
    %1673 = vmatpush1.msra.mxu0 %v271
    %1674 = vmatprep.subr.mxu0 0.0
    %1675 = vmatpush1.msra.mxu0 %v270
    %1676 = vmatprep.subr.mxu0 0.0
    %1677 = vmatpush1.msra.mxu0 %v269
    %1678 = vmatprep.subr.mxu0 0.0
    %1679 = vmatpush1.msra.mxu0 %v268
    %1680 = vmatprep.subr.mxu0 0.0
    %1681 = vmatpush1.msra.mxu0 %v267
    %1682 = vmatprep.subr.mxu0 0.0
    %1683 = vmatpush1.msra.mxu0 %v266
    %1684 = vmatprep.subr.mxu0 0.0
    %1685 = vmatpush2.msra.mxu0 0.0
    %1686 = vmatprep.subr.mxu0 0.0
    %1687 = vmatpush2.msra.mxu0 0.0
    %1688 = vmatprep.subr.mxu0 0.0
    %1689 = vmatpush2.msra.mxu0 0.0
    %1690 = vmatprep.subr.mxu0 0.0
    %1691 = vmatpush2.msra.mxu0 0.0
    %1692 = vmatprep.subr.mxu0 0.0
    %1693 = vmatpush2.msra.mxu0 0.0
    %1694 = vmatprep.subr.mxu0 0.0
    %1695 = vmatpush2.msra.mxu0 0.0
    %1696 = vmatprep.subr.mxu0 0.0
    %1697 = vmatpush2.msra.mxu0 0.0
    %1698 = vmatprep.subr.mxu0 0.0
    %1699 = vmatpush2.msra.mxu0 0.0
    %1700 = vmatprep.subr.mxu0 0.0
    %1701 = vmatpush2.msra.mxu0 0.0
    %1702 = vmatprep.subr.mxu0 0.0
    %1703 = vmatpush2.msra.mxu0 0.0
    %1704 = vmatprep.subr.mxu0 0.0
    %1705 = vmatpush2.msra.mxu0 0.0
    %1706 = vmatprep.subr.mxu0 0.0
    %1707 = vmatpush2.msra.mxu0 0.0
    %1708 = vmatprep.subr.mxu0 0.0
    %1709 = vmatpush2.msra.mxu0 0.0
    %1710 = vmatprep.subr.mxu0 0.0
    %1711 = vmatpush2.msra.mxu0 0.0
    %1712 = vmatprep.subr.mxu0 0.0
    %1713 = vmatpush2.msra.mxu0 0.0
    %1714 = vmatprep.subr.mxu0 0.0
    %1715 = vmatpush2.msra.mxu0 0.0
    %1716 = vmatprep.mubr.f32.mxu0 0.0
    %1717 = vmatmul.mubr.f32.gmra.mxu0 %v1648
    %v1718 = vpop.f32.mrf.mxu0
    %v1719 = vadd.f32 0.0, %v1718
    %v1720 = vpop.f32.mrf.mxu0
    %1721 = vmatprep.mubr.f32.mxu0 0.0
    %1722 = vmatmul.mubr.f32.gmra.mxu0 %v1649
    %v1723 = vpop.f32.mrf.mxu0
    %v1724 = vadd.f32 0.0, %v1723
    %v1725 = vpop.f32.mrf.mxu0
    %1726 = vmatprep.mubr.f32.mxu0 0.0
    %1727 = vmatmul.mubr.f32.gmra.mxu0 %v1650
    %v1728 = vpop.f32.mrf.mxu0
    %v1729 = vadd.f32 0.0, %v1728
    %v1730 = vpop.f32.mrf.mxu0
    %1731 = vmatprep.mubr.f32.mxu0 0.0
    %1732 = vmatmul.mubr.f32.gmra.mxu0 %v1651
    %v1733 = vpop.f32.mrf.mxu0
    %v1734 = vadd.f32 0.0, %v1733
    %v1735 = vpop.f32.mrf.mxu0
    %1736 = vdwg.mxu0
    %v1737 = vmul.f32 %v1648, %v1648
    %v1738 = vmul.f32 %v1649, %v1649
    %v1739 = vmul.f32 %v1650, %v1650
    %v1740 = vmul.f32 %v1651, %v1651
    %1741 = vmatprep.subr.mxu0 0.0
    %1742 = vmatpush1.msra.mxu0 %v281
    %1743 = vmatprep.subr.mxu0 0.0
    %1744 = vmatpush1.msra.mxu0 %v280
    %1745 = vmatprep.subr.mxu0 0.0
    %1746 = vmatpush1.msra.mxu0 %v279
    %1747 = vmatprep.subr.mxu0 0.0
    %1748 = vmatpush1.msra.mxu0 %v278
    %1749 = vmatprep.subr.mxu0 0.0
    %1750 = vmatpush1.msra.mxu0 %v277
    %1751 = vmatprep.subr.mxu0 0.0
    %1752 = vmatpush1.msra.mxu0 %v276
    %1753 = vmatprep.subr.mxu0 0.0
    %1754 = vmatpush1.msra.mxu0 %v275
    %1755 = vmatprep.subr.mxu0 0.0
    %1756 = vmatpush1.msra.mxu0 %v274
    %1757 = vmatprep.subr.mxu0 0.0
    %1758 = vmatpush1.msra.mxu0 %v273
    %1759 = vmatprep.subr.mxu0 0.0
    %1760 = vmatpush1.msra.mxu0 %v272
    %1761 = vmatprep.subr.mxu0 0.0
    %1762 = vmatpush1.msra.mxu0 %v271
    %1763 = vmatprep.subr.mxu0 0.0
    %1764 = vmatpush1.msra.mxu0 %v270
    %1765 = vmatprep.subr.mxu0 0.0
    %1766 = vmatpush1.msra.mxu0 %v269
    %1767 = vmatprep.subr.mxu0 0.0
    %1768 = vmatpush1.msra.mxu0 %v268
    %1769 = vmatprep.subr.mxu0 0.0
    %1770 = vmatpush1.msra.mxu0 %v267
    %1771 = vmatprep.subr.mxu0 0.0
    %1772 = vmatpush1.msra.mxu0 %v266
    %1773 = vmatprep.subr.mxu0 0.0
    %1774 = vmatpush2.msra.mxu0 0.0
    %1775 = vmatprep.subr.mxu0 0.0
    %1776 = vmatpush2.msra.mxu0 0.0
    %1777 = vmatprep.subr.mxu0 0.0
    %1778 = vmatpush2.msra.mxu0 0.0
    %1779 = vmatprep.subr.mxu0 0.0
    %1780 = vmatpush2.msra.mxu0 0.0
    %1781 = vmatprep.subr.mxu0 0.0
    %1782 = vmatpush2.msra.mxu0 0.0
    %1783 = vmatprep.subr.mxu0 0.0
    %1784 = vmatpush2.msra.mxu0 0.0
    %1785 = vmatprep.subr.mxu0 0.0
    %1786 = vmatpush2.msra.mxu0 0.0
    %1787 = vmatprep.subr.mxu0 0.0
    %1788 = vmatpush2.msra.mxu0 0.0
    %1789 = vmatprep.subr.mxu0 0.0
    %1790 = vmatpush2.msra.mxu0 0.0
    %1791 = vmatprep.subr.mxu0 0.0
    %1792 = vmatpush2.msra.mxu0 0.0
    %1793 = vmatprep.subr.mxu0 0.0
    %1794 = vmatpush2.msra.mxu0 0.0
    %1795 = vmatprep.subr.mxu0 0.0
    %1796 = vmatpush2.msra.mxu0 0.0
    %1797 = vmatprep.subr.mxu0 0.0
    %1798 = vmatpush2.msra.mxu0 0.0
    %1799 = vmatprep.subr.mxu0 0.0
    %1800 = vmatpush2.msra.mxu0 0.0
    %1801 = vmatprep.subr.mxu0 0.0
    %1802 = vmatpush2.msra.mxu0 0.0
    %1803 = vmatprep.subr.mxu0 0.0
    %1804 = vmatpush2.msra.mxu0 0.0
    %1805 = vmatprep.mubr.f32.mxu0 0.0
    %1806 = vmatmul.mubr.f32.gmra.mxu0 %v1737
    %v1807 = vpop.f32.mrf.mxu0
    %v1808 = vadd.f32 0.0, %v1807
    %v1809 = vpop.f32.mrf.mxu0
    %1810 = vmatprep.mubr.f32.mxu0 0.0
    %1811 = vmatmul.mubr.f32.gmra.mxu0 %v1738
    %v1812 = vpop.f32.mrf.mxu0
    %v1813 = vadd.f32 0.0, %v1812
    %v1814 = vpop.f32.mrf.mxu0
    %1815 = vmatprep.mubr.f32.mxu0 0.0
    %1816 = vmatmul.mubr.f32.gmra.mxu0 %v1739
    %v1817 = vpop.f32.mrf.mxu0
    %v1818 = vadd.f32 0.0, %v1817
    %v1819 = vpop.f32.mrf.mxu0
    %1820 = vmatprep.mubr.f32.mxu0 0.0
    %1821 = vmatmul.mubr.f32.gmra.mxu0 %v1740
    %v1822 = vpop.f32.mrf.mxu0
    %v1823 = vadd.f32 0.0, %v1822
    %v1824 = vpop.f32.mrf.mxu0
    %1825 = vdwg.mxu0
    %v1826 = vsel %vm928, %v1719, 0.0
    %v1827 = vsel %vm928, %v1724, 0.0
    %v1828 = vadd.f32 %v1826, %v1827
    %v1829 = vsel %vm928, %v1729, 0.0
    %v1830 = vadd.f32 %v1828, %v1829
    %v1831 = vsel %vm928, %v1734, 0.0
    %v1832 = vadd.f32 %v1830, %v1831
    %v1833 = vrot.slane %v1832, 4
    %v1834 = vadd.f32 %v1832, %v1833
    %v1835 = vrot.slane %v1834, 2
    %v1836 = vadd.f32 %v1834, %v1835
    %v1837 = vrot.slane %v1836, 1
    %v1838 = vadd.f32 %v1836, %v1837
    %v1839 = vsel %vm928, %v1808, 0.0
    %v1840 = vsel %vm928, %v1813, 0.0
    %v1841 = vadd.f32 %v1839, %v1840
    %v1842 = vsel %vm928, %v1818, 0.0
    %v1843 = vadd.f32 %v1841, %v1842
    %v1844 = vsel %vm928, %v1823, 0.0
    %v1845 = vadd.f32 %v1843, %v1844
    %v1846 = vrot.slane %v1845, 4
    %v1847 = vadd.f32 %v1845, %v1846
    %v1848 = vrot.slane %v1847, 2
    %v1849 = vadd.f32 %v1847, %v1848
    %v1850 = vrot.slane %v1849, 1
    %v1851 = vadd.f32 %v1849, %v1850
    %v1852 = vmul.f32 %v1838, 0.001953125
    %v1853 = vmul.f32 %v1851, 0.001953125
    %v1854 = vmul.f32 %v1852, %v1852
    %v1855 = vsub.f32 %v1853, %v1854
    %v1856 = vmax.f32 %v1855, 0.0
    %v1857 = vld [vmem:[%s13] sm:$0x1]
    %v1858 = vadd.f32 %v1856, 1e-05
    %v1859 = vrsqrt.pop %v1858
    %v1860 = vmul.f32 %v1857, %v1859
    %v1861 = vld [vmem:[%s14] sm:$0x1]
    %v1862 = vmul.f32 %v1852, %v1860
    %v1863 = vsub.f32 %v1861, %v1862
    %v1865 = vsel %vm928, %v1860, 0
    %1867 = vmatprep.subr.mxu0 0.0
    %1868 = vmatpush1.msra.mxu0 0.0
    %1869 = vmatprep.subr.mxu0 0.0
    %1870 = vmatpush1.msra.mxu0 0.0
    %1871 = vmatprep.subr.mxu0 0.0
    %1872 = vmatpush1.msra.mxu0 0.0
    %1873 = vmatprep.subr.mxu0 0.0
    %1874 = vmatpush1.msra.mxu0 0.0
    %1875 = vmatprep.subr.mxu0 0.0
    %1876 = vmatpush1.msra.mxu0 0.0
    %1877 = vmatprep.subr.mxu0 0.0
    %1878 = vmatpush1.msra.mxu0 0.0
    %1879 = vmatprep.subr.mxu0 0.0
    %1880 = vmatpush1.msra.mxu0 0.0
    %1881 = vmatprep.subr.mxu0 0.0
    %1882 = vmatpush1.msra.mxu0 0.0
    %1883 = vmatprep.subr.mxu0 0.0
    %1884 = vmatpush1.msra.mxu0 0.0
    %1885 = vmatprep.subr.mxu0 0.0
    %1886 = vmatpush1.msra.mxu0 0.0
    %1887 = vmatprep.subr.mxu0 0.0
    %1888 = vmatpush1.msra.mxu0 0.0
    %1889 = vmatprep.subr.mxu0 0.0
    %1890 = vmatpush1.msra.mxu0 0.0
    %1891 = vmatprep.subr.mxu0 0.0
    %1892 = vmatpush1.msra.mxu0 0.0
    %1893 = vmatprep.subr.mxu0 0.0
    %1894 = vmatpush1.msra.mxu0 0.0
    %1895 = vmatprep.subr.mxu0 0.0
    %1896 = vmatpush1.msra.mxu0 0.0
    %1897 = vmatprep.subr.mxu0 0.0
    %1898 = vmatpush1.msra.mxu0 %v282
    %1899 = vmatprep.subr.mxu0 0.0
    %1900 = vmatpush2.msra.mxu0 0.0
    %1901 = vmatprep.subr.mxu0 0.0
    %1902 = vmatpush2.msra.mxu0 0.0
    %1903 = vmatprep.subr.mxu0 0.0
    %1904 = vmatpush2.msra.mxu0 0.0
    %1905 = vmatprep.subr.mxu0 0.0
    %1906 = vmatpush2.msra.mxu0 0.0
    %1907 = vmatprep.subr.mxu0 0.0
    %1908 = vmatpush2.msra.mxu0 0.0
    %1909 = vmatprep.subr.mxu0 0.0
    %1910 = vmatpush2.msra.mxu0 0.0
    %1911 = vmatprep.subr.mxu0 0.0
    %1912 = vmatpush2.msra.mxu0 0.0
    %1913 = vmatprep.subr.mxu0 0.0
    %1914 = vmatpush2.msra.mxu0 0.0
    %1915 = vmatprep.subr.mxu0 0.0
    %1916 = vmatpush2.msra.mxu0 0.0
    %1917 = vmatprep.subr.mxu0 0.0
    %1918 = vmatpush2.msra.mxu0 0.0
    %1919 = vmatprep.subr.mxu0 0.0
    %1920 = vmatpush2.msra.mxu0 0.0
    %1921 = vmatprep.subr.mxu0 0.0
    %1922 = vmatpush2.msra.mxu0 0.0
    %1923 = vmatprep.subr.mxu0 0.0
    %1924 = vmatpush2.msra.mxu0 0.0
    %1925 = vmatprep.subr.mxu0 0.0
    %1926 = vmatpush2.msra.mxu0 0.0
    %1927 = vmatprep.subr.mxu0 0.0
    %1928 = vmatpush2.msra.mxu0 0.0
    %1929 = vmatprep.subr.mxu0 0.0
    %1930 = vmatpush2.msra.mxu0 0.0
    %1931 = vmatprep.mubr.f32.mxu0 0.0
    %1932 = vmatmul.mubr.f32.gmra.mxu0 %v1865
    %v1933 = vpop.f32.mrf.mxu0
    %v1934 = vadd.f32 0.0, %v1933
    %v1935 = vpop.f32.mrf.mxu0
    %1936 = vdwg.mxu0
    %v1938 = vsel %vm928, %v1863, 0
    %1940 = vmatprep.subr.mxu0 0.0
    %1941 = vmatpush1.msra.mxu0 0.0
    %1942 = vmatprep.subr.mxu0 0.0
    %1943 = vmatpush1.msra.mxu0 0.0
    %1944 = vmatprep.subr.mxu0 0.0
    %1945 = vmatpush1.msra.mxu0 0.0
    %1946 = vmatprep.subr.mxu0 0.0
    %1947 = vmatpush1.msra.mxu0 0.0
    %1948 = vmatprep.subr.mxu0 0.0
    %1949 = vmatpush1.msra.mxu0 0.0
    %1950 = vmatprep.subr.mxu0 0.0
    %1951 = vmatpush1.msra.mxu0 0.0
    %1952 = vmatprep.subr.mxu0 0.0
    %1953 = vmatpush1.msra.mxu0 0.0
    %1954 = vmatprep.subr.mxu0 0.0
    %1955 = vmatpush1.msra.mxu0 0.0
    %1956 = vmatprep.subr.mxu0 0.0
    %1957 = vmatpush1.msra.mxu0 0.0
    %1958 = vmatprep.subr.mxu0 0.0
    %1959 = vmatpush1.msra.mxu0 0.0
    %1960 = vmatprep.subr.mxu0 0.0
    %1961 = vmatpush1.msra.mxu0 0.0
    %1962 = vmatprep.subr.mxu0 0.0
    %1963 = vmatpush1.msra.mxu0 0.0
    %1964 = vmatprep.subr.mxu0 0.0
    %1965 = vmatpush1.msra.mxu0 0.0
    %1966 = vmatprep.subr.mxu0 0.0
    %1967 = vmatpush1.msra.mxu0 0.0
    %1968 = vmatprep.subr.mxu0 0.0
    %1969 = vmatpush1.msra.mxu0 0.0
    %1970 = vmatprep.subr.mxu0 0.0
    %1971 = vmatpush1.msra.mxu0 %v282
    %1972 = vmatprep.subr.mxu0 0.0
    %1973 = vmatpush2.msra.mxu0 0.0
    %1974 = vmatprep.subr.mxu0 0.0
    %1975 = vmatpush2.msra.mxu0 0.0
    %1976 = vmatprep.subr.mxu0 0.0
    %1977 = vmatpush2.msra.mxu0 0.0
    %1978 = vmatprep.subr.mxu0 0.0
    %1979 = vmatpush2.msra.mxu0 0.0
    %1980 = vmatprep.subr.mxu0 0.0
    %1981 = vmatpush2.msra.mxu0 0.0
    %1982 = vmatprep.subr.mxu0 0.0
    %1983 = vmatpush2.msra.mxu0 0.0
    %1984 = vmatprep.subr.mxu0 0.0
    %1985 = vmatpush2.msra.mxu0 0.0
    %1986 = vmatprep.subr.mxu0 0.0
    %1987 = vmatpush2.msra.mxu0 0.0
    %1988 = vmatprep.subr.mxu0 0.0
    %1989 = vmatpush2.msra.mxu0 0.0
    %1990 = vmatprep.subr.mxu0 0.0
    %1991 = vmatpush2.msra.mxu0 0.0
    %1992 = vmatprep.subr.mxu0 0.0
    %1993 = vmatpush2.msra.mxu0 0.0
    %1994 = vmatprep.subr.mxu0 0.0
    %1995 = vmatpush2.msra.mxu0 0.0
    %1996 = vmatprep.subr.mxu0 0.0
    %1997 = vmatpush2.msra.mxu0 0.0
    %1998 = vmatprep.subr.mxu0 0.0
    %1999 = vmatpush2.msra.mxu0 0.0
    %2000 = vmatprep.subr.mxu0 0.0
    %2001 = vmatpush2.msra.mxu0 0.0
    %2002 = vmatprep.subr.mxu0 0.0
    %2003 = vmatpush2.msra.mxu0 0.0
    %2004 = vmatprep.mubr.f32.mxu0 0.0
    %2005 = vmatmul.mubr.f32.gmra.mxu0 %v1938
    %v2006 = vpop.f32.mrf.mxu0
    %v2007 = vadd.f32 0.0, %v2006
    %v2008 = vpop.f32.mrf.mxu0
    %2009 = vdwg.mxu0
    %v2010 = vlaneseq
    %v2011 = vshrl.u32 %v2010, 7
    %v2012 = vsub.s32 0, %v2011
    %v2013 = vrot.slane %v1934, %v2012
    %v2014 = vmul.f32 %v1648, %v2013
    %v2015 = vmul.f32 %v1649, %v2013
    %v2016 = vmul.f32 %v1650, %v2013
    %v2017 = vmul.f32 %v1651, %v2013
    %v2018 = vlaneseq
    %v2019 = vshrl.u32 %v2018, 7
    %v2020 = vsub.s32 0, %v2019
    %v2021 = vrot.slane %v2007, %v2020
    %v2022 = vadd.f32 %v2014, %v2021
    %v2023 = vadd.f32 %v2015, %v2021
    %v2024 = vadd.f32 %v2016, %v2021
    %v2025 = vadd.f32 %v2017, %v2021
    %v2026 = vmax.f32 %v2022, 0.0
    %v2027 = vmax.f32 %v2023, 0.0
    %v2028 = vmax.f32 %v2024, 0.0
    %v2029 = vmax.f32 %v2025, 0.0
    %2030 = vmatprep.subr.mxu0 0.0
    %2031 = vmatpush1.msra.mxu0 0.0
    %2032 = vmatprep.subr.mxu0 0.0
    %2033 = vmatpush1.msra.mxu0 0.0
    %2034 = vmatprep.subr.mxu0 0.0
    %2035 = vmatpush1.msra.mxu0 0.0
    %2036 = vmatprep.subr.mxu0 0.0
    %2037 = vmatpush1.msra.mxu0 0.0
    %2038 = vmatprep.subr.mxu0 0.0
    %2039 = vmatpush1.msra.mxu0 0.0
    %2040 = vmatprep.subr.mxu0 0.0
    %2041 = vmatpush1.msra.mxu0 0.0
    %2042 = vmatprep.subr.mxu0 0.0
    %2043 = vmatpush1.msra.mxu0 0.0
    %2044 = vmatprep.subr.mxu0 0.0
    %2045 = vmatpush1.msra.mxu0 0.0
    %2046 = vmatprep.subr.mxu0 0.0
    %2047 = vmatpush1.msra.mxu0 0.0
    %2048 = vmatprep.subr.mxu0 0.0
    %2049 = vmatpush1.msra.mxu0 0.0
    %2050 = vmatprep.subr.mxu0 0.0
    %2051 = vmatpush1.msra.mxu0 0.0
    %2052 = vmatprep.subr.mxu0 0.0
    %2053 = vmatpush1.msra.mxu0 0.0
    %2054 = vmatprep.subr.mxu0 0.0
    %2055 = vmatpush1.msra.mxu0 %v2029
    %2056 = vmatprep.subr.mxu0 0.0
    %2057 = vmatpush1.msra.mxu0 %v2028
    %2058 = vmatprep.subr.mxu0 0.0
    %2059 = vmatpush1.msra.mxu0 %v2027
    %2060 = vmatprep.subr.mxu0 0.0
    %2061 = vmatpush1.msra.mxu0 %v2026
    %2062 = vmatprep.subr.mxu0 0.0
    %2063 = vmatpush2.msra.mxu0 0.0
    %2064 = vmatprep.subr.mxu0 0.0
    %2065 = vmatpush2.msra.mxu0 0.0
    %2066 = vmatprep.subr.mxu0 0.0
    %2067 = vmatpush2.msra.mxu0 0.0
    %2068 = vmatprep.subr.mxu0 0.0
    %2069 = vmatpush2.msra.mxu0 0.0
    %2070 = vmatprep.subr.mxu0 0.0
    %2071 = vmatpush2.msra.mxu0 0.0
    %2072 = vmatprep.subr.mxu0 0.0
    %2073 = vmatpush2.msra.mxu0 0.0
    %2074 = vmatprep.subr.mxu0 0.0
    %2075 = vmatpush2.msra.mxu0 0.0
    %2076 = vmatprep.subr.mxu0 0.0
    %2077 = vmatpush2.msra.mxu0 0.0
    %2078 = vmatprep.subr.mxu0 0.0
    %2079 = vmatpush2.msra.mxu0 0.0
    %2080 = vmatprep.subr.mxu0 0.0
    %2081 = vmatpush2.msra.mxu0 0.0
    %2082 = vmatprep.subr.mxu0 0.0
    %2083 = vmatpush2.msra.mxu0 0.0
    %2084 = vmatprep.subr.mxu0 0.0
    %2085 = vmatpush2.msra.mxu0 0.0
    %2086 = vmatprep.subr.mxu0 0.0
    %2087 = vmatpush2.msra.mxu0 0.0
    %2088 = vmatprep.subr.mxu0 0.0
    %2089 = vmatpush2.msra.mxu0 0.0
    %2090 = vmatprep.subr.mxu0 0.0
    %2091 = vmatpush2.msra.mxu0 0.0
    %2092 = vmatprep.subr.mxu0 0.0
    %2093 = vmatpush2.msra.mxu0 0.0
    %2094 = vmatprep.mubr.f32.mxu0 0.0
    %2095 = vmatmul.mubr.f32.gmra.mxu0 %v289
    %v2096 = vpop.f32.mrf.mxu0
    %v2097 = vadd.f32 0.0, %v2096
    %v2098 = vpop.f32.mrf.mxu0
    %2099 = vmatprep.mubr.f32.mxu0 0.0
    %2100 = vmatmul.mubr.f32.gmra.mxu0 %v292
    %v2101 = vpop.f32.mrf.mxu0
    %v2102 = vadd.f32 0.0, %v2101
    %v2103 = vpop.f32.mrf.mxu0
    %2104 = vmatprep.mubr.f32.mxu0 0.0
    %2105 = vmatmul.mubr.f32.gmra.mxu0 %v295
    %v2106 = vpop.f32.mrf.mxu0
    %v2107 = vadd.f32 0.0, %v2106
    %v2108 = vpop.f32.mrf.mxu0
    %2109 = vmatprep.mubr.f32.mxu0 0.0
    %2110 = vmatmul.mubr.f32.gmra.mxu0 %v298
    %v2111 = vpop.f32.mrf.mxu0
    %v2112 = vadd.f32 0.0, %v2111
    %v2113 = vpop.f32.mrf.mxu0
    %2114 = vdwg.mxu0
    %2115 = vmatprep.subr.mxu0 0.0
    %2116 = vmatpush1.msra.mxu0 0.0
    %2117 = vmatprep.subr.mxu0 0.0
    %2118 = vmatpush1.msra.mxu0 0.0
    %2119 = vmatprep.subr.mxu0 0.0
    %2120 = vmatpush1.msra.mxu0 0.0
    %2121 = vmatprep.subr.mxu0 0.0
    %2122 = vmatpush1.msra.mxu0 0.0
    %2123 = vmatprep.subr.mxu0 0.0
    %2124 = vmatpush1.msra.mxu0 0.0
    %2125 = vmatprep.subr.mxu0 0.0
    %2126 = vmatpush1.msra.mxu0 0.0
    %2127 = vmatprep.subr.mxu0 0.0
    %2128 = vmatpush1.msra.mxu0 0.0
    %2129 = vmatprep.subr.mxu0 0.0
    %2130 = vmatpush1.msra.mxu0 0.0
    %2131 = vmatprep.subr.mxu0 0.0
    %2132 = vmatpush1.msra.mxu0 0.0
    %2133 = vmatprep.subr.mxu0 0.0
    %2134 = vmatpush1.msra.mxu0 0.0
    %2135 = vmatprep.subr.mxu0 0.0
    %2136 = vmatpush1.msra.mxu0 0.0
    %2137 = vmatprep.subr.mxu0 0.0
    %2138 = vmatpush1.msra.mxu0 0.0
    %2139 = vmatprep.subr.mxu0 0.0
    %2140 = vmatpush1.msra.mxu0 %v2029
    %2141 = vmatprep.subr.mxu0 0.0
    %2142 = vmatpush1.msra.mxu0 %v2028
    %2143 = vmatprep.subr.mxu0 0.0
    %2144 = vmatpush1.msra.mxu0 %v2027
    %2145 = vmatprep.subr.mxu0 0.0
    %2146 = vmatpush1.msra.mxu0 %v2026
    %2147 = vmatprep.subr.mxu0 0.0
    %2148 = vmatpush2.msra.mxu0 0.0
    %2149 = vmatprep.subr.mxu0 0.0
    %2150 = vmatpush2.msra.mxu0 0.0
    %2151 = vmatprep.subr.mxu0 0.0
    %2152 = vmatpush2.msra.mxu0 0.0
    %2153 = vmatprep.subr.mxu0 0.0
    %2154 = vmatpush2.msra.mxu0 0.0
    %2155 = vmatprep.subr.mxu0 0.0
    %2156 = vmatpush2.msra.mxu0 0.0
    %2157 = vmatprep.subr.mxu0 0.0
    %2158 = vmatpush2.msra.mxu0 0.0
    %2159 = vmatprep.subr.mxu0 0.0
    %2160 = vmatpush2.msra.mxu0 0.0
    %2161 = vmatprep.subr.mxu0 0.0
    %2162 = vmatpush2.msra.mxu0 0.0
    %2163 = vmatprep.subr.mxu0 0.0
    %2164 = vmatpush2.msra.mxu0 0.0
    %2165 = vmatprep.subr.mxu0 0.0
    %2166 = vmatpush2.msra.mxu0 0.0
    %2167 = vmatprep.subr.mxu0 0.0
    %2168 = vmatpush2.msra.mxu0 0.0
    %2169 = vmatprep.subr.mxu0 0.0
    %2170 = vmatpush2.msra.mxu0 0.0
    %2171 = vmatprep.subr.mxu0 0.0
    %2172 = vmatpush2.msra.mxu0 0.0
    %2173 = vmatprep.subr.mxu0 0.0
    %2174 = vmatpush2.msra.mxu0 0.0
    %2175 = vmatprep.subr.mxu0 0.0
    %2176 = vmatpush2.msra.mxu0 0.0
    %2177 = vmatprep.subr.mxu0 0.0
    %2178 = vmatpush2.msra.mxu0 0.0
    %2179 = vmatprep.mubr.f32.mxu0 0.0
    %2180 = vmatmul.mubr.f32.gmra.mxu0 %v386
    %v2181 = vpop.f32.mrf.mxu0
    %v2182 = vadd.f32 0.0, %v2181
    %v2183 = vpop.f32.mrf.mxu0
    %2184 = vmatprep.mubr.f32.mxu0 0.0
    %2185 = vmatmul.mubr.f32.gmra.mxu0 %v389
    %v2186 = vpop.f32.mrf.mxu0
    %v2187 = vadd.f32 0.0, %v2186
    %v2188 = vpop.f32.mrf.mxu0
    %2189 = vmatprep.mubr.f32.mxu0 0.0
    %2190 = vmatmul.mubr.f32.gmra.mxu0 %v392
    %v2191 = vpop.f32.mrf.mxu0
    %v2192 = vadd.f32 0.0, %v2191
    %v2193 = vpop.f32.mrf.mxu0
    %2194 = vmatprep.mubr.f32.mxu0 0.0
    %2195 = vmatmul.mubr.f32.gmra.mxu0 %v395
    %v2196 = vpop.f32.mrf.mxu0
    %v2197 = vadd.f32 0.0, %v2196
    %v2198 = vpop.f32.mrf.mxu0
    %2199 = vdwg.mxu0
    %v2200 = vpack.c.bf16 %v2102, %v2097
    %v2201 = vpack.c.bf16 %v2112, %v2107
    %v2202 = vld [vmem:[#allocation14] sm:$0xf]
    %v2203 = vld [vmem:[#allocation14 + $0x4] sm:$0xf]
    %v2204 = vld [vmem:[#allocation14 + $0x8] sm:$0xf]
    %v2205 = vld [vmem:[#allocation14 + $0xc] sm:$0xf]
    %v2206 = vld [vmem:[#allocation14 + $0x10] sm:$0xf]
    %v2207 = vld [vmem:[#allocation14 + $0x14] sm:$0xf]
    %v2208 = vld [vmem:[#allocation14 + $0x18] sm:$0xf]
    %v2209 = vld [vmem:[#allocation14 + $0x1c] sm:$0xf]
    %v2210 = vld [vmem:[#allocation14 + $0x20] sm:$0xf]
    %v2211 = vld [vmem:[#allocation14 + $0x24] sm:$0xf]
    %v2212 = vld [vmem:[#allocation14 + $0x28] sm:$0xf]
    %v2213 = vld [vmem:[#allocation14 + $0x2c] sm:$0xf]
    %v2214 = vld [vmem:[#allocation14 + $0x30] sm:$0xf]
    %v2215 = vld [vmem:[#allocation14 + $0x34] sm:$0xf]
    %v2216 = vld [vmem:[#allocation14 + $0x38] sm:$0xf]
    %v2217 = vld [vmem:[#allocation14 + $0x3c] sm:$0xf]
    %v2218 = vpack.c.bf16 %v2027, %v2026
    %v2219 = vpack.c.bf16 %v2029, %v2028
    %v2220 = vld [vmem:[#allocation16] sm:$0xf]
    %v2221 = vld [vmem:[#allocation16 + $0x4] sm:$0xf]
    %v2222 = vld [vmem:[#allocation16 + $0x8] sm:$0xf]
    %v2223 = vld [vmem:[#allocation16 + $0xc] sm:$0xf]
    %v2224 = vld [vmem:[#allocation16 + $0x10] sm:$0xf]
    %v2225 = vld [vmem:[#allocation16 + $0x14] sm:$0xf]
    %v2226 = vld [vmem:[#allocation16 + $0x18] sm:$0xf]
    %v2227 = vld [vmem:[#allocation16 + $0x1c] sm:$0xf]
    %v2228 = vld [vmem:[#allocation16 + $0x20] sm:$0xf]
    %v2229 = vld [vmem:[#allocation16 + $0x24] sm:$0xf]
    %v2230 = vld [vmem:[#allocation16 + $0x28] sm:$0xf]
    %v2231 = vld [vmem:[#allocation16 + $0x2c] sm:$0xf]
    %v2232 = vld [vmem:[#allocation16 + $0x30] sm:$0xf]
    %v2233 = vld [vmem:[#allocation16 + $0x34] sm:$0xf]
    %v2234 = vld [vmem:[#allocation16 + $0x38] sm:$0xf]
    %v2235 = vld [vmem:[#allocation16 + $0x3c] sm:$0xf]
    %v2252 = vunpack.c.l.b16 %v2220
    %v2253 = vunpack.c.l.b16 %v2221
    %v2254 = vunpack.c.l.b16 %v2222
    %v2255 = vunpack.c.l.b16 %v2223
    %v2256 = vunpack.c.l.b16 %v2224
    %v2257 = vunpack.c.l.b16 %v2225
    %v2258 = vunpack.c.l.b16 %v2226
    %v2259 = vunpack.c.l.b16 %v2227
    %v2260 = vunpack.c.l.b16 %v2228
    %v2261 = vunpack.c.l.b16 %v2229
    %v2262 = vunpack.c.l.b16 %v2230
    %v2263 = vunpack.c.l.b16 %v2231
    %v2264 = vunpack.c.l.b16 %v2232
    %v2265 = vunpack.c.l.b16 %v2233
    %v2266 = vunpack.c.l.b16 %v2234
    %v2267 = vunpack.c.l.b16 %v2235
    %v2268 = vpack.c.b16 %v2253, %v2252
    %v2269 = vpack.c.b16 %v2255, %v2254
    %v2270 = vpack.c.b16 %v2257, %v2256
    %v2271 = vpack.c.b16 %v2259, %v2258
    %v2272 = vpack.c.b16 %v2261, %v2260
    %v2273 = vpack.c.b16 %v2263, %v2262
    %v2274 = vpack.c.b16 %v2265, %v2264
    %v2275 = vpack.c.b16 %v2267, %v2266
    %2284 = vmatprep.subr.bf16.mxu0 0
    %2285 = vmatpush1.bf16.msra.mxu0 %v2275
    %2286 = vmatprep.subr.bf16.mxu0 0
    %2287 = vmatpush1.bf16.msra.mxu0 %v2274
    %2288 = vmatprep.subr.bf16.mxu0 0
    %2289 = vmatpush1.bf16.msra.mxu0 %v2273
    %2290 = vmatprep.subr.bf16.mxu0 0
    %2291 = vmatpush1.bf16.msra.mxu0 %v2272
    %2292 = vmatprep.subr.bf16.mxu0 0
    %2293 = vmatpush1.bf16.msra.mxu0 %v2271
    %2294 = vmatprep.subr.bf16.mxu0 0
    %2295 = vmatpush1.bf16.msra.mxu0 %v2270
    %2296 = vmatprep.subr.bf16.mxu0 0
    %2297 = vmatpush1.bf16.msra.mxu0 %v2269
    %2298 = vmatprep.subr.bf16.mxu0 0
    %2299 = vmatpush1.bf16.msra.mxu0 %v2268
    %2300 = vmatprep.subr.bf16.mxu0 0
    %2301 = vmatpush2.bf16.msra.mxu0 0
    %2302 = vmatprep.subr.bf16.mxu0 0
    %2303 = vmatpush2.bf16.msra.mxu0 0
    %2304 = vmatprep.subr.bf16.mxu0 0
    %2305 = vmatpush2.bf16.msra.mxu0 0
    %2306 = vmatprep.subr.bf16.mxu0 0
    %2307 = vmatpush2.bf16.msra.mxu0 0
    %2308 = vmatprep.subr.bf16.mxu0 0
    %2309 = vmatpush2.bf16.msra.mxu0 0
    %2310 = vmatprep.subr.bf16.mxu0 0
    %2311 = vmatpush2.bf16.msra.mxu0 0
    %2312 = vmatprep.subr.bf16.mxu0 0
    %2313 = vmatpush2.bf16.msra.mxu0 0
    %2314 = vmatprep.subr.bf16.mxu0 0
    %2315 = vmatpush2.bf16.msra.mxu0 0
    %2316 = vmatprep.mubr.bf16.mxu0 0
    %2317 = vmatmul.mubr.bf16.gmra.mxu0 %v2218
    %v2318 = vpop.f32.mrf.mxu0
    %v2319 = vadd.f32 0.0, %v2318
    %v2320 = vpop.f32.mrf.mxu0
    %v2321 = vpop.f32.mrf.mxu0
    %v2322 = vadd.f32 0.0, %v2321
    %v2323 = vpop.f32.mrf.mxu0
    %2324 = vmatprep.mubr.bf16.mxu0 0
    %2325 = vmatmul.mubr.bf16.gmra.mxu0 %v2219
    %v2326 = vpop.f32.mrf.mxu0
    %v2327 = vadd.f32 0.0, %v2326
    %v2328 = vpop.f32.mrf.mxu0
    %v2329 = vpop.f32.mrf.mxu0
    %v2330 = vadd.f32 0.0, %v2329
    %v2331 = vpop.f32.mrf.mxu0
    %2332 = vdwg.mxu0
    %v2349 = vunpack.c.l.b16 %v2202
    %v2350 = vunpack.c.l.b16 %v2203
    %v2351 = vunpack.c.l.b16 %v2204
    %v2352 = vunpack.c.l.b16 %v2205
    %v2353 = vunpack.c.l.b16 %v2206
    %v2354 = vunpack.c.l.b16 %v2207
    %v2355 = vunpack.c.l.b16 %v2208
    %v2356 = vunpack.c.l.b16 %v2209
    %v2357 = vunpack.c.l.b16 %v2210
    %v2358 = vunpack.c.l.b16 %v2211
    %v2359 = vunpack.c.l.b16 %v2212
    %v2360 = vunpack.c.l.b16 %v2213
    %v2361 = vunpack.c.l.b16 %v2214
    %v2362 = vunpack.c.l.b16 %v2215
    %v2363 = vunpack.c.l.b16 %v2216
    %v2364 = vunpack.c.l.b16 %v2217
    %v2365 = vpack.c.b16 %v2350, %v2349
    %v2366 = vpack.c.b16 %v2352, %v2351
    %v2367 = vpack.c.b16 %v2354, %v2353
    %v2368 = vpack.c.b16 %v2356, %v2355
    %v2369 = vpack.c.b16 %v2358, %v2357
    %v2370 = vpack.c.b16 %v2360, %v2359
    %v2371 = vpack.c.b16 %v2362, %v2361
    %v2372 = vpack.c.b16 %v2364, %v2363
    %2381 = vmatprep.subr.bf16.mxu0 0
    %2382 = vmatpush1.bf16.msra.mxu0 %v2372
    %2383 = vmatprep.subr.bf16.mxu0 0
    %2384 = vmatpush1.bf16.msra.mxu0 %v2371
    %2385 = vmatprep.subr.bf16.mxu0 0
    %2386 = vmatpush1.bf16.msra.mxu0 %v2370
    %2387 = vmatprep.subr.bf16.mxu0 0
    %2388 = vmatpush1.bf16.msra.mxu0 %v2369
    %2389 = vmatprep.subr.bf16.mxu0 0
    %2390 = vmatpush1.bf16.msra.mxu0 %v2368
    %2391 = vmatprep.subr.bf16.mxu0 0
    %2392 = vmatpush1.bf16.msra.mxu0 %v2367
    %2393 = vmatprep.subr.bf16.mxu0 0
    %2394 = vmatpush1.bf16.msra.mxu0 %v2366
    %2395 = vmatprep.subr.bf16.mxu0 0
    %2396 = vmatpush1.bf16.msra.mxu0 %v2365
    %2397 = vmatprep.subr.bf16.mxu0 0
    %2398 = vmatpush2.bf16.msra.mxu0 0
    %2399 = vmatprep.subr.bf16.mxu0 0
    %2400 = vmatpush2.bf16.msra.mxu0 0
    %2401 = vmatprep.subr.bf16.mxu0 0
    %2402 = vmatpush2.bf16.msra.mxu0 0
    %2403 = vmatprep.subr.bf16.mxu0 0
    %2404 = vmatpush2.bf16.msra.mxu0 0
    %2405 = vmatprep.subr.bf16.mxu0 0
    %2406 = vmatpush2.bf16.msra.mxu0 0
    %2407 = vmatprep.subr.bf16.mxu0 0
    %2408 = vmatpush2.bf16.msra.mxu0 0
    %2409 = vmatprep.subr.bf16.mxu0 0
    %2410 = vmatpush2.bf16.msra.mxu0 0
    %2411 = vmatprep.subr.bf16.mxu0 0
    %2412 = vmatpush2.bf16.msra.mxu0 0
    %2413 = vmatprep.mubr.bf16.mxu0 0
    %2414 = vmatmul.mubr.bf16.gmra.mxu0 %v2200
    %v2415 = vpop.f32.mrf.mxu0
    %v2416 = vadd.f32 %v2319, %v2415
    %v2417 = vpop.f32.mrf.mxu0
    %v2418 = vpop.f32.mrf.mxu0
    %v2419 = vadd.f32 %v2322, %v2418
    %v2420 = vpop.f32.mrf.mxu0
    %2421 = vmatprep.mubr.bf16.mxu0 0
    %2422 = vmatmul.mubr.bf16.gmra.mxu0 %v2201
    %v2423 = vpop.f32.mrf.mxu0
    %v2424 = vadd.f32 %v2327, %v2423
    %v2425 = vpop.f32.mrf.mxu0
    %v2426 = vpop.f32.mrf.mxu0
    %v2427 = vadd.f32 %v2330, %v2426
    %v2428 = vpop.f32.mrf.mxu0
    %2429 = vdwg.mxu0
    %v2430 = vpack.c.bf16 %v2187, %v2182
    %v2431 = vpack.c.bf16 %v2197, %v2192
    %v2432 = vld [vmem:[#allocation17] sm:$0xf]
    %v2433 = vld [vmem:[#allocation17 + $0x4] sm:$0xf]
    %v2434 = vld [vmem:[#allocation17 + $0x8] sm:$0xf]
    %v2435 = vld [vmem:[#allocation17 + $0xc] sm:$0xf]
    %v2436 = vld [vmem:[#allocation17 + $0x10] sm:$0xf]
    %v2437 = vld [vmem:[#allocation17 + $0x14] sm:$0xf]
    %v2438 = vld [vmem:[#allocation17 + $0x18] sm:$0xf]
    %v2439 = vld [vmem:[#allocation17 + $0x1c] sm:$0xf]
    %v2440 = vld [vmem:[#allocation17 + $0x20] sm:$0xf]
    %v2441 = vld [vmem:[#allocation17 + $0x24] sm:$0xf]
    %v2442 = vld [vmem:[#allocation17 + $0x28] sm:$0xf]
    %v2443 = vld [vmem:[#allocation17 + $0x2c] sm:$0xf]
    %v2444 = vld [vmem:[#allocation17 + $0x30] sm:$0xf]
    %v2445 = vld [vmem:[#allocation17 + $0x34] sm:$0xf]
    %v2446 = vld [vmem:[#allocation17 + $0x38] sm:$0xf]
    %v2447 = vld [vmem:[#allocation17 + $0x3c] sm:$0xf]
    %v2464 = vunpack.c.l.b16 %v2432
    %v2465 = vunpack.c.l.b16 %v2433
    %v2466 = vunpack.c.l.b16 %v2434
    %v2467 = vunpack.c.l.b16 %v2435
    %v2468 = vunpack.c.l.b16 %v2436
    %v2469 = vunpack.c.l.b16 %v2437
    %v2470 = vunpack.c.l.b16 %v2438
    %v2471 = vunpack.c.l.b16 %v2439
    %v2472 = vunpack.c.l.b16 %v2440
    %v2473 = vunpack.c.l.b16 %v2441
    %v2474 = vunpack.c.l.b16 %v2442
    %v2475 = vunpack.c.l.b16 %v2443
    %v2476 = vunpack.c.l.b16 %v2444
    %v2477 = vunpack.c.l.b16 %v2445
    %v2478 = vunpack.c.l.b16 %v2446
    %v2479 = vunpack.c.l.b16 %v2447
    %v2480 = vpack.c.b16 %v2465, %v2464
    %v2481 = vpack.c.b16 %v2467, %v2466
    %v2482 = vpack.c.b16 %v2469, %v2468
    %v2483 = vpack.c.b16 %v2471, %v2470
    %v2484 = vpack.c.b16 %v2473, %v2472
    %v2485 = vpack.c.b16 %v2475, %v2474
    %v2486 = vpack.c.b16 %v2477, %v2476
    %v2487 = vpack.c.b16 %v2479, %v2478
    %2496 = vmatprep.subr.bf16.mxu0 0
    %2497 = vmatpush1.bf16.msra.mxu0 %v2487
    %2498 = vmatprep.subr.bf16.mxu0 0
    %2499 = vmatpush1.bf16.msra.mxu0 %v2486
    %2500 = vmatprep.subr.bf16.mxu0 0
    %2501 = vmatpush1.bf16.msra.mxu0 %v2485
    %2502 = vmatprep.subr.bf16.mxu0 0
    %2503 = vmatpush1.bf16.msra.mxu0 %v2484
    %2504 = vmatprep.subr.bf16.mxu0 0
    %2505 = vmatpush1.bf16.msra.mxu0 %v2483
    %2506 = vmatprep.subr.bf16.mxu0 0
    %2507 = vmatpush1.bf16.msra.mxu0 %v2482
    %2508 = vmatprep.subr.bf16.mxu0 0
    %2509 = vmatpush1.bf16.msra.mxu0 %v2481
    %2510 = vmatprep.subr.bf16.mxu0 0
    %2511 = vmatpush1.bf16.msra.mxu0 %v2480
    %2512 = vmatprep.subr.bf16.mxu0 0
    %2513 = vmatpush2.bf16.msra.mxu0 0
    %2514 = vmatprep.subr.bf16.mxu0 0
    %2515 = vmatpush2.bf16.msra.mxu0 0
    %2516 = vmatprep.subr.bf16.mxu0 0
    %2517 = vmatpush2.bf16.msra.mxu0 0
    %2518 = vmatprep.subr.bf16.mxu0 0
    %2519 = vmatpush2.bf16.msra.mxu0 0
    %2520 = vmatprep.subr.bf16.mxu0 0
    %2521 = vmatpush2.bf16.msra.mxu0 0
    %2522 = vmatprep.subr.bf16.mxu0 0
    %2523 = vmatpush2.bf16.msra.mxu0 0
    %2524 = vmatprep.subr.bf16.mxu0 0
    %2525 = vmatpush2.bf16.msra.mxu0 0
    %2526 = vmatprep.subr.bf16.mxu0 0
    %2527 = vmatpush2.bf16.msra.mxu0 0
    %2528 = vmatprep.mubr.bf16.mxu0 0
    %2529 = vmatmul.mubr.bf16.gmra.mxu0 %v2430
    %v2530 = vpop.f32.mrf.mxu0
    %v2531 = vadd.f32 0.0, %v2530
    %v2532 = vpop.f32.mrf.mxu0
    %v2533 = vpop.f32.mrf.mxu0
    %v2534 = vadd.f32 0.0, %v2533
    %v2535 = vpop.f32.mrf.mxu0
    %2536 = vmatprep.mubr.bf16.mxu0 0
    %2537 = vmatmul.mubr.bf16.gmra.mxu0 %v2431
    %v2538 = vpop.f32.mrf.mxu0
    %v2539 = vadd.f32 0.0, %v2538
    %v2540 = vpop.f32.mrf.mxu0
    %v2541 = vpop.f32.mrf.mxu0
    %v2542 = vadd.f32 0.0, %v2541
    %v2543 = vpop.f32.mrf.mxu0
    %2544 = vdwg.mxu0
    %v2545 = vadd.f32 %v2416, %v2531
    %v2546 = vadd.f32 %v2419, %v2534
    %v2547 = vadd.f32 %v2424, %v2539
    %v2548 = vadd.f32 %v2427, %v2542
    %2549 = vmatprep.subr.mxu0 0.0
    %2550 = vmatpush1.msra.mxu0 %v281
    %2551 = vmatprep.subr.mxu0 0.0
    %2552 = vmatpush1.msra.mxu0 %v280
    %2553 = vmatprep.subr.mxu0 0.0
    %2554 = vmatpush1.msra.mxu0 %v279
    %2555 = vmatprep.subr.mxu0 0.0
    %2556 = vmatpush1.msra.mxu0 %v278
    %2557 = vmatprep.subr.mxu0 0.0
    %2558 = vmatpush1.msra.mxu0 %v277
    %2559 = vmatprep.subr.mxu0 0.0
    %2560 = vmatpush1.msra.mxu0 %v276
    %2561 = vmatprep.subr.mxu0 0.0
    %2562 = vmatpush1.msra.mxu0 %v275
    %2563 = vmatprep.subr.mxu0 0.0
    %2564 = vmatpush1.msra.mxu0 %v274
    %2565 = vmatprep.subr.mxu0 0.0
    %2566 = vmatpush1.msra.mxu0 %v273
    %2567 = vmatprep.subr.mxu0 0.0
    %2568 = vmatpush1.msra.mxu0 %v272
    %2569 = vmatprep.subr.mxu0 0.0
    %2570 = vmatpush1.msra.mxu0 %v271
    %2571 = vmatprep.subr.mxu0 0.0
    %2572 = vmatpush1.msra.mxu0 %v270
    %2573 = vmatprep.subr.mxu0 0.0
    %2574 = vmatpush1.msra.mxu0 %v269
    %2575 = vmatprep.subr.mxu0 0.0
    %2576 = vmatpush1.msra.mxu0 %v268
    %2577 = vmatprep.subr.mxu0 0.0
    %2578 = vmatpush1.msra.mxu0 %v267
    %2579 = vmatprep.subr.mxu0 0.0
    %2580 = vmatpush1.msra.mxu0 %v266
    %2581 = vmatprep.subr.mxu0 0.0
    %2582 = vmatpush2.msra.mxu0 0.0
    %2583 = vmatprep.subr.mxu0 0.0
    %2584 = vmatpush2.msra.mxu0 0.0
    %2585 = vmatprep.subr.mxu0 0.0
    %2586 = vmatpush2.msra.mxu0 0.0
    %2587 = vmatprep.subr.mxu0 0.0
    %2588 = vmatpush2.msra.mxu0 0.0
    %2589 = vmatprep.subr.mxu0 0.0
    %2590 = vmatpush2.msra.mxu0 0.0
    %2591 = vmatprep.subr.mxu0 0.0
    %2592 = vmatpush2.msra.mxu0 0.0
    %2593 = vmatprep.subr.mxu0 0.0
    %2594 = vmatpush2.msra.mxu0 0.0
    %2595 = vmatprep.subr.mxu0 0.0
    %2596 = vmatpush2.msra.mxu0 0.0
    %2597 = vmatprep.subr.mxu0 0.0
    %2598 = vmatpush2.msra.mxu0 0.0
    %2599 = vmatprep.subr.mxu0 0.0
    %2600 = vmatpush2.msra.mxu0 0.0
    %2601 = vmatprep.subr.mxu0 0.0
    %2602 = vmatpush2.msra.mxu0 0.0
    %2603 = vmatprep.subr.mxu0 0.0
    %2604 = vmatpush2.msra.mxu0 0.0
    %2605 = vmatprep.subr.mxu0 0.0
    %2606 = vmatpush2.msra.mxu0 0.0
    %2607 = vmatprep.subr.mxu0 0.0
    %2608 = vmatpush2.msra.mxu0 0.0
    %2609 = vmatprep.subr.mxu0 0.0
    %2610 = vmatpush2.msra.mxu0 0.0
    %2611 = vmatprep.subr.mxu0 0.0
    %2612 = vmatpush2.msra.mxu0 0.0
    %2613 = vmatprep.mubr.f32.mxu0 0.0
    %2614 = vmatmul.mubr.f32.gmra.mxu0 %v2545
    %v2615 = vpop.f32.mrf.mxu0
    %v2616 = vadd.f32 0.0, %v2615
    %v2617 = vpop.f32.mrf.mxu0
    %2618 = vmatprep.mubr.f32.mxu0 0.0
    %2619 = vmatmul.mubr.f32.gmra.mxu0 %v2546
    %v2620 = vpop.f32.mrf.mxu0
    %v2621 = vadd.f32 0.0, %v2620
    %v2622 = vpop.f32.mrf.mxu0
    %2623 = vmatprep.mubr.f32.mxu0 0.0
    %2624 = vmatmul.mubr.f32.gmra.mxu0 %v2547
    %v2625 = vpop.f32.mrf.mxu0
    %v2626 = vadd.f32 0.0, %v2625
    %v2627 = vpop.f32.mrf.mxu0
    %2628 = vmatprep.mubr.f32.mxu0 0.0
    %2629 = vmatmul.mubr.f32.gmra.mxu0 %v2548
    %v2630 = vpop.f32.mrf.mxu0
    %v2631 = vadd.f32 0.0, %v2630
    %v2632 = vpop.f32.mrf.mxu0
    %2633 = vdwg.mxu0
    %v2634 = vmul.f32 %v2545, %v2545
    %v2635 = vmul.f32 %v2546, %v2546
    %v2636 = vmul.f32 %v2547, %v2547
    %v2637 = vmul.f32 %v2548, %v2548
    %2638 = vmatprep.subr.mxu0 0.0
    %2639 = vmatpush1.msra.mxu0 %v281
    %2640 = vmatprep.subr.mxu0 0.0
    %2641 = vmatpush1.msra.mxu0 %v280
    %2642 = vmatprep.subr.mxu0 0.0
    %2643 = vmatpush1.msra.mxu0 %v279
    %2644 = vmatprep.subr.mxu0 0.0
    %2645 = vmatpush1.msra.mxu0 %v278
    %2646 = vmatprep.subr.mxu0 0.0
    %2647 = vmatpush1.msra.mxu0 %v277
    %2648 = vmatprep.subr.mxu0 0.0
    %2649 = vmatpush1.msra.mxu0 %v276
    %2650 = vmatprep.subr.mxu0 0.0
    %2651 = vmatpush1.msra.mxu0 %v275
    %2652 = vmatprep.subr.mxu0 0.0
    %2653 = vmatpush1.msra.mxu0 %v274
    %2654 = vmatprep.subr.mxu0 0.0
    %2655 = vmatpush1.msra.mxu0 %v273
    %2656 = vmatprep.subr.mxu0 0.0
    %2657 = vmatpush1.msra.mxu0 %v272
    %2658 = vmatprep.subr.mxu0 0.0
    %2659 = vmatpush1.msra.mxu0 %v271
    %2660 = vmatprep.subr.mxu0 0.0
    %2661 = vmatpush1.msra.mxu0 %v270
    %2662 = vmatprep.subr.mxu0 0.0
    %2663 = vmatpush1.msra.mxu0 %v269
    %2664 = vmatprep.subr.mxu0 0.0
    %2665 = vmatpush1.msra.mxu0 %v268
    %2666 = vmatprep.subr.mxu0 0.0
    %2667 = vmatpush1.msra.mxu0 %v267
    %2668 = vmatprep.subr.mxu0 0.0
    %2669 = vmatpush1.msra.mxu0 %v266
    %2670 = vmatprep.subr.mxu0 0.0
    %2671 = vmatpush2.msra.mxu0 0.0
    %2672 = vmatprep.subr.mxu0 0.0
    %2673 = vmatpush2.msra.mxu0 0.0
    %2674 = vmatprep.subr.mxu0 0.0
    %2675 = vmatpush2.msra.mxu0 0.0
    %2676 = vmatprep.subr.mxu0 0.0
    %2677 = vmatpush2.msra.mxu0 0.0
    %2678 = vmatprep.subr.mxu0 0.0
    %2679 = vmatpush2.msra.mxu0 0.0
    %2680 = vmatprep.subr.mxu0 0.0
    %2681 = vmatpush2.msra.mxu0 0.0
    %2682 = vmatprep.subr.mxu0 0.0
    %2683 = vmatpush2.msra.mxu0 0.0
    %2684 = vmatprep.subr.mxu0 0.0
    %2685 = vmatpush2.msra.mxu0 0.0
    %2686 = vmatprep.subr.mxu0 0.0
    %2687 = vmatpush2.msra.mxu0 0.0
    %2688 = vmatprep.subr.mxu0 0.0
    %2689 = vmatpush2.msra.mxu0 0.0
    %2690 = vmatprep.subr.mxu0 0.0
    %2691 = vmatpush2.msra.mxu0 0.0
    %2692 = vmatprep.subr.mxu0 0.0
    %2693 = vmatpush2.msra.mxu0 0.0
    %2694 = vmatprep.subr.mxu0 0.0
    %2695 = vmatpush2.msra.mxu0 0.0
    %2696 = vmatprep.subr.mxu0 0.0
    %2697 = vmatpush2.msra.mxu0 0.0
    %2698 = vmatprep.subr.mxu0 0.0
    %2699 = vmatpush2.msra.mxu0 0.0
    %2700 = vmatprep.subr.mxu0 0.0
    %2701 = vmatpush2.msra.mxu0 0.0
    %2702 = vmatprep.mubr.f32.mxu0 0.0
    %2703 = vmatmul.mubr.f32.gmra.mxu0 %v2634
    %v2704 = vpop.f32.mrf.mxu0
    %v2705 = vadd.f32 0.0, %v2704
    %v2706 = vpop.f32.mrf.mxu0
    %2707 = vmatprep.mubr.f32.mxu0 0.0
    %2708 = vmatmul.mubr.f32.gmra.mxu0 %v2635
    %v2709 = vpop.f32.mrf.mxu0
    %v2710 = vadd.f32 0.0, %v2709
    %v2711 = vpop.f32.mrf.mxu0
    %2712 = vmatprep.mubr.f32.mxu0 0.0
    %2713 = vmatmul.mubr.f32.gmra.mxu0 %v2636
    %v2714 = vpop.f32.mrf.mxu0
    %v2715 = vadd.f32 0.0, %v2714
    %v2716 = vpop.f32.mrf.mxu0
    %2717 = vmatprep.mubr.f32.mxu0 0.0
    %2718 = vmatmul.mubr.f32.gmra.mxu0 %v2637
    %v2719 = vpop.f32.mrf.mxu0
    %v2720 = vadd.f32 0.0, %v2719
    %v2721 = vpop.f32.mrf.mxu0
    %2722 = vdwg.mxu0
    %v2723 = vsel %vm928, %v2616, 0.0
    %v2724 = vsel %vm928, %v2621, 0.0
    %v2725 = vadd.f32 %v2723, %v2724
    %v2726 = vsel %vm928, %v2626, 0.0
    %v2727 = vadd.f32 %v2725, %v2726
    %v2728 = vsel %vm928, %v2631, 0.0
    %v2729 = vadd.f32 %v2727, %v2728
    %v2730 = vrot.slane %v2729, 4
    %v2731 = vadd.f32 %v2729, %v2730
    %v2732 = vrot.slane %v2731, 2
    %v2733 = vadd.f32 %v2731, %v2732
    %v2734 = vrot.slane %v2733, 1
    %v2735 = vadd.f32 %v2733, %v2734
    %v2736 = vsel %vm928, %v2705, 0.0
    %v2737 = vsel %vm928, %v2710, 0.0
    %v2738 = vadd.f32 %v2736, %v2737
    %v2739 = vsel %vm928, %v2715, 0.0
    %v2740 = vadd.f32 %v2738, %v2739
    %v2741 = vsel %vm928, %v2720, 0.0
    %v2742 = vadd.f32 %v2740, %v2741
    %v2743 = vrot.slane %v2742, 4
    %v2744 = vadd.f32 %v2742, %v2743
    %v2745 = vrot.slane %v2744, 2
    %v2746 = vadd.f32 %v2744, %v2745
    %v2747 = vrot.slane %v2746, 1
    %v2748 = vadd.f32 %v2746, %v2747
    %v2749 = vmul.f32 %v2735, 0.001953125
    %v2750 = vmul.f32 %v2748, 0.001953125
    %v2751 = vmul.f32 %v2749, %v2749
    %v2752 = vsub.f32 %v2750, %v2751
    %v2753 = vmax.f32 %v2752, 0.0
    %v2754 = vld [vmem:[%s18] sm:$0x1]
    %v2755 = vadd.f32 %v2753, 1e-05
    %v2756 = vrsqrt.pop %v2755
    %v2757 = vmul.f32 %v2754, %v2756
    %v2758 = vld [vmem:[%s19] sm:$0x1]
    %v2759 = vmul.f32 %v2749, %v2757
    %v2760 = vsub.f32 %v2758, %v2759
    %v2762 = vsel %vm928, %v2757, 0
    %2764 = vmatprep.subr.mxu0 0.0
    %2765 = vmatpush1.msra.mxu0 0.0
    %2766 = vmatprep.subr.mxu0 0.0
    %2767 = vmatpush1.msra.mxu0 0.0
    %2768 = vmatprep.subr.mxu0 0.0
    %2769 = vmatpush1.msra.mxu0 0.0
    %2770 = vmatprep.subr.mxu0 0.0
    %2771 = vmatpush1.msra.mxu0 0.0
    %2772 = vmatprep.subr.mxu0 0.0
    %2773 = vmatpush1.msra.mxu0 0.0
    %2774 = vmatprep.subr.mxu0 0.0
    %2775 = vmatpush1.msra.mxu0 0.0
    %2776 = vmatprep.subr.mxu0 0.0
    %2777 = vmatpush1.msra.mxu0 0.0
    %2778 = vmatprep.subr.mxu0 0.0
    %2779 = vmatpush1.msra.mxu0 0.0
    %2780 = vmatprep.subr.mxu0 0.0
    %2781 = vmatpush1.msra.mxu0 0.0
    %2782 = vmatprep.subr.mxu0 0.0
    %2783 = vmatpush1.msra.mxu0 0.0
    %2784 = vmatprep.subr.mxu0 0.0
    %2785 = vmatpush1.msra.mxu0 0.0
    %2786 = vmatprep.subr.mxu0 0.0
    %2787 = vmatpush1.msra.mxu0 0.0
    %2788 = vmatprep.subr.mxu0 0.0
    %2789 = vmatpush1.msra.mxu0 0.0
    %2790 = vmatprep.subr.mxu0 0.0
    %2791 = vmatpush1.msra.mxu0 0.0
    %2792 = vmatprep.subr.mxu0 0.0
    %2793 = vmatpush1.msra.mxu0 0.0
    %2794 = vmatprep.subr.mxu0 0.0
    %2795 = vmatpush1.msra.mxu0 %v282
    %2796 = vmatprep.subr.mxu0 0.0
    %2797 = vmatpush2.msra.mxu0 0.0
    %2798 = vmatprep.subr.mxu0 0.0
    %2799 = vmatpush2.msra.mxu0 0.0
    %2800 = vmatprep.subr.mxu0 0.0
    %2801 = vmatpush2.msra.mxu0 0.0
    %2802 = vmatprep.subr.mxu0 0.0
    %2803 = vmatpush2.msra.mxu0 0.0
    %2804 = vmatprep.subr.mxu0 0.0
    %2805 = vmatpush2.msra.mxu0 0.0
    %2806 = vmatprep.subr.mxu0 0.0
    %2807 = vmatpush2.msra.mxu0 0.0
    %2808 = vmatprep.subr.mxu0 0.0
    %2809 = vmatpush2.msra.mxu0 0.0
    %2810 = vmatprep.subr.mxu0 0.0
    %2811 = vmatpush2.msra.mxu0 0.0
    %2812 = vmatprep.subr.mxu0 0.0
    %2813 = vmatpush2.msra.mxu0 0.0
    %2814 = vmatprep.subr.mxu0 0.0
    %2815 = vmatpush2.msra.mxu0 0.0
    %2816 = vmatprep.subr.mxu0 0.0
    %2817 = vmatpush2.msra.mxu0 0.0
    %2818 = vmatprep.subr.mxu0 0.0
    %2819 = vmatpush2.msra.mxu0 0.0
    %2820 = vmatprep.subr.mxu0 0.0
    %2821 = vmatpush2.msra.mxu0 0.0
    %2822 = vmatprep.subr.mxu0 0.0
    %2823 = vmatpush2.msra.mxu0 0.0
    %2824 = vmatprep.subr.mxu0 0.0
    %2825 = vmatpush2.msra.mxu0 0.0
    %2826 = vmatprep.subr.mxu0 0.0
    %2827 = vmatpush2.msra.mxu0 0.0
    %2828 = vmatprep.mubr.f32.mxu0 0.0
    %2829 = vmatmul.mubr.f32.gmra.mxu0 %v2762
    %v2830 = vpop.f32.mrf.mxu0
    %v2831 = vadd.f32 0.0, %v2830
    %v2832 = vpop.f32.mrf.mxu0
    %2833 = vdwg.mxu0
    %v2835 = vsel %vm928, %v2760, 0
    %2837 = vmatprep.subr.mxu0 0.0
    %2838 = vmatpush1.msra.mxu0 0.0
    %2839 = vmatprep.subr.mxu0 0.0
    %2840 = vmatpush1.msra.mxu0 0.0
    %2841 = vmatprep.subr.mxu0 0.0
    %2842 = vmatpush1.msra.mxu0 0.0
    %2843 = vmatprep.subr.mxu0 0.0
    %2844 = vmatpush1.msra.mxu0 0.0
    %2845 = vmatprep.subr.mxu0 0.0
    %2846 = vmatpush1.msra.mxu0 0.0
    %2847 = vmatprep.subr.mxu0 0.0
    %2848 = vmatpush1.msra.mxu0 0.0
    %2849 = vmatprep.subr.mxu0 0.0
    %2850 = vmatpush1.msra.mxu0 0.0
    %2851 = vmatprep.subr.mxu0 0.0
    %2852 = vmatpush1.msra.mxu0 0.0
    %2853 = vmatprep.subr.mxu0 0.0
    %2854 = vmatpush1.msra.mxu0 0.0
    %2855 = vmatprep.subr.mxu0 0.0
    %2856 = vmatpush1.msra.mxu0 0.0
    %2857 = vmatprep.subr.mxu0 0.0
    %2858 = vmatpush1.msra.mxu0 0.0
    %2859 = vmatprep.subr.mxu0 0.0
    %2860 = vmatpush1.msra.mxu0 0.0
    %2861 = vmatprep.subr.mxu0 0.0
    %2862 = vmatpush1.msra.mxu0 0.0
    %2863 = vmatprep.subr.mxu0 0.0
    %2864 = vmatpush1.msra.mxu0 0.0
    %2865 = vmatprep.subr.mxu0 0.0
    %2866 = vmatpush1.msra.mxu0 0.0
    %2867 = vmatprep.subr.mxu0 0.0
    %2868 = vmatpush1.msra.mxu0 %v282
    %2869 = vmatprep.subr.mxu0 0.0
    %2870 = vmatpush2.msra.mxu0 0.0
    %2871 = vmatprep.subr.mxu0 0.0
    %2872 = vmatpush2.msra.mxu0 0.0
    %2873 = vmatprep.subr.mxu0 0.0
    %2874 = vmatpush2.msra.mxu0 0.0
    %2875 = vmatprep.subr.mxu0 0.0
    %2876 = vmatpush2.msra.mxu0 0.0
    %2877 = vmatprep.subr.mxu0 0.0
    %2878 = vmatpush2.msra.mxu0 0.0
    %2879 = vmatprep.subr.mxu0 0.0
    %2880 = vmatpush2.msra.mxu0 0.0
    %2881 = vmatprep.subr.mxu0 0.0
    %2882 = vmatpush2.msra.mxu0 0.0
    %2883 = vmatprep.subr.mxu0 0.0
    %2884 = vmatpush2.msra.mxu0 0.0
    %2885 = vmatprep.subr.mxu0 0.0
    %2886 = vmatpush2.msra.mxu0 0.0
    %2887 = vmatprep.subr.mxu0 0.0
    %2888 = vmatpush2.msra.mxu0 0.0
    %2889 = vmatprep.subr.mxu0 0.0
    %2890 = vmatpush2.msra.mxu0 0.0
    %2891 = vmatprep.subr.mxu0 0.0
    %2892 = vmatpush2.msra.mxu0 0.0
    %2893 = vmatprep.subr.mxu0 0.0
    %2894 = vmatpush2.msra.mxu0 0.0
    %2895 = vmatprep.subr.mxu0 0.0
    %2896 = vmatpush2.msra.mxu0 0.0
    %2897 = vmatprep.subr.mxu0 0.0
    %2898 = vmatpush2.msra.mxu0 0.0
    %2899 = vmatprep.subr.mxu0 0.0
    %2900 = vmatpush2.msra.mxu0 0.0
    %2901 = vmatprep.mubr.f32.mxu0 0.0
    %2902 = vmatmul.mubr.f32.gmra.mxu0 %v2835
    %v2903 = vpop.f32.mrf.mxu0
    %v2904 = vadd.f32 0.0, %v2903
    %v2905 = vpop.f32.mrf.mxu0
    %2906 = vdwg.mxu0
    %v2907 = vlaneseq
    %v2908 = vshrl.u32 %v2907, 7
    %v2909 = vsub.s32 0, %v2908
    %v2910 = vrot.slane %v2831, %v2909
    %v2911 = vmul.f32 %v2545, %v2910
    %v2912 = vmul.f32 %v2546, %v2910
    %v2913 = vmul.f32 %v2547, %v2910
    %v2914 = vmul.f32 %v2548, %v2910
    %v2915 = vlaneseq
    %v2916 = vshrl.u32 %v2915, 7
    %v2917 = vsub.s32 0, %v2916
    %v2918 = vrot.slane %v2904, %v2917
    %v2919 = vadd.f32 %v2911, %v2918
    %v2920 = vadd.f32 %v2912, %v2918
    %v2921 = vadd.f32 %v2913, %v2918
    %v2922 = vadd.f32 %v2914, %v2918
    %v2923 = vmax.f32 %v2919, 0.0
    %v2924 = vmax.f32 %v2920, 0.0
    %v2925 = vmax.f32 %v2921, 0.0
    %v2926 = vmax.f32 %v2922, 0.0
    %2927 = vmatprep.subr.mxu0 0.0
    %2928 = vmatpush1.msra.mxu0 0.0
    %2929 = vmatprep.subr.mxu0 0.0
    %2930 = vmatpush1.msra.mxu0 0.0
    %2931 = vmatprep.subr.mxu0 0.0
    %2932 = vmatpush1.msra.mxu0 0.0
    %2933 = vmatprep.subr.mxu0 0.0
    %2934 = vmatpush1.msra.mxu0 0.0
    %2935 = vmatprep.subr.mxu0 0.0
    %2936 = vmatpush1.msra.mxu0 0.0
    %2937 = vmatprep.subr.mxu0 0.0
    %2938 = vmatpush1.msra.mxu0 0.0
    %2939 = vmatprep.subr.mxu0 0.0
    %2940 = vmatpush1.msra.mxu0 0.0
    %2941 = vmatprep.subr.mxu0 0.0
    %2942 = vmatpush1.msra.mxu0 0.0
    %2943 = vmatprep.subr.mxu0 0.0
    %2944 = vmatpush1.msra.mxu0 0.0
    %2945 = vmatprep.subr.mxu0 0.0
    %2946 = vmatpush1.msra.mxu0 0.0
    %2947 = vmatprep.subr.mxu0 0.0
    %2948 = vmatpush1.msra.mxu0 0.0
    %2949 = vmatprep.subr.mxu0 0.0
    %2950 = vmatpush1.msra.mxu0 0.0
    %2951 = vmatprep.subr.mxu0 0.0
    %2952 = vmatpush1.msra.mxu0 %v2926
    %2953 = vmatprep.subr.mxu0 0.0
    %2954 = vmatpush1.msra.mxu0 %v2925
    %2955 = vmatprep.subr.mxu0 0.0
    %2956 = vmatpush1.msra.mxu0 %v2924
    %2957 = vmatprep.subr.mxu0 0.0
    %2958 = vmatpush1.msra.mxu0 %v2923
    %2959 = vmatprep.subr.mxu0 0.0
    %2960 = vmatpush2.msra.mxu0 0.0
    %2961 = vmatprep.subr.mxu0 0.0
    %2962 = vmatpush2.msra.mxu0 0.0
    %2963 = vmatprep.subr.mxu0 0.0
    %2964 = vmatpush2.msra.mxu0 0.0
    %2965 = vmatprep.subr.mxu0 0.0
    %2966 = vmatpush2.msra.mxu0 0.0
    %2967 = vmatprep.subr.mxu0 0.0
    %2968 = vmatpush2.msra.mxu0 0.0
    %2969 = vmatprep.subr.mxu0 0.0
    %2970 = vmatpush2.msra.mxu0 0.0
    %2971 = vmatprep.subr.mxu0 0.0
    %2972 = vmatpush2.msra.mxu0 0.0
    %2973 = vmatprep.subr.mxu0 0.0
    %2974 = vmatpush2.msra.mxu0 0.0
    %2975 = vmatprep.subr.mxu0 0.0
    %2976 = vmatpush2.msra.mxu0 0.0
    %2977 = vmatprep.subr.mxu0 0.0
    %2978 = vmatpush2.msra.mxu0 0.0
    %2979 = vmatprep.subr.mxu0 0.0
    %2980 = vmatpush2.msra.mxu0 0.0
    %2981 = vmatprep.subr.mxu0 0.0
    %2982 = vmatpush2.msra.mxu0 0.0
    %2983 = vmatprep.subr.mxu0 0.0
    %2984 = vmatpush2.msra.mxu0 0.0
    %2985 = vmatprep.subr.mxu0 0.0
    %2986 = vmatpush2.msra.mxu0 0.0
    %2987 = vmatprep.subr.mxu0 0.0
    %2988 = vmatpush2.msra.mxu0 0.0
    %2989 = vmatprep.subr.mxu0 0.0
    %2990 = vmatpush2.msra.mxu0 0.0
    %2991 = vmatprep.mubr.f32.mxu0 0.0
    %2992 = vmatmul.mubr.f32.gmra.mxu0 %v289
    %v2993 = vpop.f32.mrf.mxu0
    %v2994 = vadd.f32 0.0, %v2993
    %v2995 = vpop.f32.mrf.mxu0
    %2996 = vmatprep.mubr.f32.mxu0 0.0
    %2997 = vmatmul.mubr.f32.gmra.mxu0 %v292
    %v2998 = vpop.f32.mrf.mxu0
    %v2999 = vadd.f32 0.0, %v2998
    %v3000 = vpop.f32.mrf.mxu0
    %3001 = vmatprep.mubr.f32.mxu0 0.0
    %3002 = vmatmul.mubr.f32.gmra.mxu0 %v295
    %v3003 = vpop.f32.mrf.mxu0
    %v3004 = vadd.f32 0.0, %v3003
    %v3005 = vpop.f32.mrf.mxu0
    %3006 = vmatprep.mubr.f32.mxu0 0.0
    %3007 = vmatmul.mubr.f32.gmra.mxu0 %v298
    %v3008 = vpop.f32.mrf.mxu0
    %v3009 = vadd.f32 0.0, %v3008
    %v3010 = vpop.f32.mrf.mxu0
    %3011 = vdwg.mxu0
    %3012 = vmatprep.subr.mxu0 0.0
    %3013 = vmatpush1.msra.mxu0 0.0
    %3014 = vmatprep.subr.mxu0 0.0
    %3015 = vmatpush1.msra.mxu0 0.0
    %3016 = vmatprep.subr.mxu0 0.0
    %3017 = vmatpush1.msra.mxu0 0.0
    %3018 = vmatprep.subr.mxu0 0.0
    %3019 = vmatpush1.msra.mxu0 0.0
    %3020 = vmatprep.subr.mxu0 0.0
    %3021 = vmatpush1.msra.mxu0 0.0
    %3022 = vmatprep.subr.mxu0 0.0
    %3023 = vmatpush1.msra.mxu0 0.0
    %3024 = vmatprep.subr.mxu0 0.0
    %3025 = vmatpush1.msra.mxu0 0.0
    %3026 = vmatprep.subr.mxu0 0.0
    %3027 = vmatpush1.msra.mxu0 0.0
    %3028 = vmatprep.subr.mxu0 0.0
    %3029 = vmatpush1.msra.mxu0 0.0
    %3030 = vmatprep.subr.mxu0 0.0
    %3031 = vmatpush1.msra.mxu0 0.0
    %3032 = vmatprep.subr.mxu0 0.0
    %3033 = vmatpush1.msra.mxu0 0.0
    %3034 = vmatprep.subr.mxu0 0.0
    %3035 = vmatpush1.msra.mxu0 0.0
    %3036 = vmatprep.subr.mxu0 0.0
    %3037 = vmatpush1.msra.mxu0 %v2926
    %3038 = vmatprep.subr.mxu0 0.0
    %3039 = vmatpush1.msra.mxu0 %v2925
    %3040 = vmatprep.subr.mxu0 0.0
    %3041 = vmatpush1.msra.mxu0 %v2924
    %3042 = vmatprep.subr.mxu0 0.0
    %3043 = vmatpush1.msra.mxu0 %v2923
    %3044 = vmatprep.subr.mxu0 0.0
    %3045 = vmatpush2.msra.mxu0 0.0
    %3046 = vmatprep.subr.mxu0 0.0
    %3047 = vmatpush2.msra.mxu0 0.0
    %3048 = vmatprep.subr.mxu0 0.0
    %3049 = vmatpush2.msra.mxu0 0.0
    %3050 = vmatprep.subr.mxu0 0.0
    %3051 = vmatpush2.msra.mxu0 0.0
    %3052 = vmatprep.subr.mxu0 0.0
    %3053 = vmatpush2.msra.mxu0 0.0
    %3054 = vmatprep.subr.mxu0 0.0
    %3055 = vmatpush2.msra.mxu0 0.0
    %3056 = vmatprep.subr.mxu0 0.0
    %3057 = vmatpush2.msra.mxu0 0.0
    %3058 = vmatprep.subr.mxu0 0.0
    %3059 = vmatpush2.msra.mxu0 0.0
    %3060 = vmatprep.subr.mxu0 0.0
    %3061 = vmatpush2.msra.mxu0 0.0
    %3062 = vmatprep.subr.mxu0 0.0
    %3063 = vmatpush2.msra.mxu0 0.0
    %3064 = vmatprep.subr.mxu0 0.0
    %3065 = vmatpush2.msra.mxu0 0.0
    %3066 = vmatprep.subr.mxu0 0.0
    %3067 = vmatpush2.msra.mxu0 0.0
    %3068 = vmatprep.subr.mxu0 0.0
    %3069 = vmatpush2.msra.mxu0 0.0
    %3070 = vmatprep.subr.mxu0 0.0
    %3071 = vmatpush2.msra.mxu0 0.0
    %3072 = vmatprep.subr.mxu0 0.0
    %3073 = vmatpush2.msra.mxu0 0.0
    %3074 = vmatprep.subr.mxu0 0.0
    %3075 = vmatpush2.msra.mxu0 0.0
    %3076 = vmatprep.mubr.f32.mxu0 0.0
    %3077 = vmatmul.mubr.f32.gmra.mxu0 %v386
    %v3078 = vpop.f32.mrf.mxu0
    %v3079 = vadd.f32 0.0, %v3078
    %v3080 = vpop.f32.mrf.mxu0
    %3081 = vmatprep.mubr.f32.mxu0 0.0
    %3082 = vmatmul.mubr.f32.gmra.mxu0 %v389
    %v3083 = vpop.f32.mrf.mxu0
    %v3084 = vadd.f32 0.0, %v3083
    %v3085 = vpop.f32.mrf.mxu0
    %3086 = vmatprep.mubr.f32.mxu0 0.0
    %3087 = vmatmul.mubr.f32.gmra.mxu0 %v392
    %v3088 = vpop.f32.mrf.mxu0
    %v3089 = vadd.f32 0.0, %v3088
    %v3090 = vpop.f32.mrf.mxu0
    %3091 = vmatprep.mubr.f32.mxu0 0.0
    %3092 = vmatmul.mubr.f32.gmra.mxu0 %v395
    %v3093 = vpop.f32.mrf.mxu0
    %v3094 = vadd.f32 0.0, %v3093
    %v3095 = vpop.f32.mrf.mxu0
    %3096 = vdwg.mxu0
    %v3097 = vpack.c.bf16 %v2999, %v2994
    %v3098 = vpack.c.bf16 %v3009, %v3004
    %v3099 = vld [vmem:[#allocation19] sm:$0xf]
    %v3100 = vld [vmem:[#allocation19 + $0x4] sm:$0xf]
    %v3101 = vld [vmem:[#allocation19 + $0x8] sm:$0xf]
    %v3102 = vld [vmem:[#allocation19 + $0xc] sm:$0xf]
    %v3103 = vld [vmem:[#allocation19 + $0x10] sm:$0xf]
    %v3104 = vld [vmem:[#allocation19 + $0x14] sm:$0xf]
    %v3105 = vld [vmem:[#allocation19 + $0x18] sm:$0xf]
    %v3106 = vld [vmem:[#allocation19 + $0x1c] sm:$0xf]
    %v3107 = vld [vmem:[#allocation19 + $0x20] sm:$0xf]
    %v3108 = vld [vmem:[#allocation19 + $0x24] sm:$0xf]
    %v3109 = vld [vmem:[#allocation19 + $0x28] sm:$0xf]
    %v3110 = vld [vmem:[#allocation19 + $0x2c] sm:$0xf]
    %v3111 = vld [vmem:[#allocation19 + $0x30] sm:$0xf]
    %v3112 = vld [vmem:[#allocation19 + $0x34] sm:$0xf]
    %v3113 = vld [vmem:[#allocation19 + $0x38] sm:$0xf]
    %v3114 = vld [vmem:[#allocation19 + $0x3c] sm:$0xf]
    %v3115 = vpack.c.bf16 %v2924, %v2923
    %v3116 = vpack.c.bf16 %v2926, %v2925
    %v3117 = vld [vmem:[#allocation20] sm:$0xf]
    %v3118 = vld [vmem:[#allocation20 + $0x4] sm:$0xf]
    %v3119 = vld [vmem:[#allocation20 + $0x8] sm:$0xf]
    %v3120 = vld [vmem:[#allocation20 + $0xc] sm:$0xf]
    %v3121 = vld [vmem:[#allocation20 + $0x10] sm:$0xf]
    %v3122 = vld [vmem:[#allocation20 + $0x14] sm:$0xf]
    %v3123 = vld [vmem:[#allocation20 + $0x18] sm:$0xf]
    %v3124 = vld [vmem:[#allocation20 + $0x1c] sm:$0xf]
    %v3125 = vld [vmem:[#allocation20 + $0x20] sm:$0xf]
    %v3126 = vld [vmem:[#allocation20 + $0x24] sm:$0xf]
    %v3127 = vld [vmem:[#allocation20 + $0x28] sm:$0xf]
    %v3128 = vld [vmem:[#allocation20 + $0x2c] sm:$0xf]
    %v3129 = vld [vmem:[#allocation20 + $0x30] sm:$0xf]
    %v3130 = vld [vmem:[#allocation20 + $0x34] sm:$0xf]
    %v3131 = vld [vmem:[#allocation20 + $0x38] sm:$0xf]
    %v3132 = vld [vmem:[#allocation20 + $0x3c] sm:$0xf]
    %v3149 = vunpack.c.l.b16 %v3117
    %v3150 = vunpack.c.l.b16 %v3118
    %v3151 = vunpack.c.l.b16 %v3119
    %v3152 = vunpack.c.l.b16 %v3120
    %v3153 = vunpack.c.l.b16 %v3121
    %v3154 = vunpack.c.l.b16 %v3122
    %v3155 = vunpack.c.l.b16 %v3123
    %v3156 = vunpack.c.l.b16 %v3124
    %v3157 = vunpack.c.l.b16 %v3125
    %v3158 = vunpack.c.l.b16 %v3126
    %v3159 = vunpack.c.l.b16 %v3127
    %v3160 = vunpack.c.l.b16 %v3128
    %v3161 = vunpack.c.l.b16 %v3129
    %v3162 = vunpack.c.l.b16 %v3130
    %v3163 = vunpack.c.l.b16 %v3131
    %v3164 = vunpack.c.l.b16 %v3132
    %v3165 = vpack.c.b16 %v3150, %v3149
    %v3166 = vpack.c.b16 %v3152, %v3151
    %v3167 = vpack.c.b16 %v3154, %v3153
    %v3168 = vpack.c.b16 %v3156, %v3155
    %v3169 = vpack.c.b16 %v3158, %v3157
    %v3170 = vpack.c.b16 %v3160, %v3159
    %v3171 = vpack.c.b16 %v3162, %v3161
    %v3172 = vpack.c.b16 %v3164, %v3163
    %3181 = vmatprep.subr.bf16.mxu0 0
    %3182 = vmatpush1.bf16.msra.mxu0 %v3172
    %3183 = vmatprep.subr.bf16.mxu0 0
    %3184 = vmatpush1.bf16.msra.mxu0 %v3171
    %3185 = vmatprep.subr.bf16.mxu0 0
    %3186 = vmatpush1.bf16.msra.mxu0 %v3170
    %3187 = vmatprep.subr.bf16.mxu0 0
    %3188 = vmatpush1.bf16.msra.mxu0 %v3169
    %3189 = vmatprep.subr.bf16.mxu0 0
    %3190 = vmatpush1.bf16.msra.mxu0 %v3168
    %3191 = vmatprep.subr.bf16.mxu0 0
    %3192 = vmatpush1.bf16.msra.mxu0 %v3167
    %3193 = vmatprep.subr.bf16.mxu0 0
    %3194 = vmatpush1.bf16.msra.mxu0 %v3166
    %3195 = vmatprep.subr.bf16.mxu0 0
    %3196 = vmatpush1.bf16.msra.mxu0 %v3165
    %3197 = vmatprep.subr.bf16.mxu0 0
    %3198 = vmatpush2.bf16.msra.mxu0 0
    %3199 = vmatprep.subr.bf16.mxu0 0
    %3200 = vmatpush2.bf16.msra.mxu0 0
    %3201 = vmatprep.subr.bf16.mxu0 0
    %3202 = vmatpush2.bf16.msra.mxu0 0
    %3203 = vmatprep.subr.bf16.mxu0 0
    %3204 = vmatpush2.bf16.msra.mxu0 0
    %3205 = vmatprep.subr.bf16.mxu0 0
    %3206 = vmatpush2.bf16.msra.mxu0 0
    %3207 = vmatprep.subr.bf16.mxu0 0
    %3208 = vmatpush2.bf16.msra.mxu0 0
    %3209 = vmatprep.subr.bf16.mxu0 0
    %3210 = vmatpush2.bf16.msra.mxu0 0
    %3211 = vmatprep.subr.bf16.mxu0 0
    %3212 = vmatpush2.bf16.msra.mxu0 0
    %3213 = vmatprep.mubr.bf16.mxu0 0
    %3214 = vmatmul.mubr.bf16.gmra.mxu0 %v3115
    %v3215 = vpop.f32.mrf.mxu0
    %v3216 = vadd.f32 0.0, %v3215
    %v3217 = vpop.f32.mrf.mxu0
    %v3218 = vpop.f32.mrf.mxu0
    %v3219 = vadd.f32 0.0, %v3218
    %v3220 = vpop.f32.mrf.mxu0
    %3221 = vmatprep.mubr.bf16.mxu0 0
    %3222 = vmatmul.mubr.bf16.gmra.mxu0 %v3116
    %v3223 = vpop.f32.mrf.mxu0
    %v3224 = vadd.f32 0.0, %v3223
    %v3225 = vpop.f32.mrf.mxu0
    %v3226 = vpop.f32.mrf.mxu0
    %v3227 = vadd.f32 0.0, %v3226
    %v3228 = vpop.f32.mrf.mxu0
    %3229 = vdwg.mxu0
    %v3246 = vunpack.c.l.b16 %v3099
    %v3247 = vunpack.c.l.b16 %v3100
    %v3248 = vunpack.c.l.b16 %v3101
    %v3249 = vunpack.c.l.b16 %v3102
    %v3250 = vunpack.c.l.b16 %v3103
    %v3251 = vunpack.c.l.b16 %v3104
    %v3252 = vunpack.c.l.b16 %v3105
    %v3253 = vunpack.c.l.b16 %v3106
    %v3254 = vunpack.c.l.b16 %v3107
    %v3255 = vunpack.c.l.b16 %v3108
    %v3256 = vunpack.c.l.b16 %v3109
    %v3257 = vunpack.c.l.b16 %v3110
    %v3258 = vunpack.c.l.b16 %v3111
    %v3259 = vunpack.c.l.b16 %v3112
    %v3260 = vunpack.c.l.b16 %v3113
    %v3261 = vunpack.c.l.b16 %v3114
    %v3262 = vpack.c.b16 %v3247, %v3246
    %v3263 = vpack.c.b16 %v3249, %v3248
    %v3264 = vpack.c.b16 %v3251, %v3250
    %v3265 = vpack.c.b16 %v3253, %v3252
    %v3266 = vpack.c.b16 %v3255, %v3254
    %v3267 = vpack.c.b16 %v3257, %v3256
    %v3268 = vpack.c.b16 %v3259, %v3258
    %v3269 = vpack.c.b16 %v3261, %v3260
    %3278 = vmatprep.subr.bf16.mxu0 0
    %3279 = vmatpush1.bf16.msra.mxu0 %v3269
    %3280 = vmatprep.subr.bf16.mxu0 0
    %3281 = vmatpush1.bf16.msra.mxu0 %v3268
    %3282 = vmatprep.subr.bf16.mxu0 0
    %3283 = vmatpush1.bf16.msra.mxu0 %v3267
    %3284 = vmatprep.subr.bf16.mxu0 0
    %3285 = vmatpush1.bf16.msra.mxu0 %v3266
    %3286 = vmatprep.subr.bf16.mxu0 0
    %3287 = vmatpush1.bf16.msra.mxu0 %v3265
    %3288 = vmatprep.subr.bf16.mxu0 0
    %3289 = vmatpush1.bf16.msra.mxu0 %v3264
    %3290 = vmatprep.subr.bf16.mxu0 0
    %3291 = vmatpush1.bf16.msra.mxu0 %v3263
    %3292 = vmatprep.subr.bf16.mxu0 0
    %3293 = vmatpush1.bf16.msra.mxu0 %v3262
    %3294 = vmatprep.subr.bf16.mxu0 0
    %3295 = vmatpush2.bf16.msra.mxu0 0
    %3296 = vmatprep.subr.bf16.mxu0 0
    %3297 = vmatpush2.bf16.msra.mxu0 0
    %3298 = vmatprep.subr.bf16.mxu0 0
    %3299 = vmatpush2.bf16.msra.mxu0 0
    %3300 = vmatprep.subr.bf16.mxu0 0
    %3301 = vmatpush2.bf16.msra.mxu0 0
    %3302 = vmatprep.subr.bf16.mxu0 0
    %3303 = vmatpush2.bf16.msra.mxu0 0
    %3304 = vmatprep.subr.bf16.mxu0 0
    %3305 = vmatpush2.bf16.msra.mxu0 0
    %3306 = vmatprep.subr.bf16.mxu0 0
    %3307 = vmatpush2.bf16.msra.mxu0 0
    %3308 = vmatprep.subr.bf16.mxu0 0
    %3309 = vmatpush2.bf16.msra.mxu0 0
    %3310 = vmatprep.mubr.bf16.mxu0 0
    %3311 = vmatmul.mubr.bf16.gmra.mxu0 %v3097
    %v3312 = vpop.f32.mrf.mxu0
    %v3313 = vadd.f32 %v3216, %v3312
    %v3314 = vpop.f32.mrf.mxu0
    %v3315 = vpop.f32.mrf.mxu0
    %v3316 = vadd.f32 %v3219, %v3315
    %v3317 = vpop.f32.mrf.mxu0
    %3318 = vmatprep.mubr.bf16.mxu0 0
    %3319 = vmatmul.mubr.bf16.gmra.mxu0 %v3098
    %v3320 = vpop.f32.mrf.mxu0
    %v3321 = vadd.f32 %v3224, %v3320
    %v3322 = vpop.f32.mrf.mxu0
    %v3323 = vpop.f32.mrf.mxu0
    %v3324 = vadd.f32 %v3227, %v3323
    %v3325 = vpop.f32.mrf.mxu0
    %3326 = vdwg.mxu0
    %v3327 = vpack.c.bf16 %v3084, %v3079
    %v3328 = vpack.c.bf16 %v3094, %v3089
    %v3329 = vld [vmem:[#allocation22] sm:$0xf]
    %v3330 = vld [vmem:[#allocation22 + $0x4] sm:$0xf]
    %v3331 = vld [vmem:[#allocation22 + $0x8] sm:$0xf]
    %v3332 = vld [vmem:[#allocation22 + $0xc] sm:$0xf]
    %v3333 = vld [vmem:[#allocation22 + $0x10] sm:$0xf]
    %v3334 = vld [vmem:[#allocation22 + $0x14] sm:$0xf]
    %v3335 = vld [vmem:[#allocation22 + $0x18] sm:$0xf]
    %v3336 = vld [vmem:[#allocation22 + $0x1c] sm:$0xf]
    %v3337 = vld [vmem:[#allocation22 + $0x20] sm:$0xf]
    %v3338 = vld [vmem:[#allocation22 + $0x24] sm:$0xf]
    %v3339 = vld [vmem:[#allocation22 + $0x28] sm:$0xf]
    %v3340 = vld [vmem:[#allocation22 + $0x2c] sm:$0xf]
    %v3341 = vld [vmem:[#allocation22 + $0x30] sm:$0xf]
    %v3342 = vld [vmem:[#allocation22 + $0x34] sm:$0xf]
    %v3343 = vld [vmem:[#allocation22 + $0x38] sm:$0xf]
    %v3344 = vld [vmem:[#allocation22 + $0x3c] sm:$0xf]
    %v3361 = vunpack.c.l.b16 %v3329
    %v3362 = vunpack.c.l.b16 %v3330
    %v3363 = vunpack.c.l.b16 %v3331
    %v3364 = vunpack.c.l.b16 %v3332
    %v3365 = vunpack.c.l.b16 %v3333
    %v3366 = vunpack.c.l.b16 %v3334
    %v3367 = vunpack.c.l.b16 %v3335
    %v3368 = vunpack.c.l.b16 %v3336
    %v3369 = vunpack.c.l.b16 %v3337
    %v3370 = vunpack.c.l.b16 %v3338
    %v3371 = vunpack.c.l.b16 %v3339
    %v3372 = vunpack.c.l.b16 %v3340
    %v3373 = vunpack.c.l.b16 %v3341
    %v3374 = vunpack.c.l.b16 %v3342
    %v3375 = vunpack.c.l.b16 %v3343
    %v3376 = vunpack.c.l.b16 %v3344
    %v3377 = vpack.c.b16 %v3362, %v3361
    %v3378 = vpack.c.b16 %v3364, %v3363
    %v3379 = vpack.c.b16 %v3366, %v3365
    %v3380 = vpack.c.b16 %v3368, %v3367
    %v3381 = vpack.c.b16 %v3370, %v3369
    %v3382 = vpack.c.b16 %v3372, %v3371
    %v3383 = vpack.c.b16 %v3374, %v3373
    %v3384 = vpack.c.b16 %v3376, %v3375
    %3393 = vmatprep.subr.bf16.mxu0 0
    %3394 = vmatpush1.bf16.msra.mxu0 %v3384
    %3395 = vmatprep.subr.bf16.mxu0 0
    %3396 = vmatpush1.bf16.msra.mxu0 %v3383
    %3397 = vmatprep.subr.bf16.mxu0 0
    %3398 = vmatpush1.bf16.msra.mxu0 %v3382
    %3399 = vmatprep.subr.bf16.mxu0 0
    %3400 = vmatpush1.bf16.msra.mxu0 %v3381
    %3401 = vmatprep.subr.bf16.mxu0 0
    %3402 = vmatpush1.bf16.msra.mxu0 %v3380
    %3403 = vmatprep.subr.bf16.mxu0 0
    %3404 = vmatpush1.bf16.msra.mxu0 %v3379
    %3405 = vmatprep.subr.bf16.mxu0 0
    %3406 = vmatpush1.bf16.msra.mxu0 %v3378
    %3407 = vmatprep.subr.bf16.mxu0 0
    %3408 = vmatpush1.bf16.msra.mxu0 %v3377
    %3409 = vmatprep.subr.bf16.mxu0 0
    %3410 = vmatpush2.bf16.msra.mxu0 0
    %3411 = vmatprep.subr.bf16.mxu0 0
    %3412 = vmatpush2.bf16.msra.mxu0 0
    %3413 = vmatprep.subr.bf16.mxu0 0
    %3414 = vmatpush2.bf16.msra.mxu0 0
    %3415 = vmatprep.subr.bf16.mxu0 0
    %3416 = vmatpush2.bf16.msra.mxu0 0
    %3417 = vmatprep.subr.bf16.mxu0 0
    %3418 = vmatpush2.bf16.msra.mxu0 0
    %3419 = vmatprep.subr.bf16.mxu0 0
    %3420 = vmatpush2.bf16.msra.mxu0 0
    %3421 = vmatprep.subr.bf16.mxu0 0
    %3422 = vmatpush2.bf16.msra.mxu0 0
    %3423 = vmatprep.subr.bf16.mxu0 0
    %3424 = vmatpush2.bf16.msra.mxu0 0
    %3425 = vmatprep.mubr.bf16.mxu0 0
    %3426 = vmatmul.mubr.bf16.gmra.mxu0 %v3327
    %v3427 = vpop.f32.mrf.mxu0
    %v3428 = vadd.f32 0.0, %v3427
    %v3429 = vpop.f32.mrf.mxu0
    %v3430 = vpop.f32.mrf.mxu0
    %v3431 = vadd.f32 0.0, %v3430
    %v3432 = vpop.f32.mrf.mxu0
    %3433 = vmatprep.mubr.bf16.mxu0 0
    %3434 = vmatmul.mubr.bf16.gmra.mxu0 %v3328
    %v3435 = vpop.f32.mrf.mxu0
    %v3436 = vadd.f32 0.0, %v3435
    %v3437 = vpop.f32.mrf.mxu0
    %v3438 = vpop.f32.mrf.mxu0
    %v3439 = vadd.f32 0.0, %v3438
    %v3440 = vpop.f32.mrf.mxu0
    %3441 = vdwg.mxu0
    %v3442 = vadd.f32 %v3313, %v3428
    %v3443 = vadd.f32 %v3316, %v3431
    %v3444 = vadd.f32 %v3321, %v3436
    %v3445 = vadd.f32 %v3324, %v3439
    %3446 = vmatprep.subr.mxu0 0.0
    %3447 = vmatpush1.msra.mxu0 %v281
    %3448 = vmatprep.subr.mxu0 0.0
    %3449 = vmatpush1.msra.mxu0 %v280
    %3450 = vmatprep.subr.mxu0 0.0
    %3451 = vmatpush1.msra.mxu0 %v279
    %3452 = vmatprep.subr.mxu0 0.0
    %3453 = vmatpush1.msra.mxu0 %v278
    %3454 = vmatprep.subr.mxu0 0.0
    %3455 = vmatpush1.msra.mxu0 %v277
    %3456 = vmatprep.subr.mxu0 0.0
    %3457 = vmatpush1.msra.mxu0 %v276
    %3458 = vmatprep.subr.mxu0 0.0
    %3459 = vmatpush1.msra.mxu0 %v275
    %3460 = vmatprep.subr.mxu0 0.0
    %3461 = vmatpush1.msra.mxu0 %v274
    %3462 = vmatprep.subr.mxu0 0.0
    %3463 = vmatpush1.msra.mxu0 %v273
    %3464 = vmatprep.subr.mxu0 0.0
    %3465 = vmatpush1.msra.mxu0 %v272
    %3466 = vmatprep.subr.mxu0 0.0
    %3467 = vmatpush1.msra.mxu0 %v271
    %3468 = vmatprep.subr.mxu0 0.0
    %3469 = vmatpush1.msra.mxu0 %v270
    %3470 = vmatprep.subr.mxu0 0.0
    %3471 = vmatpush1.msra.mxu0 %v269
    %3472 = vmatprep.subr.mxu0 0.0
    %3473 = vmatpush1.msra.mxu0 %v268
    %3474 = vmatprep.subr.mxu0 0.0
    %3475 = vmatpush1.msra.mxu0 %v267
    %3476 = vmatprep.subr.mxu0 0.0
    %3477 = vmatpush1.msra.mxu0 %v266
    %3478 = vmatprep.subr.mxu0 0.0
    %3479 = vmatpush2.msra.mxu0 0.0
    %3480 = vmatprep.subr.mxu0 0.0
    %3481 = vmatpush2.msra.mxu0 0.0
    %3482 = vmatprep.subr.mxu0 0.0
    %3483 = vmatpush2.msra.mxu0 0.0
    %3484 = vmatprep.subr.mxu0 0.0
    %3485 = vmatpush2.msra.mxu0 0.0
    %3486 = vmatprep.subr.mxu0 0.0
    %3487 = vmatpush2.msra.mxu0 0.0
    %3488 = vmatprep.subr.mxu0 0.0
    %3489 = vmatpush2.msra.mxu0 0.0
    %3490 = vmatprep.subr.mxu0 0.0
    %3491 = vmatpush2.msra.mxu0 0.0
    %3492 = vmatprep.subr.mxu0 0.0
    %3493 = vmatpush2.msra.mxu0 0.0
    %3494 = vmatprep.subr.mxu0 0.0
    %3495 = vmatpush2.msra.mxu0 0.0
    %3496 = vmatprep.subr.mxu0 0.0
    %3497 = vmatpush2.msra.mxu0 0.0
    %3498 = vmatprep.subr.mxu0 0.0
    %3499 = vmatpush2.msra.mxu0 0.0
    %3500 = vmatprep.subr.mxu0 0.0
    %3501 = vmatpush2.msra.mxu0 0.0
    %3502 = vmatprep.subr.mxu0 0.0
    %3503 = vmatpush2.msra.mxu0 0.0
    %3504 = vmatprep.subr.mxu0 0.0
    %3505 = vmatpush2.msra.mxu0 0.0
    %3506 = vmatprep.subr.mxu0 0.0
    %3507 = vmatpush2.msra.mxu0 0.0
    %3508 = vmatprep.subr.mxu0 0.0
    %3509 = vmatpush2.msra.mxu0 0.0
    %3510 = vmatprep.mubr.f32.mxu0 0.0
    %3511 = vmatmul.mubr.f32.gmra.mxu0 %v3442
    %v3512 = vpop.f32.mrf.mxu0
    %v3513 = vadd.f32 0.0, %v3512
    %v3514 = vpop.f32.mrf.mxu0
    %3515 = vmatprep.mubr.f32.mxu0 0.0
    %3516 = vmatmul.mubr.f32.gmra.mxu0 %v3443
    %v3517 = vpop.f32.mrf.mxu0
    %v3518 = vadd.f32 0.0, %v3517
    %v3519 = vpop.f32.mrf.mxu0
    %3520 = vmatprep.mubr.f32.mxu0 0.0
    %3521 = vmatmul.mubr.f32.gmra.mxu0 %v3444
    %v3522 = vpop.f32.mrf.mxu0
    %v3523 = vadd.f32 0.0, %v3522
    %v3524 = vpop.f32.mrf.mxu0
    %3525 = vmatprep.mubr.f32.mxu0 0.0
    %3526 = vmatmul.mubr.f32.gmra.mxu0 %v3445
    %v3527 = vpop.f32.mrf.mxu0
    %v3528 = vadd.f32 0.0, %v3527
    %v3529 = vpop.f32.mrf.mxu0
    %3530 = vdwg.mxu0
    %v3531 = vmul.f32 %v3442, %v3442
    %v3532 = vmul.f32 %v3443, %v3443
    %v3533 = vmul.f32 %v3444, %v3444
    %v3534 = vmul.f32 %v3445, %v3445
    %3535 = vmatprep.subr.mxu0 0.0
    %3536 = vmatpush1.msra.mxu0 %v281
    %3537 = vmatprep.subr.mxu0 0.0
    %3538 = vmatpush1.msra.mxu0 %v280
    %3539 = vmatprep.subr.mxu0 0.0
    %3540 = vmatpush1.msra.mxu0 %v279
    %3541 = vmatprep.subr.mxu0 0.0
    %3542 = vmatpush1.msra.mxu0 %v278
    %3543 = vmatprep.subr.mxu0 0.0
    %3544 = vmatpush1.msra.mxu0 %v277
    %3545 = vmatprep.subr.mxu0 0.0
    %3546 = vmatpush1.msra.mxu0 %v276
    %3547 = vmatprep.subr.mxu0 0.0
    %3548 = vmatpush1.msra.mxu0 %v275
    %3549 = vmatprep.subr.mxu0 0.0
    %3550 = vmatpush1.msra.mxu0 %v274
    %3551 = vmatprep.subr.mxu0 0.0
    %3552 = vmatpush1.msra.mxu0 %v273
    %3553 = vmatprep.subr.mxu0 0.0
    %3554 = vmatpush1.msra.mxu0 %v272
    %3555 = vmatprep.subr.mxu0 0.0
    %3556 = vmatpush1.msra.mxu0 %v271
    %3557 = vmatprep.subr.mxu0 0.0
    %3558 = vmatpush1.msra.mxu0 %v270
    %3559 = vmatprep.subr.mxu0 0.0
    %3560 = vmatpush1.msra.mxu0 %v269
    %3561 = vmatprep.subr.mxu0 0.0
    %3562 = vmatpush1.msra.mxu0 %v268
    %3563 = vmatprep.subr.mxu0 0.0
    %3564 = vmatpush1.msra.mxu0 %v267
    %3565 = vmatprep.subr.mxu0 0.0
    %3566 = vmatpush1.msra.mxu0 %v266
    %3567 = vmatprep.subr.mxu0 0.0
    %3568 = vmatpush2.msra.mxu0 0.0
    %3569 = vmatprep.subr.mxu0 0.0
    %3570 = vmatpush2.msra.mxu0 0.0
    %3571 = vmatprep.subr.mxu0 0.0
    %3572 = vmatpush2.msra.mxu0 0.0
    %3573 = vmatprep.subr.mxu0 0.0
    %3574 = vmatpush2.msra.mxu0 0.0
    %3575 = vmatprep.subr.mxu0 0.0
    %3576 = vmatpush2.msra.mxu0 0.0
    %3577 = vmatprep.subr.mxu0 0.0
    %3578 = vmatpush2.msra.mxu0 0.0
    %3579 = vmatprep.subr.mxu0 0.0
    %3580 = vmatpush2.msra.mxu0 0.0
    %3581 = vmatprep.subr.mxu0 0.0
    %3582 = vmatpush2.msra.mxu0 0.0
    %3583 = vmatprep.subr.mxu0 0.0
    %3584 = vmatpush2.msra.mxu0 0.0
    %3585 = vmatprep.subr.mxu0 0.0
    %3586 = vmatpush2.msra.mxu0 0.0
    %3587 = vmatprep.subr.mxu0 0.0
    %3588 = vmatpush2.msra.mxu0 0.0
    %3589 = vmatprep.subr.mxu0 0.0
    %3590 = vmatpush2.msra.mxu0 0.0
    %3591 = vmatprep.subr.mxu0 0.0
    %3592 = vmatpush2.msra.mxu0 0.0
    %3593 = vmatprep.subr.mxu0 0.0
    %3594 = vmatpush2.msra.mxu0 0.0
    %3595 = vmatprep.subr.mxu0 0.0
    %3596 = vmatpush2.msra.mxu0 0.0
    %3597 = vmatprep.subr.mxu0 0.0
    %3598 = vmatpush2.msra.mxu0 0.0
    %3599 = vmatprep.mubr.f32.mxu0 0.0
    %3600 = vmatmul.mubr.f32.gmra.mxu0 %v3531
    %v3601 = vpop.f32.mrf.mxu0
    %v3602 = vadd.f32 0.0, %v3601
    %v3603 = vpop.f32.mrf.mxu0
    %3604 = vmatprep.mubr.f32.mxu0 0.0
    %3605 = vmatmul.mubr.f32.gmra.mxu0 %v3532
    %v3606 = vpop.f32.mrf.mxu0
    %v3607 = vadd.f32 0.0, %v3606
    %v3608 = vpop.f32.mrf.mxu0
    %3609 = vmatprep.mubr.f32.mxu0 0.0
    %3610 = vmatmul.mubr.f32.gmra.mxu0 %v3533
    %v3611 = vpop.f32.mrf.mxu0
    %v3612 = vadd.f32 0.0, %v3611
    %v3613 = vpop.f32.mrf.mxu0
    %3614 = vmatprep.mubr.f32.mxu0 0.0
    %3615 = vmatmul.mubr.f32.gmra.mxu0 %v3534
    %v3616 = vpop.f32.mrf.mxu0
    %v3617 = vadd.f32 0.0, %v3616
    %v3618 = vpop.f32.mrf.mxu0
    %3619 = vdwg.mxu0
    %v3620 = vsel %vm928, %v3513, 0.0
    %v3621 = vsel %vm928, %v3518, 0.0
    %v3622 = vadd.f32 %v3620, %v3621
    %v3623 = vsel %vm928, %v3523, 0.0
    %v3624 = vadd.f32 %v3622, %v3623
    %v3625 = vsel %vm928, %v3528, 0.0
    %v3626 = vadd.f32 %v3624, %v3625
    %v3627 = vrot.slane %v3626, 4
    %v3628 = vadd.f32 %v3626, %v3627
    %v3629 = vrot.slane %v3628, 2
    %v3630 = vadd.f32 %v3628, %v3629
    %v3631 = vrot.slane %v3630, 1
    %v3632 = vadd.f32 %v3630, %v3631
    %v3633 = vsel %vm928, %v3602, 0.0
    %v3634 = vsel %vm928, %v3607, 0.0
    %v3635 = vadd.f32 %v3633, %v3634
    %v3636 = vsel %vm928, %v3612, 0.0
    %v3637 = vadd.f32 %v3635, %v3636
    %v3638 = vsel %vm928, %v3617, 0.0
    %v3639 = vadd.f32 %v3637, %v3638
    %v3640 = vrot.slane %v3639, 4
    %v3641 = vadd.f32 %v3639, %v3640
    %v3642 = vrot.slane %v3641, 2
    %v3643 = vadd.f32 %v3641, %v3642
    %v3644 = vrot.slane %v3643, 1
    %v3645 = vadd.f32 %v3643, %v3644
    %v3646 = vmul.f32 %v3632, 0.001953125
    %v3647 = vmul.f32 %v3645, 0.001953125
    %v3648 = vmul.f32 %v3646, %v3646
    %v3649 = vsub.f32 %v3647, %v3648
    %v3650 = vmax.f32 %v3649, 0.0
    %v3651 = vld [vmem:[%s23] sm:$0x1]
    %v3652 = vadd.f32 %v3650, 1e-05
    %v3653 = vrsqrt.pop %v3652
    %v3654 = vmul.f32 %v3651, %v3653
    %v3655 = vld [vmem:[%s24] sm:$0x1]
    %v3656 = vmul.f32 %v3646, %v3654
    %v3657 = vsub.f32 %v3655, %v3656
    %v3659 = vsel %vm928, %v3654, 0
    %3661 = vmatprep.subr.mxu0 0.0
    %3662 = vmatpush1.msra.mxu0 0.0
    %3663 = vmatprep.subr.mxu0 0.0
    %3664 = vmatpush1.msra.mxu0 0.0
    %3665 = vmatprep.subr.mxu0 0.0
    %3666 = vmatpush1.msra.mxu0 0.0
    %3667 = vmatprep.subr.mxu0 0.0
    %3668 = vmatpush1.msra.mxu0 0.0
    %3669 = vmatprep.subr.mxu0 0.0
    %3670 = vmatpush1.msra.mxu0 0.0
    %3671 = vmatprep.subr.mxu0 0.0
    %3672 = vmatpush1.msra.mxu0 0.0
    %3673 = vmatprep.subr.mxu0 0.0
    %3674 = vmatpush1.msra.mxu0 0.0
    %3675 = vmatprep.subr.mxu0 0.0
    %3676 = vmatpush1.msra.mxu0 0.0
    %3677 = vmatprep.subr.mxu0 0.0
    %3678 = vmatpush1.msra.mxu0 0.0
    %3679 = vmatprep.subr.mxu0 0.0
    %3680 = vmatpush1.msra.mxu0 0.0
    %3681 = vmatprep.subr.mxu0 0.0
    %3682 = vmatpush1.msra.mxu0 0.0
    %3683 = vmatprep.subr.mxu0 0.0
    %3684 = vmatpush1.msra.mxu0 0.0
    %3685 = vmatprep.subr.mxu0 0.0
    %3686 = vmatpush1.msra.mxu0 0.0
    %3687 = vmatprep.subr.mxu0 0.0
    %3688 = vmatpush1.msra.mxu0 0.0
    %3689 = vmatprep.subr.mxu0 0.0
    %3690 = vmatpush1.msra.mxu0 0.0
    %3691 = vmatprep.subr.mxu0 0.0
    %3692 = vmatpush1.msra.mxu0 %v282
    %3693 = vmatprep.subr.mxu0 0.0
    %3694 = vmatpush2.msra.mxu0 0.0
    %3695 = vmatprep.subr.mxu0 0.0
    %3696 = vmatpush2.msra.mxu0 0.0
    %3697 = vmatprep.subr.mxu0 0.0
    %3698 = vmatpush2.msra.mxu0 0.0
    %3699 = vmatprep.subr.mxu0 0.0
    %3700 = vmatpush2.msra.mxu0 0.0
    %3701 = vmatprep.subr.mxu0 0.0
    %3702 = vmatpush2.msra.mxu0 0.0
    %3703 = vmatprep.subr.mxu0 0.0
    %3704 = vmatpush2.msra.mxu0 0.0
    %3705 = vmatprep.subr.mxu0 0.0
    %3706 = vmatpush2.msra.mxu0 0.0
    %3707 = vmatprep.subr.mxu0 0.0
    %3708 = vmatpush2.msra.mxu0 0.0
    %3709 = vmatprep.subr.mxu0 0.0
    %3710 = vmatpush2.msra.mxu0 0.0
    %3711 = vmatprep.subr.mxu0 0.0
    %3712 = vmatpush2.msra.mxu0 0.0
    %3713 = vmatprep.subr.mxu0 0.0
    %3714 = vmatpush2.msra.mxu0 0.0
    %3715 = vmatprep.subr.mxu0 0.0
    %3716 = vmatpush2.msra.mxu0 0.0
    %3717 = vmatprep.subr.mxu0 0.0
    %3718 = vmatpush2.msra.mxu0 0.0
    %3719 = vmatprep.subr.mxu0 0.0
    %3720 = vmatpush2.msra.mxu0 0.0
    %3721 = vmatprep.subr.mxu0 0.0
    %3722 = vmatpush2.msra.mxu0 0.0
    %3723 = vmatprep.subr.mxu0 0.0
    %3724 = vmatpush2.msra.mxu0 0.0
    %3725 = vmatprep.mubr.f32.mxu0 0.0
    %3726 = vmatmul.mubr.f32.gmra.mxu0 %v3659
    %v3727 = vpop.f32.mrf.mxu0
    %v3728 = vadd.f32 0.0, %v3727
    %v3729 = vpop.f32.mrf.mxu0
    %3730 = vdwg.mxu0
    %v3732 = vsel %vm928, %v3657, 0
    %3734 = vmatprep.subr.mxu0 0.0
    %3735 = vmatpush1.msra.mxu0 0.0
    %3736 = vmatprep.subr.mxu0 0.0
    %3737 = vmatpush1.msra.mxu0 0.0
    %3738 = vmatprep.subr.mxu0 0.0
    %3739 = vmatpush1.msra.mxu0 0.0
    %3740 = vmatprep.subr.mxu0 0.0
    %3741 = vmatpush1.msra.mxu0 0.0
    %3742 = vmatprep.subr.mxu0 0.0
    %3743 = vmatpush1.msra.mxu0 0.0
    %3744 = vmatprep.subr.mxu0 0.0
    %3745 = vmatpush1.msra.mxu0 0.0
    %3746 = vmatprep.subr.mxu0 0.0
    %3747 = vmatpush1.msra.mxu0 0.0
    %3748 = vmatprep.subr.mxu0 0.0
    %3749 = vmatpush1.msra.mxu0 0.0
    %3750 = vmatprep.subr.mxu0 0.0
    %3751 = vmatpush1.msra.mxu0 0.0
    %3752 = vmatprep.subr.mxu0 0.0
    %3753 = vmatpush1.msra.mxu0 0.0
    %3754 = vmatprep.subr.mxu0 0.0
    %3755 = vmatpush1.msra.mxu0 0.0
    %3756 = vmatprep.subr.mxu0 0.0
    %3757 = vmatpush1.msra.mxu0 0.0
    %3758 = vmatprep.subr.mxu0 0.0
    %3759 = vmatpush1.msra.mxu0 0.0
    %3760 = vmatprep.subr.mxu0 0.0
    %3761 = vmatpush1.msra.mxu0 0.0
    %3762 = vmatprep.subr.mxu0 0.0
    %3763 = vmatpush1.msra.mxu0 0.0
    %3764 = vmatprep.subr.mxu0 0.0
    %3765 = vmatpush1.msra.mxu0 %v282
    %3766 = vmatprep.subr.mxu0 0.0
    %3767 = vmatpush2.msra.mxu0 0.0
    %3768 = vmatprep.subr.mxu0 0.0
    %3769 = vmatpush2.msra.mxu0 0.0
    %3770 = vmatprep.subr.mxu0 0.0
    %3771 = vmatpush2.msra.mxu0 0.0
    %3772 = vmatprep.subr.mxu0 0.0
    %3773 = vmatpush2.msra.mxu0 0.0
    %3774 = vmatprep.subr.mxu0 0.0
    %3775 = vmatpush2.msra.mxu0 0.0
    %3776 = vmatprep.subr.mxu0 0.0
    %3777 = vmatpush2.msra.mxu0 0.0
    %3778 = vmatprep.subr.mxu0 0.0
    %3779 = vmatpush2.msra.mxu0 0.0
    %3780 = vmatprep.subr.mxu0 0.0
    %3781 = vmatpush2.msra.mxu0 0.0
    %3782 = vmatprep.subr.mxu0 0.0
    %3783 = vmatpush2.msra.mxu0 0.0
    %3784 = vmatprep.subr.mxu0 0.0
    %3785 = vmatpush2.msra.mxu0 0.0
    %3786 = vmatprep.subr.mxu0 0.0
    %3787 = vmatpush2.msra.mxu0 0.0
    %3788 = vmatprep.subr.mxu0 0.0
    %3789 = vmatpush2.msra.mxu0 0.0
    %3790 = vmatprep.subr.mxu0 0.0
    %3791 = vmatpush2.msra.mxu0 0.0
    %3792 = vmatprep.subr.mxu0 0.0
    %3793 = vmatpush2.msra.mxu0 0.0
    %3794 = vmatprep.subr.mxu0 0.0
    %3795 = vmatpush2.msra.mxu0 0.0
    %3796 = vmatprep.subr.mxu0 0.0
    %3797 = vmatpush2.msra.mxu0 0.0
    %3798 = vmatprep.mubr.f32.mxu0 0.0
    %3799 = vmatmul.mubr.f32.gmra.mxu0 %v3732
    %v3800 = vpop.f32.mrf.mxu0
    %v3801 = vadd.f32 0.0, %v3800
    %v3802 = vpop.f32.mrf.mxu0
    %3803 = vdwg.mxu0
    %v3804 = vlaneseq
    %v3805 = vshrl.u32 %v3804, 7
    %v3806 = vsub.s32 0, %v3805
    %v3807 = vrot.slane %v3728, %v3806
    %v3808 = vmul.f32 %v3442, %v3807
    %v3809 = vmul.f32 %v3443, %v3807
    %v3810 = vmul.f32 %v3444, %v3807
    %v3811 = vmul.f32 %v3445, %v3807
    %v3812 = vlaneseq
    %v3813 = vshrl.u32 %v3812, 7
    %v3814 = vsub.s32 0, %v3813
    %v3815 = vrot.slane %v3801, %v3814
    %v3816 = vadd.f32 %v3808, %v3815
    %v3817 = vadd.f32 %v3809, %v3815
    %v3818 = vadd.f32 %v3810, %v3815
    %v3819 = vadd.f32 %v3811, %v3815
    %v3820 = vmax.f32 %v3816, 0.0
    %v3821 = vmax.f32 %v3817, 0.0
    %v3822 = vmax.f32 %v3818, 0.0
    %v3823 = vmax.f32 %v3819, 0.0
    %v3824 = vadd.f32 %v3820, %v2026
    %v3825 = vadd.f32 %v3821, %v2027
    %v3826 = vadd.f32 %v3822, %v2028
    %v3827 = vadd.f32 %v3823, %v2029
    %v3828 = vmax.f32 %v3824, 0.0
    %v3829 = vmax.f32 %v3825, 0.0
    %v3830 = vmax.f32 %v3826, 0.0
    %v3831 = vmax.f32 %v3827, 0.0
    %3832 = vst [vmem:[#allocation23] sm:$0xff] %v3828
    %3833 = vst [vmem:[#allocation23 + $0x8] sm:$0xff] %v3829
    %3834 = vst [vmem:[#allocation23 + $0x10] sm:$0xff] %v3830
    %3835 = vst [vmem:[#allocation23 + $0x18] sm:$0xff] %v3831
    // Predicated region
    $region154: #{tpu_custom_call.1} parent=1 // pred_check
      _
    $region155: #{tpu_custom_call.1} parent=1 // pred_check_branch
      %3837 = sbr.rel (0) target = $region157
    $region156: #{tpu_custom_call.1} parent=1 // pred_region
      %s3839 = ssub.s32 512, 512
      %3840 = vsyncadd [#allocation4], %s3839
      %s3841 = sshll.u32 [#allocation23], 4
      %s3842 = int_to_ptr.vmem [resolvable:$true] %s3841
      %3847 = dma.vmem_to_hbm [thread:$0]  %s3842, 512, %s25, [#allocation4], 128, 128, 8
    $region157: #{tpu_custom_call.1} parent=1 // pred_fallthru
      _
    // Predicated region
    $region158: #{tpu_custom_call.1} parent=1 // pred_check
      _
    $region159: #{tpu_custom_call.1} parent=1 // pred_check_branch
      %3849 = sbr.rel (0) target = $region161
    $region160: #{tpu_custom_call.1} parent=1 // pred_region
      %3850 = dma.done [#allocation4], 512
    $region161: #{tpu_custom_call.1} parent=1 // pred_fallthru
      _
    %3851 = vsyncpa [#allocation3], 1
    %3852 = vsyncpa [#allocation6], 1
    %3853 = vsyncpa [#allocation9], 1
    %3854 = vsyncpa [#allocation12], 1
    %3855 = vsyncpa [#allocation15], 1
    %3856 = vsyncpa [#allocation18], 1
    %3857 = vsyncpa [#allocation21], 1
    %3858 = vsyncpa [#allocation4], 1

</llo_original>
